<compile_context>
chip_gen: v6e
topology: v6e:2x2x1
jax: 0.10.0
libtpu: 0.0.40
codegen_flags: <defaults>
</compile_context>

<pallas_src>
import jax
import jax.numpy as jnp
import numpy as np
from jax.experimental import pallas as pl
from jax.experimental.pallas import tpu as pltpu

KLD_WEIGHT = 0.0025


def _rup(n: int, m: int) -> int:
    return ((n + m - 1) // m) * m


def _cdiv(a: int, b: int) -> int:
    return -(-a // b)


def _num_tensorcores() -> int:
    """2 TensorCores per (megacore) device on v4/v7x, 1 on v5e/v6e."""
    try:
        kind = jax.devices()[0].device_kind.lower()
    except Exception:  # pragma: no cover - defensive, never expected on TPU
        return 1
    return 2 if any(tag in kind for tag in ("v4", "v7", "7x")) else 1


# ----------------------------------------------------------------------------- kernel
def make_cvae_kernel(Din, Dout, H, L, offs):
    f32, bf16 = jnp.float32, jnp.bfloat16
    o_ew1, o_ew2, o_ew3 = offs["ew1"], offs["ew2"], offs["ew3"]
    o_dw1, o_dw2, o_dw3 = offs["dw1"], offs["dw2"], offs["dw3"]

    def kernel(act_ref, w_ref, b_ref, out_ref):
        # One bf16 activation DMA per grid step: [xin | yin | noise].
        act = act_ref[...]                            # bf16 (TB, Din+Dout+L)
        xy = act[:, :Din + Dout]                      # encoder input (already bf16)
        y = act[:, Din:Din + Dout]                    # decoder condition (reuses cast slab)
        noise = act[:, Din + Dout:].astype(f32)       # reparametrization noise

        # Static, 16-row-aligned views into the resident bf16 weight slab (zero-cost).
        ew1 = w_ref[o_ew1:o_ew1 + Din + Dout, 0:H]
        ew2 = w_ref[o_ew2:o_ew2 + H, 0:H]
        ew3 = w_ref[o_ew3:o_ew3 + H, 0:2 * L]
        dw1 = w_ref[o_dw1:o_dw1 + L + Din, 0:H]
        dw2 = w_ref[o_dw2:o_dw2 + H, 0:H]
        dw3 = w_ref[o_dw3:o_dw3 + H, 0:Dout]

        # f32 bias rows.
        eb1 = b_ref[0:1, 0:H]
        eb2 = b_ref[1:2, 0:H]
        eb3 = b_ref[2:3, 0:2 * L]
        db1 = b_ref[3:4, 0:H]
        db2 = b_ref[4:5, 0:H]
        db3 = b_ref[5:6, 0:Dout]

        # ---- Encoder: Linear -> ReLU -> Linear -> ReLU -> Linear(H, 2L)
        h1 = jnp.maximum(jnp.dot(xy, ew1, preferred_element_type=f32) + eb1, 0.0).astype(bf16)
        h2 = jnp.maximum(jnp.dot(h1, ew2, preferred_element_type=f32) + eb2, 0.0).astype(bf16)
        ml = jnp.dot(h2, ew3, preferred_element_type=f32) + eb3      # (TB, 2L): [mu | logvar]
        mu = ml[:, :L]
        logvar = ml[:, L:]

        # ---- Reparametrize: z = mu + noise * exp(0.5 * logvar)   (single EUP pass)
        std = jnp.exp(0.5 * logvar)
        z = (mu + noise * std).astype(bf16)

        # ---- Decoder: single fused first matmul on concat([z, y]) (lane concat -> XLU)
        zy = jnp.concatenate([z, y], axis=1)                         # bf16 (TB, L+Din)
        d1 = jnp.maximum(jnp.dot(zy, dw1, preferred_element_type=f32) + db1, 0.0).astype(bf16)
        d2 = jnp.maximum(jnp.dot(d1, dw2, preferred_element_type=f32) + db2, 0.0).astype(bf16)
        x_hat = jnp.dot(d2, dw3, preferred_element_type=f32) + db3

        # Single lane-packed output block: [x_hat | mu | logvar]
        out_ref[...] = jnp.concatenate([x_hat, ml], axis=1).astype(out_ref.dtype)

    return kernel


# ---------------------------------------------------------------------- params / packing
def make_params(key, input_size, output_size, hidden_size, latent_size):
    """Deterministic synthetic parameters (same shapes as the nn.Linear stack), f32."""
    def lin(k, fan_in, fan_out):
        kw, kb = jax.random.split(k)
        bound = 1.0 / np.sqrt(fan_in)
        w = jax.random.uniform(kw, (fan_in, fan_out), jnp.float32, -bound, bound)
        b = jax.random.uniform(kb, (1, fan_out), jnp.float32, -bound, bound)
        return w, b

    keys = jax.random.split(key, 6)
    ew1, eb1 = lin(keys[0], input_size + output_size, hidden_size)
    ew2, eb2 = lin(keys[1], hidden_size, hidden_size)
    ew3, eb3 = lin(keys[2], hidden_size, 2 * latent_size)
    dw1, db1 = lin(keys[3], latent_size + input_size, hidden_size)
    dw2, db2 = lin(keys[4], hidden_size, hidden_size)
    dw3, db3 = lin(keys[5], hidden_size, output_size)
    return dict(ew1=ew1, eb1=eb1, ew2=ew2, eb2=eb2, ew3=ew3, eb3=eb3,
                dw1=dw1, db1=db1, dw2=dw2, db2=db2, dw3=dw3, db3=db3)


def pack_params(params, input_size, output_size, hidden_size, latent_size):
    """Pack all weights into one bf16 slab (16-row-aligned segment offsets, common lane
    width) and all biases into one small f32 slab. Call ONCE at model init."""
    Din, Dout, H, L = input_size, output_size, hidden_size, latent_size
    W = max(H, 2 * L, Dout)
    segs = [
        ("ew1", np.asarray(params["ew1"], np.float32)),
        ("ew2", np.asarray(params["ew2"], np.float32)),
        ("ew3", np.asarray(params["ew3"], np.float32)),
        ("dw1", np.asarray(params["dw1"], np.float32)),   # kept fused: (L+Din, H)
        ("dw2", np.asarray(params["dw2"], np.float32)),
        ("dw3", np.asarray(params["dw3"], np.float32)),
    ]
    blocks, offs, off = [], {}, 0
    for name, w in segs:
        r, c = w.shape
        alloc = _rup(r, 16)            # bf16 sublane-tile (16 rows) alignment
        blk = np.zeros((alloc, W), np.float32)
        blk[:r, :c] = w
        blocks.append(blk)
        offs[name] = off
        off += alloc
    w_slab = jnp.asarray(np.concatenate(blocks, axis=0), jnp.bfloat16)

    b_slab = np.zeros((8, W), np.float32)
    for i, name in enumerate(["eb1", "eb2", "eb3", "db1", "db2", "db3"]):
        b = np.asarray(params[name], np.float32).reshape(-1)
        b_slab[i, :b.shape[0]] = b

    return dict(w_slab=w_slab, b_slab=jnp.asarray(b_slab), offs=offs,
                dims=dict(Din=Din, Dout=Dout, H=H, L=L))


# --------------------------------------------------------------------------- forward
def make_cvae_forward(packed, *, n_cores=None, max_block_rows=1024):
    """Build the forward fn once; the packed slabs live on-device and are closed over."""
    dims = packed["dims"]
    Din, Dout, H, L = dims["Din"], dims["Dout"], dims["H"], dims["L"]
    # The module's mse_loss(x_hat, xin) and Linear(num_latent + input_size, ...) decoder
    # only type-check when input_size == output_size; fail loudly otherwise.
    assert Din == Dout, "CVAE.forward requires input_size == output_size"

    w_slab, b_slab, offs = packed["w_slab"], packed["b_slab"], packed["offs"]
    if n_cores is None:
        n_cores = _num_tensorcores()

    kernel = make_cvae_kernel(Din, Dout, H, L, offs)
    act_w = Din + Dout + L
    out_w = Dout + 2 * L

    def forward(xin, yin, noise):
        B = xin.shape[0]
        # One grid step per TensorCore (1 on v5e/v6e, 2 parallel on v7x) unless the tile
        # would exceed max_block_rows; M (=tb) is the only non-tiny MXU dim, keep it big.
        n_tiles = max(n_cores, _cdiv(B, max_block_rows))
        n_tiles = _rup(n_tiles, n_cores)
        tb = _rup(_cdiv(B, n_tiles), 8)
        Bpad = tb * n_tiles

        # Single bf16 activation slab -> one input DMA stream per grid step.
        act = jnp.concatenate([xin, yin, noise], axis=1).astype(jnp.bfloat16)
        if Bpad != B:
            act = jnp.pad(act, ((0, Bpad - B), (0, 0)))

        out = pl.pallas_call(
            kernel,
            out_shape=jax.ShapeDtypeStruct((Bpad, out_w), jnp.float32),
            grid=(n_tiles,),
            in_specs=[
                pl.BlockSpec((tb, act_w), lambda i: (i, 0)),        # activation tile
                pl.BlockSpec(w_slab.shape, lambda i: (0, 0)),       # resident weight slab
                pl.BlockSpec(b_slab.shape, lambda i: (0, 0)),       # resident bias slab
            ],
            out_specs=pl.BlockSpec((tb, out_w), lambda i: (i, 0)),  # [x_hat | mu | logvar]
            compiler_params=pltpu.CompilerParams(
                dimension_semantics=("parallel",),    # shard tiles across v7x's 2 TCs
            ),
        )(act, w_slab, b_slab)

        out = out[:B]
        x_hat = out[:, :Dout]
        mean = out[:, Dout:Dout + L]
        logvar = out[:, Dout + L:]

        # Scalar losses (trivial reductions) computed in the wrapper from kernel outputs.
        recon = jnp.mean((x_hat - xin) ** 2)
        kld = jnp.mean(-0.5 * jnp.sum(1.0 + logvar - mean ** 2 - jnp.exp(logvar), axis=1))
        loss = recon + KLD_WEIGHT * kld
        return loss, x_hat, (recon, -kld), mean, logvar   # module returns 'KLD': -kld_loss

    return jax.jit(forward)


# --------------------------------------------------------------------------- reference
def cvae_forward_ref(xin, yin, noise, params):
    """Pure-JAX reference mirroring the kernel's precision (bf16 matmul operands,
    f32 accumulation, f32 elementwise) and the PyTorch forward semantics."""
    f32, bf16 = jnp.float32, jnp.bfloat16
    L = params["ew3"].shape[1] // 2

    def bdot(a, w):
        return jnp.dot(a.astype(bf16), w.astype(bf16), preferred_element_type=f32)

    xy = jnp.concatenate([xin, yin], axis=1)
    h1 = jax.nn.relu(bdot(xy, params["ew1"]) + params["eb1"])
    h2 = jax.nn.relu(bdot(h1, params["ew2"]) + params["eb2"])
    ml = bdot(h2, params["ew3"]) + params["eb3"]
    mu, logvar = ml[:, :L], ml[:, L:]
    z = mu + noise * jnp.exp(0.5 * logvar)
    zy = jnp.concatenate([z, yin], axis=1)
    d1 = jax.nn.relu(bdot(zy, params["dw1"]) + params["db1"])
    d2 = jax.nn.relu(bdot(d1, params["dw2"]) + params["db2"])
    x_hat = bdot(d2, params["dw3"]) + params["db3"]

    recon = jnp.mean((x_hat - xin) ** 2)
    kld = jnp.mean(-0.5 * jnp.sum(1.0 + logvar - mu ** 2 - jnp.exp(logvar), axis=1))
    loss = recon + KLD_WEIGHT * kld
    return loss, x_hat, (recon, -kld), mu, logvar


if __name__ == "__main__":
    # input_size must equal output_size for the module's loss to type-check (see assert).
    B, INPUT, OUTPUT, HIDDEN, LATENT = 512, 8, 8, 32, 4

    key = jax.random.PRNGKey(0)
    k_x, k_y, k_n, k_p = jax.random.split(key, 4)
    xin = jax.random.normal(k_x, (B, INPUT), jnp.float32)
    yin = jax.random.normal(k_y, (B, OUTPUT), jnp.float32)
    # Reparametrization noise (torch.randn_like) is generated outside the kernel; it is
    # pre-rounded to bf16-representable values since it rides the bf16 activation slab.
    noise = jax.random.normal(k_n, (B, LATENT), jnp.float32).astype(jnp.bfloat16).astype(jnp.float32)

    params = make_params(k_p, INPUT, OUTPUT, HIDDEN, LATENT)
    packed = pack_params(params, INPUT, OUTPUT, HIDDEN, LATENT)   # pack + upload ONCE
    cvae_forward = make_cvae_forward(packed)

    m_loss, x_hat, (recon_loss, kld_loss), mean, logvar = cvae_forward(xin, yin, noise)
    jax.block_until_ready((m_loss, x_hat, recon_loss, kld_loss, mean, logvar))

    # Correctness check against the precision-matched pure-JAX reference.
    r_loss, r_xhat, (r_recon, r_kld), r_mean, r_logvar = cvae_forward_ref(xin, yin, noise, params)
    tol = dict(rtol=1e-2, atol=1e-2)
    np.testing.assert_allclose(np.asarray(m_loss), np.asarray(r_loss), **tol)
    np.testing.assert_allclose(np.asarray(x_hat), np.asarray(r_xhat), **tol)
    np.testing.assert_allclose(np.asarray(recon_loss), np.asarray(r_recon), **tol)
    np.testing.assert_allclose(np.asarray(kld_loss), np.asarray(r_kld), **tol)
    np.testing.assert_allclose(np.asarray(mean), np.asarray(r_mean), **tol)
    np.testing.assert_allclose(np.asarray(logvar), np.asarray(r_logvar), **tol)

    print("KERNEL_OK")
</pallas_src>

<mosaic_0001>
module attributes {stable_mosaic.version = 11 : i64} {
  func.func @kernel(%arg0: i32, %arg1: memref<512x20xbf16, #tpu.memory_space<vmem>>, %arg2: memref<160x32xbf16, #tpu.memory_space<vmem>>, %arg3: memref<8x32xf32, #tpu.memory_space<vmem>>, %arg4: memref<512x16xf32, #tpu.memory_space<vmem>>) attributes {dimension_semantics = [#tpu.dimension_semantics<parallel>], iteration_bounds = array<i64: 1>, scalar_prefetch = 0 : i64, scratch_operands = 0 : i64, tpu.core_type = #tpu.core_type<tc>, window_params = [{transform_indices = @transform_0, window_bounds = array<i64: 512, 20>}, {pipeline_mode = #tpu.pipeline_mode<synchronous>, transform_indices = @transform_1, window_bounds = array<i64: 160, 32>}, {pipeline_mode = #tpu.pipeline_mode<synchronous>, transform_indices = @transform_2, window_bounds = array<i64: 8, 32>}, {transform_indices = @transform_3, window_bounds = array<i64: 512, 16>}]} {
    %c0 = arith.constant 0 : index
    %c0_0 = arith.constant 0 : index
    %0 = vector.load %arg1[%c0, %c0_0] : memref<512x20xbf16, #tpu.memory_space<vmem>>, vector<512x20xbf16>
    %1 = vector.extract_strided_slice %0 {offsets = [0, 0], sizes = [512, 16], strides = [1, 1]} : vector<512x20xbf16> to vector<512x16xbf16>
    %2 = vector.extract_strided_slice %0 {offsets = [0, 8], sizes = [512, 8], strides = [1, 1]} : vector<512x20xbf16> to vector<512x8xbf16>
    %3 = vector.extract_strided_slice %0 {offsets = [0, 16], sizes = [512, 4], strides = [1, 1]} : vector<512x20xbf16> to vector<512x4xbf16>
    %4 = arith.extf %3 : vector<512x4xbf16> to vector<512x4xf32>
    %c0_1 = arith.constant 0 : index
    %c0_2 = arith.constant 0 : index
    %5 = vector.load %arg2[%c0_1, %c0_2] : memref<160x32xbf16, #tpu.memory_space<vmem>>, vector<16x32xbf16>
    %c16 = arith.constant 16 : index
    %c0_3 = arith.constant 0 : index
    %6 = vector.load %arg2[%c16, %c0_3] : memref<160x32xbf16, #tpu.memory_space<vmem>>, vector<32x32xbf16>
    %c48 = arith.constant 48 : index
    %c0_4 = arith.constant 0 : index
    %7 = vector.load %arg2[%c48, %c0_4] : memref<160x32xbf16, #tpu.memory_space<vmem>>, vector<32x8xbf16>
    %c80 = arith.constant 80 : index
    %c0_5 = arith.constant 0 : index
    %8 = vector.load %arg2[%c80, %c0_5] : memref<160x32xbf16, #tpu.memory_space<vmem>>, vector<12x32xbf16>
    %c96 = arith.constant 96 : index
    %c0_6 = arith.constant 0 : index
    %9 = vector.load %arg2[%c96, %c0_6] : memref<160x32xbf16, #tpu.memory_space<vmem>>, vector<32x32xbf16>
    %c128 = arith.constant 128 : index
    %c0_7 = arith.constant 0 : index
    %10 = vector.load %arg2[%c128, %c0_7] : memref<160x32xbf16, #tpu.memory_space<vmem>>, vector<32x8xbf16>
    %c0_8 = arith.constant 0 : index
    %c0_9 = arith.constant 0 : index
    %11 = vector.load %arg3[%c0_8, %c0_9] : memref<8x32xf32, #tpu.memory_space<vmem>>, vector<1x32xf32>
    %c1 = arith.constant 1 : index
    %c0_10 = arith.constant 0 : index
    %12 = vector.load %arg3[%c1, %c0_10] : memref<8x32xf32, #tpu.memory_space<vmem>>, vector<1x32xf32>
    %c2 = arith.constant 2 : index
    %c0_11 = arith.constant 0 : index
    %13 = vector.load %arg3[%c2, %c0_11] : memref<8x32xf32, #tpu.memory_space<vmem>>, vector<1x8xf32>
    %c3 = arith.constant 3 : index
    %c0_12 = arith.constant 0 : index
    %14 = vector.load %arg3[%c3, %c0_12] : memref<8x32xf32, #tpu.memory_space<vmem>>, vector<1x32xf32>
    %c4 = arith.constant 4 : index
    %c0_13 = arith.constant 0 : index
    %15 = vector.load %arg3[%c4, %c0_13] : memref<8x32xf32, #tpu.memory_space<vmem>>, vector<1x32xf32>
    %c5 = arith.constant 5 : index
    %c0_14 = arith.constant 0 : index
    %16 = vector.load %arg3[%c5, %c0_14] : memref<8x32xf32, #tpu.memory_space<vmem>>, vector<1x8xf32>
    %cst = arith.constant dense<0.000000e+00> : vector<512x32xf32>
    %17 = tpu.matmul %1, %5, %cst {dimension_numbers = #tpu.dot_dimension_numbers<[1], [0], [0], [1], [0, 0, 1, 1], [], []>} : vector<512x16xbf16>, vector<16x32xbf16>, vector<512x32xf32> -> vector<512x32xf32>
    %18 = vector.broadcast %11 : vector<1x32xf32> to vector<512x32xf32>
    %19 = arith.addf %17, %18 : vector<512x32xf32>
    %cst_15 = arith.constant 0.000000e+00 : f32
    %20 = vector.broadcast %cst_15 : f32 to vector<512x32xf32>
    %21 = arith.maximumf %19, %20 : vector<512x32xf32>
    %22 = arith.truncf %21 : vector<512x32xf32> to vector<512x32xbf16>
    %cst_16 = arith.constant dense<0.000000e+00> : vector<512x32xf32>
    %23 = tpu.matmul %22, %6, %cst_16 {dimension_numbers = #tpu.dot_dimension_numbers<[1], [0], [0], [1], [0, 0, 1, 1], [], []>} : vector<512x32xbf16>, vector<32x32xbf16>, vector<512x32xf32> -> vector<512x32xf32>
    %24 = vector.broadcast %12 : vector<1x32xf32> to vector<512x32xf32>
    %25 = arith.addf %23, %24 : vector<512x32xf32>
    %cst_17 = arith.constant 0.000000e+00 : f32
    %26 = vector.broadcast %cst_17 : f32 to vector<512x32xf32>
    %27 = arith.maximumf %25, %26 : vector<512x32xf32>
    %28 = arith.truncf %27 : vector<512x32xf32> to vector<512x32xbf16>
    %cst_18 = arith.constant dense<0.000000e+00> : vector<512x8xf32>
    %29 = tpu.matmul %28, %7, %cst_18 {dimension_numbers = #tpu.dot_dimension_numbers<[1], [0], [0], [1], [0, 0, 1, 1], [], []>} : vector<512x32xbf16>, vector<32x8xbf16>, vector<512x8xf32> -> vector<512x8xf32>
    %30 = vector.broadcast %13 : vector<1x8xf32> to vector<512x8xf32>
    %31 = arith.addf %29, %30 : vector<512x8xf32>
    %32 = vector.extract_strided_slice %31 {offsets = [0, 0], sizes = [512, 4], strides = [1, 1]} : vector<512x8xf32> to vector<512x4xf32>
    %33 = vector.extract_strided_slice %31 {offsets = [0, 4], sizes = [512, 4], strides = [1, 1]} : vector<512x8xf32> to vector<512x4xf32>
    %cst_19 = arith.constant 5.000000e-01 : f32
    %34 = vector.broadcast %cst_19 : f32 to vector<512x4xf32>
    %35 = arith.mulf %34, %33 : vector<512x4xf32>
    %36 = math.exp %35 : vector<512x4xf32>
    %37 = arith.mulf %4, %36 : vector<512x4xf32>
    %38 = arith.addf %32, %37 : vector<512x4xf32>
    %39 = arith.truncf %38 : vector<512x4xf32> to vector<512x4xbf16>
    %40 = tpu.concatenate %39, %2 in 1 : vector<512x4xbf16>, vector<512x8xbf16> -> vector<512x12xbf16>
    %cst_20 = arith.constant dense<0.000000e+00> : vector<512x32xf32>
    %41 = tpu.matmul %40, %8, %cst_20 {dimension_numbers = #tpu.dot_dimension_numbers<[1], [0], [0], [1], [0, 0, 1, 1], [], []>} : vector<512x12xbf16>, vector<12x32xbf16>, vector<512x32xf32> -> vector<512x32xf32>
    %42 = vector.broadcast %14 : vector<1x32xf32> to vector<512x32xf32>
    %43 = arith.addf %41, %42 : vector<512x32xf32>
    %cst_21 = arith.constant 0.000000e+00 : f32
    %44 = vector.broadcast %cst_21 : f32 to vector<512x32xf32>
    %45 = arith.maximumf %43, %44 : vector<512x32xf32>
    %46 = arith.truncf %45 : vector<512x32xf32> to vector<512x32xbf16>
    %cst_22 = arith.constant dense<0.000000e+00> : vector<512x32xf32>
    %47 = tpu.matmul %46, %9, %cst_22 {dimension_numbers = #tpu.dot_dimension_numbers<[1], [0], [0], [1], [0, 0, 1, 1], [], []>} : vector<512x32xbf16>, vector<32x32xbf16>, vector<512x32xf32> -> vector<512x32xf32>
    %48 = vector.broadcast %15 : vector<1x32xf32> to vector<512x32xf32>
    %49 = arith.addf %47, %48 : vector<512x32xf32>
    %cst_23 = arith.constant 0.000000e+00 : f32
    %50 = vector.broadcast %cst_23 : f32 to vector<512x32xf32>
    %51 = arith.maximumf %49, %50 : vector<512x32xf32>
    %52 = arith.truncf %51 : vector<512x32xf32> to vector<512x32xbf16>
    %cst_24 = arith.constant dense<0.000000e+00> : vector<512x8xf32>
    %53 = tpu.matmul %52, %10, %cst_24 {dimension_numbers = #tpu.dot_dimension_numbers<[1], [0], [0], [1], [0, 0, 1, 1], [], []>} : vector<512x32xbf16>, vector<32x8xbf16>, vector<512x8xf32> -> vector<512x8xf32>
    %54 = vector.broadcast %16 : vector<1x8xf32> to vector<512x8xf32>
    %55 = arith.addf %53, %54 : vector<512x8xf32>
    %56 = tpu.concatenate %55, %31 in 1 : vector<512x8xf32>, vector<512x8xf32> -> vector<512x16xf32>
    %c0_25 = arith.constant 0 : index
    %c0_26 = arith.constant 0 : index
    %57 = vector.load %arg4[%c0_25, %c0_26] : memref<512x16xf32, #tpu.memory_space<vmem>>, vector<512x16xf32>
    tpu.vector_store %arg4[%c0_25, %c0_26], %56 {strides = array<i32>} : memref<512x16xf32, #tpu.memory_space<vmem>>, vector<512x16xf32>,
    return
  }
  func.func @transform_0(%arg0: i32) -> (i32, i32) {
    %c0_i32 = arith.constant 0 : i32
    %c0_i32_0 = arith.constant 0 : i32
    return %arg0, %c0_i32 : i32, i32
  }
  func.func @transform_1(%arg0: i32) -> (i32, i32) {
    %c0_i32 = arith.constant 0 : i32
    %c0_i32_0 = arith.constant 0 : i32
    %c0_i32_1 = arith.constant 0 : i32
    return %c0_i32, %c0_i32_0 : i32, i32
  }
  func.func @transform_2(%arg0: i32) -> (i32, i32) {
    %c0_i32 = arith.constant 0 : i32
    %c0_i32_0 = arith.constant 0 : i32
    %c0_i32_1 = arith.constant 0 : i32
    return %c0_i32, %c0_i32_0 : i32, i32
  }
  func.func @transform_3(%arg0: i32) -> (i32, i32) {
    %c0_i32 = arith.constant 0 : i32
    %c0_i32_0 = arith.constant 0 : i32
    return %arg0, %c0_i32 : i32, i32
  }
}

</mosaic_0001>

<llo_original>
// kernel: forward.1
$region0: #{forward.1}
  #allocation0 [shape = 'u32[]', space=smem, size = 0x4, offset = 0x4, fixed_abs, tag = 'smem constant byte address 0x4 - core index']
  #allocation1 [shape = 'u32[144,128]{1,0:T(1,128)}', space=vmem, size = 0x12000, scoped, tag = 'internal scratch']
  %s0 = inlined_call_operand.vmem [shape: bf16[512,20], index: 0, kind: input, shape index: {}]
  %s1 = inlined_call_operand.vmem [shape: bf16[160,32], index: 1, kind: input, shape index: {}]
  %s2 = inlined_call_operand.vmem [shape: f32[8,32], index: 2, kind: input, shape index: {}]
  %s3 = inlined_call_operand.vmem [shape: f32[512,16], index: 3, kind: output, shape index: {}]
  %s4 = sld [smem:[#allocation0]]
  $region22: #{forward.1} parent=0
    _
  %s6 = ssub.s32 1, %s4
  %s7 = scalar_select 0, %s6, %s4
  // Predicated region
  $region2: #{forward.1} parent=0 // pred_check
    _
  $region3: #{forward.1} parent=0 // pred_check_branch
    %9 = sbr.rel (0) target = $region5
  $region4: #{forward.1} parent=0 // pred_region
    _
  $region5: #{forward.1} parent=0 // pred_fallthru
    _
  // Predicated region
  $region6: #{forward.1} parent=0 // pred_check
    _
  $region7: #{forward.1} parent=0 // pred_check_branch
    %11 = sbr.rel (0) target = $region9
  $region8: #{forward.1} parent=0 // pred_region
    _
  $region9: #{forward.1} parent=0 // pred_fallthru
    _
  // Predicated region
  $region10: #{forward.1} parent=0 // pred_check
    _
  $region11: #{forward.1} parent=0 // pred_check_branch
    %13 = sbr.rel (0) target = $region13
  $region12: #{forward.1} parent=0 // pred_region
    _
  $region13: #{forward.1} parent=0 // pred_fallthru
    _
  %v15 = vld [vmem:[%s0] sm:$0xf]
  %v16 = vld [vmem:[%s0 + $0x4] sm:$0xf]
  %v17 = vld [vmem:[%s0 + $0x8] sm:$0xf]
  %v18 = vld [vmem:[%s0 + $0xc] sm:$0xf]
  %v19 = vld [vmem:[%s0 + $0x10] sm:$0xf]
  %v20 = vld [vmem:[%s0 + $0x14] sm:$0xf]
  %v21 = vld [vmem:[%s0 + $0x18] sm:$0xf]
  %v22 = vld [vmem:[%s0 + $0x1c] sm:$0xf]
  %v23 = vld [vmem:[%s0 + $0x20] sm:$0xf]
  %v24 = vld [vmem:[%s0 + $0x24] sm:$0xf]
  %v25 = vld [vmem:[%s0 + $0x28] sm:$0xf]
  %v26 = vld [vmem:[%s0 + $0x2c] sm:$0xf]
  %v27 = vld [vmem:[%s0 + $0x30] sm:$0xf]
  %v28 = vld [vmem:[%s0 + $0x34] sm:$0xf]
  %v29 = vld [vmem:[%s0 + $0x38] sm:$0xf]
  %v30 = vld [vmem:[%s0 + $0x3c] sm:$0xf]
  %v31 = vld [vmem:[%s0 + $0x40] sm:$0xf]
  %v32 = vld [vmem:[%s0 + $0x44] sm:$0xf]
  %v33 = vld [vmem:[%s0 + $0x48] sm:$0xf]
  %v34 = vld [vmem:[%s0 + $0x4c] sm:$0xf]
  %v35 = vld [vmem:[%s0 + $0x50] sm:$0xf]
  %v36 = vld [vmem:[%s0 + $0x54] sm:$0xf]
  %v37 = vld [vmem:[%s0 + $0x58] sm:$0xf]
  %v38 = vld [vmem:[%s0 + $0x5c] sm:$0xf]
  %v39 = vld [vmem:[%s0 + $0x60] sm:$0xf]
  %v40 = vld [vmem:[%s0 + $0x64] sm:$0xf]
  %v41 = vld [vmem:[%s0 + $0x68] sm:$0xf]
  %v42 = vld [vmem:[%s0 + $0x6c] sm:$0xf]
  %v43 = vld [vmem:[%s0 + $0x70] sm:$0xf]
  %v44 = vld [vmem:[%s0 + $0x74] sm:$0xf]
  %v45 = vld [vmem:[%s0 + $0x78] sm:$0xf]
  %v46 = vld [vmem:[%s0 + $0x7c] sm:$0xf]
  %v47 = vld [vmem:[%s0 + $0x80] sm:$0xf]
  %v48 = vld [vmem:[%s0 + $0x84] sm:$0xf]
  %v49 = vld [vmem:[%s0 + $0x88] sm:$0xf]
  %v50 = vld [vmem:[%s0 + $0x8c] sm:$0xf]
  %v51 = vld [vmem:[%s0 + $0x90] sm:$0xf]
  %v52 = vld [vmem:[%s0 + $0x94] sm:$0xf]
  %v53 = vld [vmem:[%s0 + $0x98] sm:$0xf]
  %v54 = vld [vmem:[%s0 + $0x9c] sm:$0xf]
  %v55 = vld [vmem:[%s0 + $0xa0] sm:$0xf]
  %v56 = vld [vmem:[%s0 + $0xa4] sm:$0xf]
  %v57 = vld [vmem:[%s0 + $0xa8] sm:$0xf]
  %v58 = vld [vmem:[%s0 + $0xac] sm:$0xf]
  %v59 = vld [vmem:[%s0 + $0xb0] sm:$0xf]
  %v60 = vld [vmem:[%s0 + $0xb4] sm:$0xf]
  %v61 = vld [vmem:[%s0 + $0xb8] sm:$0xf]
  %v62 = vld [vmem:[%s0 + $0xbc] sm:$0xf]
  %v63 = vld [vmem:[%s0 + $0xc0] sm:$0xf]
  %v64 = vld [vmem:[%s0 + $0xc4] sm:$0xf]
  %v65 = vld [vmem:[%s0 + $0xc8] sm:$0xf]
  %v66 = vld [vmem:[%s0 + $0xcc] sm:$0xf]
  %v67 = vld [vmem:[%s0 + $0xd0] sm:$0xf]
  %v68 = vld [vmem:[%s0 + $0xd4] sm:$0xf]
  %v69 = vld [vmem:[%s0 + $0xd8] sm:$0xf]
  %v70 = vld [vmem:[%s0 + $0xdc] sm:$0xf]
  %v71 = vld [vmem:[%s0 + $0xe0] sm:$0xf]
  %v72 = vld [vmem:[%s0 + $0xe4] sm:$0xf]
  %v73 = vld [vmem:[%s0 + $0xe8] sm:$0xf]
  %v74 = vld [vmem:[%s0 + $0xec] sm:$0xf]
  %v75 = vld [vmem:[%s0 + $0xf0] sm:$0xf]
  %v76 = vld [vmem:[%s0 + $0xf4] sm:$0xf]
  %v77 = vld [vmem:[%s0 + $0xf8] sm:$0xf]
  %v78 = vld [vmem:[%s0 + $0xfc] sm:$0xf]
  %v79 = vunpack.c.l.bf16 %v15
  %v80 = vunpack.c.l.bf16 %v16
  %v81 = vunpack.c.l.bf16 %v17
  %v82 = vunpack.c.l.bf16 %v18
  %v83 = vunpack.c.l.bf16 %v19
  %v84 = vunpack.c.l.bf16 %v20
  %v85 = vunpack.c.l.bf16 %v21
  %v86 = vunpack.c.l.bf16 %v22
  %v87 = vunpack.c.l.bf16 %v23
  %v88 = vunpack.c.l.bf16 %v24
  %v89 = vunpack.c.l.bf16 %v25
  %v90 = vunpack.c.l.bf16 %v26
  %v91 = vunpack.c.l.bf16 %v27
  %v92 = vunpack.c.l.bf16 %v28
  %v93 = vunpack.c.l.bf16 %v29
  %v94 = vunpack.c.l.bf16 %v30
  %v95 = vunpack.c.l.bf16 %v31
  %v96 = vunpack.c.l.bf16 %v32
  %v97 = vunpack.c.l.bf16 %v33
  %v98 = vunpack.c.l.bf16 %v34
  %v99 = vunpack.c.l.bf16 %v35
  %v100 = vunpack.c.l.bf16 %v36
  %v101 = vunpack.c.l.bf16 %v37
  %v102 = vunpack.c.l.bf16 %v38
  %v103 = vunpack.c.l.bf16 %v39
  %v104 = vunpack.c.l.bf16 %v40
  %v105 = vunpack.c.l.bf16 %v41
  %v106 = vunpack.c.l.bf16 %v42
  %v107 = vunpack.c.l.bf16 %v43
  %v108 = vunpack.c.l.bf16 %v44
  %v109 = vunpack.c.l.bf16 %v45
  %v110 = vunpack.c.l.bf16 %v46
  %v111 = vunpack.c.l.bf16 %v47
  %v112 = vunpack.c.l.bf16 %v48
  %v113 = vunpack.c.l.bf16 %v49
  %v114 = vunpack.c.l.bf16 %v50
  %v115 = vunpack.c.l.bf16 %v51
  %v116 = vunpack.c.l.bf16 %v52
  %v117 = vunpack.c.l.bf16 %v53
  %v118 = vunpack.c.l.bf16 %v54
  %v119 = vunpack.c.l.bf16 %v55
  %v120 = vunpack.c.l.bf16 %v56
  %v121 = vunpack.c.l.bf16 %v57
  %v122 = vunpack.c.l.bf16 %v58
  %v123 = vunpack.c.l.bf16 %v59
  %v124 = vunpack.c.l.bf16 %v60
  %v125 = vunpack.c.l.bf16 %v61
  %v126 = vunpack.c.l.bf16 %v62
  %v127 = vunpack.c.l.bf16 %v63
  %v128 = vunpack.c.l.bf16 %v64
  %v129 = vunpack.c.l.bf16 %v65
  %v130 = vunpack.c.l.bf16 %v66
  %v131 = vunpack.c.l.bf16 %v67
  %v132 = vunpack.c.l.bf16 %v68
  %v133 = vunpack.c.l.bf16 %v69
  %v134 = vunpack.c.l.bf16 %v70
  %v135 = vunpack.c.l.bf16 %v71
  %v136 = vunpack.c.l.bf16 %v72
  %v137 = vunpack.c.l.bf16 %v73
  %v138 = vunpack.c.l.bf16 %v74
  %v139 = vunpack.c.l.bf16 %v75
  %v140 = vunpack.c.l.bf16 %v76
  %v141 = vunpack.c.l.bf16 %v77
  %v142 = vunpack.c.l.bf16 %v78
  %v143 = vld [vmem:[%s1] sm:$0xf]
  %v144 = vld [vmem:[%s1 + $0x4] sm:$0xf]
  %v145 = vld [vmem:[%s1 + $0x8] sm:$0xf]
  %v146 = vld [vmem:[%s1 + $0xc] sm:$0xf]
  %v147 = vld [vmem:[%s1 + $0x10] sm:$0xf]
  %v148 = vld [vmem:[%s1 + $0x14] sm:$0xf]
  %v149 = vld [vmem:[%s1 + $0x18] sm:$0xf]
  %v150 = vld [vmem:[%s1 + $0x1c] sm:$0xf]
  %v151 = vld [vmem:[%s1 + $0x20] sm:$0xf]
  %v152 = vld [vmem:[%s1 + $0x24] sm:$0xf]
  %v153 = vld [vmem:[%s1 + $0x28] sm:$0xf]
  %v154 = vld [vmem:[%s1 + $0x2c] sm:$0x3]
  %v155 = vld [vmem:[%s1 + $0x30] sm:$0xf]
  %v156 = vld [vmem:[%s1 + $0x34] sm:$0xf]
  %v157 = vld [vmem:[%s1 + $0x38] sm:$0xf]
  %v158 = vld [vmem:[%s1 + $0x3c] sm:$0xf]
  %v159 = vld [vmem:[%s1 + $0x40] sm:$0xf]
  %v160 = vld [vmem:[%s1 + $0x44] sm:$0xf]
  %v161 = vld [vmem:[%s1 + $0x48] sm:$0xf]
  %v162 = vld [vmem:[%s1 + $0x4c] sm:$0xf]
  %v163 = vld [vmem:[%s2] sm:$0x1]
  %v164 = vld [vmem:[%s2 + $0x1] sm:$0x1]
  %v165 = vld [vmem:[%s2 + $0x2] sm:$0x1]
  %v166 = vld [vmem:[%s2 + $0x3] sm:$0x1]
  %v167 = vld [vmem:[%s2 + $0x4] sm:$0x1]
  %v168 = vld [vmem:[%s2 + $0x5] sm:$0x1]
  %v169 = vlaneseq
  %v170 = vshrl.u32 %v169, 7
  %v171 = vsub.s32 0, %v170
  %v172 = vrot.slane %v163, %v171
  %v237 = vunpack.c.l.b16 %v15
  %v238 = vunpack.c.l.b16 %v16
  %v239 = vunpack.c.l.b16 %v17
  %v240 = vunpack.c.l.b16 %v18
  %v241 = vunpack.c.l.b16 %v19
  %v242 = vunpack.c.l.b16 %v20
  %v243 = vunpack.c.l.b16 %v21
  %v244 = vunpack.c.l.b16 %v22
  %v245 = vunpack.c.l.b16 %v23
  %v246 = vunpack.c.l.b16 %v24
  %v247 = vunpack.c.l.b16 %v25
  %v248 = vunpack.c.l.b16 %v26
  %v249 = vunpack.c.l.b16 %v27
  %v250 = vunpack.c.l.b16 %v28
  %v251 = vunpack.c.l.b16 %v29
  %v252 = vunpack.c.l.b16 %v30
  %v253 = vunpack.c.l.b16 %v31
  %v254 = vunpack.c.l.b16 %v32
  %v255 = vunpack.c.l.b16 %v33
  %v256 = vunpack.c.l.b16 %v34
  %v257 = vunpack.c.l.b16 %v35
  %v258 = vunpack.c.l.b16 %v36
  %v259 = vunpack.c.l.b16 %v37
  %v260 = vunpack.c.l.b16 %v38
  %v261 = vunpack.c.l.b16 %v39
  %v262 = vunpack.c.l.b16 %v40
  %v263 = vunpack.c.l.b16 %v41
  %v264 = vunpack.c.l.b16 %v42
  %v265 = vunpack.c.l.b16 %v43
  %v266 = vunpack.c.l.b16 %v44
  %v267 = vunpack.c.l.b16 %v45
  %v268 = vunpack.c.l.b16 %v46
  %v269 = vunpack.c.l.b16 %v47
  %v270 = vunpack.c.l.b16 %v48
  %v271 = vunpack.c.l.b16 %v49
  %v272 = vunpack.c.l.b16 %v50
  %v273 = vunpack.c.l.b16 %v51
  %v274 = vunpack.c.l.b16 %v52
  %v275 = vunpack.c.l.b16 %v53
  %v276 = vunpack.c.l.b16 %v54
  %v277 = vunpack.c.l.b16 %v55
  %v278 = vunpack.c.l.b16 %v56
  %v279 = vunpack.c.l.b16 %v57
  %v280 = vunpack.c.l.b16 %v58
  %v281 = vunpack.c.l.b16 %v59
  %v282 = vunpack.c.l.b16 %v60
  %v283 = vunpack.c.l.b16 %v61
  %v284 = vunpack.c.l.b16 %v62
  %v285 = vunpack.c.l.b16 %v63
  %v286 = vunpack.c.l.b16 %v64
  %v287 = vunpack.c.l.b16 %v65
  %v288 = vunpack.c.l.b16 %v66
  %v289 = vunpack.c.l.b16 %v67
  %v290 = vunpack.c.l.b16 %v68
  %v291 = vunpack.c.l.b16 %v69
  %v292 = vunpack.c.l.b16 %v70
  %v293 = vunpack.c.l.b16 %v71
  %v294 = vunpack.c.l.b16 %v72
  %v295 = vunpack.c.l.b16 %v73
  %v296 = vunpack.c.l.b16 %v74
  %v297 = vunpack.c.l.b16 %v75
  %v298 = vunpack.c.l.b16 %v76
  %v299 = vunpack.c.l.b16 %v77
  %v300 = vunpack.c.l.b16 %v78
  %v301 = vpack.c.b16 %v238, %v237
  %v302 = vpack.c.b16 %v240, %v239
  %v303 = vpack.c.b16 %v242, %v241
  %v304 = vpack.c.b16 %v244, %v243
  %v305 = vpack.c.b16 %v246, %v245
  %v306 = vpack.c.b16 %v248, %v247
  %v307 = vpack.c.b16 %v250, %v249
  %v308 = vpack.c.b16 %v252, %v251
  %v309 = vpack.c.b16 %v254, %v253
  %v310 = vpack.c.b16 %v256, %v255
  %v311 = vpack.c.b16 %v258, %v257
  %v312 = vpack.c.b16 %v260, %v259
  %v313 = vpack.c.b16 %v262, %v261
  %v314 = vpack.c.b16 %v264, %v263
  %v315 = vpack.c.b16 %v266, %v265
  %v316 = vpack.c.b16 %v268, %v267
  %v317 = vpack.c.b16 %v270, %v269
  %v318 = vpack.c.b16 %v272, %v271
  %v319 = vpack.c.b16 %v274, %v273
  %v320 = vpack.c.b16 %v276, %v275
  %v321 = vpack.c.b16 %v278, %v277
  %v322 = vpack.c.b16 %v280, %v279
  %v323 = vpack.c.b16 %v282, %v281
  %v324 = vpack.c.b16 %v284, %v283
  %v325 = vpack.c.b16 %v286, %v285
  %v326 = vpack.c.b16 %v288, %v287
  %v327 = vpack.c.b16 %v290, %v289
  %v328 = vpack.c.b16 %v292, %v291
  %v329 = vpack.c.b16 %v294, %v293
  %v330 = vpack.c.b16 %v296, %v295
  %v331 = vpack.c.b16 %v298, %v297
  %v332 = vpack.c.b16 %v300, %v299
  %v335 = vunpack.c.l.b16 %v143
  %v336 = vunpack.c.l.b16 %v144
  %v337 = vpack.c.b16 %v336, %v335
  %vm339 = vcmask 130048
  %v341 = vsel %vm339, %v301, 0
  %v344 = vsel %vm339, %v302, 0
  %v347 = vsel %vm339, %v303, 0
  %v350 = vsel %vm339, %v304, 0
  %v353 = vsel %vm339, %v305, 0
  %v356 = vsel %vm339, %v306, 0
  %v359 = vsel %vm339, %v307, 0
  %v362 = vsel %vm339, %v308, 0
  %v365 = vsel %vm339, %v309, 0
  %v368 = vsel %vm339, %v310, 0
  %v371 = vsel %vm339, %v311, 0
  %v374 = vsel %vm339, %v312, 0
  %v377 = vsel %vm339, %v313, 0
  %v380 = vsel %vm339, %v314, 0
  %v383 = vsel %vm339, %v315, 0
  %v386 = vsel %vm339, %v316, 0
  %v389 = vsel %vm339, %v317, 0
  %v392 = vsel %vm339, %v318, 0
  %v395 = vsel %vm339, %v319, 0
  %v398 = vsel %vm339, %v320, 0
  %v401 = vsel %vm339, %v321, 0
  %v404 = vsel %vm339, %v322, 0
  %v407 = vsel %vm339, %v323, 0
  %v410 = vsel %vm339, %v324, 0
  %v413 = vsel %vm339, %v325, 0
  %v416 = vsel %vm339, %v326, 0
  %v419 = vsel %vm339, %v327, 0
  %v422 = vsel %vm339, %v328, 0
  %v425 = vsel %vm339, %v329, 0
  %v428 = vsel %vm339, %v330, 0
  %v431 = vsel %vm339, %v331, 0
  %v434 = vsel %vm339, %v332, 0
  %436 = vmatprep.subr.bf16.mxu0 0
  %437 = vmatpush1.bf16.msra.mxu0 0
  %438 = vmatprep.subr.bf16.mxu0 0
  %439 = vmatpush1.bf16.msra.mxu0 0
  %440 = vmatprep.subr.bf16.mxu0 0
  %441 = vmatpush1.bf16.msra.mxu0 0
  %442 = vmatprep.subr.bf16.mxu0 0
  %443 = vmatpush1.bf16.msra.mxu0 0
  %444 = vmatprep.subr.bf16.mxu0 0
  %445 = vmatpush1.bf16.msra.mxu0 0
  %446 = vmatprep.subr.bf16.mxu0 0
  %447 = vmatpush1.bf16.msra.mxu0 0
  %448 = vmatprep.subr.bf16.mxu0 0
  %449 = vmatpush1.bf16.msra.mxu0 0
  %450 = vmatprep.subr.bf16.mxu0 0
  %451 = vmatpush1.bf16.msra.mxu0 %v337
  %452 = vmatprep.subr.bf16.mxu0 0
  %453 = vmatpush2.bf16.msra.mxu0 0
  %454 = vmatprep.subr.bf16.mxu0 0
  %455 = vmatpush2.bf16.msra.mxu0 0
  %456 = vmatprep.subr.bf16.mxu0 0
  %457 = vmatpush2.bf16.msra.mxu0 0
  %458 = vmatprep.subr.bf16.mxu0 0
  %459 = vmatpush2.bf16.msra.mxu0 0
  %460 = vmatprep.subr.bf16.mxu0 0
  %461 = vmatpush2.bf16.msra.mxu0 0
  %462 = vmatprep.subr.bf16.mxu0 0
  %463 = vmatpush2.bf16.msra.mxu0 0
  %464 = vmatprep.subr.bf16.mxu0 0
  %465 = vmatpush2.bf16.msra.mxu0 0
  %466 = vmatprep.subr.bf16.mxu0 0
  %467 = vmatpush2.bf16.msra.mxu0 0
  %468 = vmatprep.mubr.bf16.mxu0 0
  %469 = vmatmul.mubr.bf16.gmra.mxu0 %v341
  %v470 = vpop.f32.mrf.mxu0
  %v471 = vadd.f32 %v172, %v470
  %v472 = vpop.f32.mrf.mxu0
  %v473 = vpop.f32.mrf.mxu0
  %v474 = vadd.f32 %v172, %v473
  %v475 = vpop.f32.mrf.mxu0
  %476 = vmatprep.mubr.bf16.mxu0 0
  %477 = vmatmul.mubr.bf16.gmra.mxu0 %v344
  %v478 = vpop.f32.mrf.mxu0
  %v479 = vadd.f32 %v172, %v478
  %v480 = vpop.f32.mrf.mxu0
  %v481 = vpop.f32.mrf.mxu0
  %v482 = vadd.f32 %v172, %v481
  %v483 = vpop.f32.mrf.mxu0
  %484 = vmatprep.mubr.bf16.mxu0 0
  %485 = vmatmul.mubr.bf16.gmra.mxu0 %v347
  %v486 = vpop.f32.mrf.mxu0
  %v487 = vadd.f32 %v172, %v486
  %v488 = vpop.f32.mrf.mxu0
  %v489 = vpop.f32.mrf.mxu0
  %v490 = vadd.f32 %v172, %v489
  %v491 = vpop.f32.mrf.mxu0
  %492 = vmatprep.mubr.bf16.mxu0 0
  %493 = vmatmul.mubr.bf16.gmra.mxu0 %v350
  %v494 = vpop.f32.mrf.mxu0
  %v495 = vadd.f32 %v172, %v494
  %v496 = vpop.f32.mrf.mxu0
  %v497 = vpop.f32.mrf.mxu0
  %v498 = vadd.f32 %v172, %v497
  %v499 = vpop.f32.mrf.mxu0
  %500 = vmatprep.mubr.bf16.mxu0 0
  %501 = vmatmul.mubr.bf16.gmra.mxu0 %v353
  %v502 = vpop.f32.mrf.mxu0
  %v503 = vadd.f32 %v172, %v502
  %v504 = vpop.f32.mrf.mxu0
  %v505 = vpop.f32.mrf.mxu0
  %v506 = vadd.f32 %v172, %v505
  %v507 = vpop.f32.mrf.mxu0
  %508 = vmatprep.mubr.bf16.mxu0 0
  %509 = vmatmul.mubr.bf16.gmra.mxu0 %v356
  %v510 = vpop.f32.mrf.mxu0
  %v511 = vadd.f32 %v172, %v510
  %v512 = vpop.f32.mrf.mxu0
  %v513 = vpop.f32.mrf.mxu0
  %v514 = vadd.f32 %v172, %v513
  %v515 = vpop.f32.mrf.mxu0
  %516 = vmatprep.mubr.bf16.mxu0 0
  %517 = vmatmul.mubr.bf16.gmra.mxu0 %v359
  %v518 = vpop.f32.mrf.mxu0
  %v519 = vadd.f32 %v172, %v518
  %v520 = vpop.f32.mrf.mxu0
  %v521 = vpop.f32.mrf.mxu0
  %v522 = vadd.f32 %v172, %v521
  %v523 = vpop.f32.mrf.mxu0
  %524 = vmatprep.mubr.bf16.mxu0 0
  %525 = vmatmul.mubr.bf16.gmra.mxu0 %v362
  %v526 = vpop.f32.mrf.mxu0
  %v527 = vadd.f32 %v172, %v526
  %v528 = vpop.f32.mrf.mxu0
  %v529 = vpop.f32.mrf.mxu0
  %v530 = vadd.f32 %v172, %v529
  %v531 = vpop.f32.mrf.mxu0
  %532 = vmatprep.mubr.bf16.mxu0 0
  %533 = vmatmul.mubr.bf16.gmra.mxu0 %v365
  %v534 = vpop.f32.mrf.mxu0
  %v535 = vadd.f32 %v172, %v534
  %v536 = vpop.f32.mrf.mxu0
  %v537 = vpop.f32.mrf.mxu0
  %v538 = vadd.f32 %v172, %v537
  %v539 = vpop.f32.mrf.mxu0
  %540 = vmatprep.mubr.bf16.mxu0 0
  %541 = vmatmul.mubr.bf16.gmra.mxu0 %v368
  %v542 = vpop.f32.mrf.mxu0
  %v543 = vadd.f32 %v172, %v542
  %v544 = vpop.f32.mrf.mxu0
  %v545 = vpop.f32.mrf.mxu0
  %v546 = vadd.f32 %v172, %v545
  %v547 = vpop.f32.mrf.mxu0
  %548 = vmatprep.mubr.bf16.mxu0 0
  %549 = vmatmul.mubr.bf16.gmra.mxu0 %v371
  %v550 = vpop.f32.mrf.mxu0
  %v551 = vadd.f32 %v172, %v550
  %v552 = vpop.f32.mrf.mxu0
  %v553 = vpop.f32.mrf.mxu0
  %v554 = vadd.f32 %v172, %v553
  %v555 = vpop.f32.mrf.mxu0
  %556 = vmatprep.mubr.bf16.mxu0 0
  %557 = vmatmul.mubr.bf16.gmra.mxu0 %v374
  %v558 = vpop.f32.mrf.mxu0
  %v559 = vadd.f32 %v172, %v558
  %v560 = vpop.f32.mrf.mxu0
  %v561 = vpop.f32.mrf.mxu0
  %v562 = vadd.f32 %v172, %v561
  %v563 = vpop.f32.mrf.mxu0
  %564 = vmatprep.mubr.bf16.mxu0 0
  %565 = vmatmul.mubr.bf16.gmra.mxu0 %v377
  %v566 = vpop.f32.mrf.mxu0
  %v567 = vadd.f32 %v172, %v566
  %v568 = vpop.f32.mrf.mxu0
  %v569 = vpop.f32.mrf.mxu0
  %v570 = vadd.f32 %v172, %v569
  %v571 = vpop.f32.mrf.mxu0
  %572 = vmatprep.mubr.bf16.mxu0 0
  %573 = vmatmul.mubr.bf16.gmra.mxu0 %v380
  %v574 = vpop.f32.mrf.mxu0
  %v575 = vadd.f32 %v172, %v574
  %v576 = vpop.f32.mrf.mxu0
  %v577 = vpop.f32.mrf.mxu0
  %v578 = vadd.f32 %v172, %v577
  %v579 = vpop.f32.mrf.mxu0
  %580 = vmatprep.mubr.bf16.mxu0 0
  %581 = vmatmul.mubr.bf16.gmra.mxu0 %v383
  %v582 = vpop.f32.mrf.mxu0
  %v583 = vadd.f32 %v172, %v582
  %v584 = vpop.f32.mrf.mxu0
  %v585 = vpop.f32.mrf.mxu0
  %v586 = vadd.f32 %v172, %v585
  %v587 = vpop.f32.mrf.mxu0
  %588 = vmatprep.mubr.bf16.mxu0 0
  %589 = vmatmul.mubr.bf16.gmra.mxu0 %v386
  %v590 = vpop.f32.mrf.mxu0
  %v591 = vadd.f32 %v172, %v590
  %v592 = vpop.f32.mrf.mxu0
  %v593 = vpop.f32.mrf.mxu0
  %v594 = vadd.f32 %v172, %v593
  %v595 = vpop.f32.mrf.mxu0
  %596 = vmatprep.mubr.bf16.mxu0 0
  %597 = vmatmul.mubr.bf16.gmra.mxu0 %v389
  %v598 = vpop.f32.mrf.mxu0
  %v599 = vadd.f32 %v172, %v598
  %v600 = vpop.f32.mrf.mxu0
  %v601 = vpop.f32.mrf.mxu0
  %v602 = vadd.f32 %v172, %v601
  %v603 = vpop.f32.mrf.mxu0
  %604 = vmatprep.mubr.bf16.mxu0 0
  %605 = vmatmul.mubr.bf16.gmra.mxu0 %v392
  %v606 = vpop.f32.mrf.mxu0
  %v607 = vadd.f32 %v172, %v606
  %v608 = vpop.f32.mrf.mxu0
  %v609 = vpop.f32.mrf.mxu0
  %v610 = vadd.f32 %v172, %v609
  %v611 = vpop.f32.mrf.mxu0
  %612 = vmatprep.mubr.bf16.mxu0 0
  %613 = vmatmul.mubr.bf16.gmra.mxu0 %v395
  %v614 = vpop.f32.mrf.mxu0
  %v615 = vadd.f32 %v172, %v614
  %v616 = vpop.f32.mrf.mxu0
  %v617 = vpop.f32.mrf.mxu0
  %v618 = vadd.f32 %v172, %v617
  %v619 = vpop.f32.mrf.mxu0
  %620 = vmatprep.mubr.bf16.mxu0 0
  %621 = vmatmul.mubr.bf16.gmra.mxu0 %v398
  %v622 = vpop.f32.mrf.mxu0
  %v623 = vadd.f32 %v172, %v622
  %v624 = vpop.f32.mrf.mxu0
  %v625 = vpop.f32.mrf.mxu0
  %v626 = vadd.f32 %v172, %v625
  %v627 = vpop.f32.mrf.mxu0
  %628 = vmatprep.mubr.bf16.mxu0 0
  %629 = vmatmul.mubr.bf16.gmra.mxu0 %v401
  %v630 = vpop.f32.mrf.mxu0
  %v631 = vadd.f32 %v172, %v630
  %v632 = vpop.f32.mrf.mxu0
  %v633 = vpop.f32.mrf.mxu0
  %v634 = vadd.f32 %v172, %v633
  %v635 = vpop.f32.mrf.mxu0
  %636 = vmatprep.mubr.bf16.mxu0 0
  %637 = vmatmul.mubr.bf16.gmra.mxu0 %v404
  %v638 = vpop.f32.mrf.mxu0
  %v639 = vadd.f32 %v172, %v638
  %v640 = vpop.f32.mrf.mxu0
  %v641 = vpop.f32.mrf.mxu0
  %v642 = vadd.f32 %v172, %v641
  %v643 = vpop.f32.mrf.mxu0
  %644 = vmatprep.mubr.bf16.mxu0 0
  %645 = vmatmul.mubr.bf16.gmra.mxu0 %v407
  %v646 = vpop.f32.mrf.mxu0
  %v647 = vadd.f32 %v172, %v646
  %v648 = vpop.f32.mrf.mxu0
  %v649 = vpop.f32.mrf.mxu0
  %v650 = vadd.f32 %v172, %v649
  %v651 = vpop.f32.mrf.mxu0
  %652 = vmatprep.mubr.bf16.mxu0 0
  %653 = vmatmul.mubr.bf16.gmra.mxu0 %v410
  %v654 = vpop.f32.mrf.mxu0
  %v655 = vadd.f32 %v172, %v654
  %v656 = vpop.f32.mrf.mxu0
  %v657 = vpop.f32.mrf.mxu0
  %v658 = vadd.f32 %v172, %v657
  %v659 = vpop.f32.mrf.mxu0
  %660 = vmatprep.mubr.bf16.mxu0 0
  %661 = vmatmul.mubr.bf16.gmra.mxu0 %v413
  %v662 = vpop.f32.mrf.mxu0
  %v663 = vadd.f32 %v172, %v662
  %v664 = vpop.f32.mrf.mxu0
  %v665 = vpop.f32.mrf.mxu0
  %v666 = vadd.f32 %v172, %v665
  %v667 = vpop.f32.mrf.mxu0
  %668 = vmatprep.mubr.bf16.mxu0 0
  %669 = vmatmul.mubr.bf16.gmra.mxu0 %v416
  %v670 = vpop.f32.mrf.mxu0
  %v671 = vadd.f32 %v172, %v670
  %v672 = vpop.f32.mrf.mxu0
  %v673 = vpop.f32.mrf.mxu0
  %v674 = vadd.f32 %v172, %v673
  %v675 = vpop.f32.mrf.mxu0
  %676 = vmatprep.mubr.bf16.mxu0 0
  %677 = vmatmul.mubr.bf16.gmra.mxu0 %v419
  %v678 = vpop.f32.mrf.mxu0
  %v679 = vadd.f32 %v172, %v678
  %v680 = vpop.f32.mrf.mxu0
  %v681 = vpop.f32.mrf.mxu0
  %v682 = vadd.f32 %v172, %v681
  %v683 = vpop.f32.mrf.mxu0
  %684 = vmatprep.mubr.bf16.mxu0 0
  %685 = vmatmul.mubr.bf16.gmra.mxu0 %v422
  %v686 = vpop.f32.mrf.mxu0
  %v687 = vadd.f32 %v172, %v686
  %v688 = vpop.f32.mrf.mxu0
  %v689 = vpop.f32.mrf.mxu0
  %v690 = vadd.f32 %v172, %v689
  %v691 = vpop.f32.mrf.mxu0
  %692 = vmatprep.mubr.bf16.mxu0 0
  %693 = vmatmul.mubr.bf16.gmra.mxu0 %v425
  %v694 = vpop.f32.mrf.mxu0
  %v695 = vadd.f32 %v172, %v694
  %v696 = vpop.f32.mrf.mxu0
  %v697 = vpop.f32.mrf.mxu0
  %v698 = vadd.f32 %v172, %v697
  %v699 = vpop.f32.mrf.mxu0
  %700 = vmatprep.mubr.bf16.mxu0 0
  %701 = vmatmul.mubr.bf16.gmra.mxu0 %v428
  %v702 = vpop.f32.mrf.mxu0
  %v703 = vadd.f32 %v172, %v702
  %v704 = vpop.f32.mrf.mxu0
  %v705 = vpop.f32.mrf.mxu0
  %v706 = vadd.f32 %v172, %v705
  %v707 = vpop.f32.mrf.mxu0
  %708 = vmatprep.mubr.bf16.mxu0 0
  %709 = vmatmul.mubr.bf16.gmra.mxu0 %v431
  %v710 = vpop.f32.mrf.mxu0
  %v711 = vadd.f32 %v172, %v710
  %v712 = vpop.f32.mrf.mxu0
  %v713 = vpop.f32.mrf.mxu0
  %v714 = vadd.f32 %v172, %v713
  %v715 = vpop.f32.mrf.mxu0
  %716 = vmatprep.mubr.bf16.mxu0 0
  %717 = vmatmul.mubr.bf16.gmra.mxu0 %v434
  %v718 = vpop.f32.mrf.mxu0
  %v719 = vadd.f32 %v172, %v718
  %v720 = vpop.f32.mrf.mxu0
  %v721 = vpop.f32.mrf.mxu0
  %v722 = vadd.f32 %v172, %v721
  %v723 = vpop.f32.mrf.mxu0
  %724 = vdwg.mxu0
  %v725 = vmax.f32 %v471, 0.0
  %v726 = vmax.f32 %v474, 0.0
  %v727 = vmax.f32 %v479, 0.0
  %v728 = vmax.f32 %v482, 0.0
  %v729 = vmax.f32 %v487, 0.0
  %v730 = vmax.f32 %v490, 0.0
  %v731 = vmax.f32 %v495, 0.0
  %v732 = vmax.f32 %v498, 0.0
  %v733 = vmax.f32 %v503, 0.0
  %v734 = vmax.f32 %v506, 0.0
  %v735 = vmax.f32 %v511, 0.0
  %v736 = vmax.f32 %v514, 0.0
  %v737 = vmax.f32 %v519, 0.0
  %v738 = vmax.f32 %v522, 0.0
  %v739 = vmax.f32 %v527, 0.0
  %v740 = vmax.f32 %v530, 0.0
  %v741 = vmax.f32 %v535, 0.0
  %v742 = vmax.f32 %v538, 0.0
  %v743 = vmax.f32 %v543, 0.0
  %v744 = vmax.f32 %v546, 0.0
  %v745 = vmax.f32 %v551, 0.0
  %v746 = vmax.f32 %v554, 0.0
  %v747 = vmax.f32 %v559, 0.0
  %v748 = vmax.f32 %v562, 0.0
  %v749 = vmax.f32 %v567, 0.0
  %v750 = vmax.f32 %v570, 0.0
  %v751 = vmax.f32 %v575, 0.0
  %v752 = vmax.f32 %v578, 0.0
  %v753 = vmax.f32 %v583, 0.0
  %v754 = vmax.f32 %v586, 0.0
  %v755 = vmax.f32 %v591, 0.0
  %v756 = vmax.f32 %v594, 0.0
  %v757 = vmax.f32 %v599, 0.0
  %v758 = vmax.f32 %v602, 0.0
  %v759 = vmax.f32 %v607, 0.0
  %v760 = vmax.f32 %v610, 0.0
  %v761 = vmax.f32 %v615, 0.0
  %v762 = vmax.f32 %v618, 0.0
  %v763 = vmax.f32 %v623, 0.0
  %v764 = vmax.f32 %v626, 0.0
  %v765 = vmax.f32 %v631, 0.0
  %v766 = vmax.f32 %v634, 0.0
  %v767 = vmax.f32 %v639, 0.0
  %v768 = vmax.f32 %v642, 0.0
  %v769 = vmax.f32 %v647, 0.0
  %v770 = vmax.f32 %v650, 0.0
  %v771 = vmax.f32 %v655, 0.0
  %v772 = vmax.f32 %v658, 0.0
  %v773 = vmax.f32 %v663, 0.0
  %v774 = vmax.f32 %v666, 0.0
  %v775 = vmax.f32 %v671, 0.0
  %v776 = vmax.f32 %v674, 0.0
  %v777 = vmax.f32 %v679, 0.0
  %v778 = vmax.f32 %v682, 0.0
  %v779 = vmax.f32 %v687, 0.0
  %v780 = vmax.f32 %v690, 0.0
  %v781 = vmax.f32 %v695, 0.0
  %v782 = vmax.f32 %v698, 0.0
  %v783 = vmax.f32 %v703, 0.0
  %v784 = vmax.f32 %v706, 0.0
  %v785 = vmax.f32 %v711, 0.0
  %v786 = vmax.f32 %v714, 0.0
  %v787 = vmax.f32 %v719, 0.0
  %v788 = vmax.f32 %v722, 0.0
  %v789 = vpack.c.bf16 %v726, %v725
  %v790 = vpack.c.bf16 %v728, %v727
  %v791 = vpack.c.bf16 %v730, %v729
  %v792 = vpack.c.bf16 %v732, %v731
  %v793 = vpack.c.bf16 %v734, %v733
  %v794 = vpack.c.bf16 %v736, %v735
  %v795 = vpack.c.bf16 %v738, %v737
  %v796 = vpack.c.bf16 %v740, %v739
  %v797 = vpack.c.bf16 %v742, %v741
  %v798 = vpack.c.bf16 %v744, %v743
  %v799 = vpack.c.bf16 %v746, %v745
  %v800 = vpack.c.bf16 %v748, %v747
  %v801 = vpack.c.bf16 %v750, %v749
  %v802 = vpack.c.bf16 %v752, %v751
  %v803 = vpack.c.bf16 %v754, %v753
  %v804 = vpack.c.bf16 %v756, %v755
  %v805 = vpack.c.bf16 %v758, %v757
  %v806 = vpack.c.bf16 %v760, %v759
  %v807 = vpack.c.bf16 %v762, %v761
  %v808 = vpack.c.bf16 %v764, %v763
  %v809 = vpack.c.bf16 %v766, %v765
  %v810 = vpack.c.bf16 %v768, %v767
  %v811 = vpack.c.bf16 %v770, %v769
  %v812 = vpack.c.bf16 %v772, %v771
  %v813 = vpack.c.bf16 %v774, %v773
  %v814 = vpack.c.bf16 %v776, %v775
  %v815 = vpack.c.bf16 %v778, %v777
  %v816 = vpack.c.bf16 %v780, %v779
  %v817 = vpack.c.bf16 %v782, %v781
  %v818 = vpack.c.bf16 %v784, %v783
  %v819 = vpack.c.bf16 %v786, %v785
  %v820 = vpack.c.bf16 %v788, %v787
  %v821 = vlaneseq
  %v822 = vshrl.u32 %v821, 7
  %v823 = vsub.s32 0, %v822
  %v824 = vrot.slane %v164, %v823
  %v829 = vunpack.c.l.b16 %v145
  %v830 = vunpack.c.l.b16 %v146
  %v831 = vunpack.c.l.b16 %v147
  %v832 = vunpack.c.l.b16 %v148
  %v833 = vpack.c.b16 %v830, %v829
  %v834 = vpack.c.b16 %v832, %v831
  %vm837 = vcmask 261120
  %v839 = vsel %vm837, %v789, 0
  %v842 = vsel %vm837, %v790, 0
  %v845 = vsel %vm837, %v791, 0
  %v848 = vsel %vm837, %v792, 0
  %v851 = vsel %vm837, %v793, 0
  %v854 = vsel %vm837, %v794, 0
  %v857 = vsel %vm837, %v795, 0
  %v860 = vsel %vm837, %v796, 0
  %v863 = vsel %vm837, %v797, 0
  %v866 = vsel %vm837, %v798, 0
  %v869 = vsel %vm837, %v799, 0
  %v872 = vsel %vm837, %v800, 0
  %v875 = vsel %vm837, %v801, 0
  %v878 = vsel %vm837, %v802, 0
  %v881 = vsel %vm837, %v803, 0
  %v884 = vsel %vm837, %v804, 0
  %v887 = vsel %vm837, %v805, 0
  %v890 = vsel %vm837, %v806, 0
  %v893 = vsel %vm837, %v807, 0
  %v896 = vsel %vm837, %v808, 0
  %v899 = vsel %vm837, %v809, 0
  %v902 = vsel %vm837, %v810, 0
  %v905 = vsel %vm837, %v811, 0
  %v908 = vsel %vm837, %v812, 0
  %v911 = vsel %vm837, %v813, 0
  %v914 = vsel %vm837, %v814, 0
  %v917 = vsel %vm837, %v815, 0
  %v920 = vsel %vm837, %v816, 0
  %v923 = vsel %vm837, %v817, 0
  %v926 = vsel %vm837, %v818, 0
  %v929 = vsel %vm837, %v819, 0
  %v932 = vsel %vm837, %v820, 0
  %934 = vmatprep.subr.bf16.mxu0 0
  %935 = vmatpush1.bf16.msra.mxu0 0
  %936 = vmatprep.subr.bf16.mxu0 0
  %937 = vmatpush1.bf16.msra.mxu0 0
  %938 = vmatprep.subr.bf16.mxu0 0
  %939 = vmatpush1.bf16.msra.mxu0 0
  %940 = vmatprep.subr.bf16.mxu0 0
  %941 = vmatpush1.bf16.msra.mxu0 0
  %942 = vmatprep.subr.bf16.mxu0 0
  %943 = vmatpush1.bf16.msra.mxu0 0
  %944 = vmatprep.subr.bf16.mxu0 0
  %945 = vmatpush1.bf16.msra.mxu0 0
  %946 = vmatprep.subr.bf16.mxu0 0
  %947 = vmatpush1.bf16.msra.mxu0 %v834
  %948 = vmatprep.subr.bf16.mxu0 0
  %949 = vmatpush1.bf16.msra.mxu0 %v833
  %950 = vmatprep.subr.bf16.mxu0 0
  %951 = vmatpush2.bf16.msra.mxu0 0
  %952 = vmatprep.subr.bf16.mxu0 0
  %953 = vmatpush2.bf16.msra.mxu0 0
  %954 = vmatprep.subr.bf16.mxu0 0
  %955 = vmatpush2.bf16.msra.mxu0 0
  %956 = vmatprep.subr.bf16.mxu0 0
  %957 = vmatpush2.bf16.msra.mxu0 0
  %958 = vmatprep.subr.bf16.mxu0 0
  %959 = vmatpush2.bf16.msra.mxu0 0
  %960 = vmatprep.subr.bf16.mxu0 0
  %961 = vmatpush2.bf16.msra.mxu0 0
  %962 = vmatprep.subr.bf16.mxu0 0
  %963 = vmatpush2.bf16.msra.mxu0 0
  %964 = vmatprep.subr.bf16.mxu0 0
  %965 = vmatpush2.bf16.msra.mxu0 0
  %966 = vmatprep.mubr.bf16.mxu0 0
  %967 = vmatmul.mubr.bf16.gmra.mxu0 %v839
  %v968 = vpop.f32.mrf.mxu0
  %v969 = vadd.f32 %v824, %v968
  %v970 = vpop.f32.mrf.mxu0
  %v971 = vpop.f32.mrf.mxu0
  %v972 = vadd.f32 %v824, %v971
  %v973 = vpop.f32.mrf.mxu0
  %974 = vmatprep.mubr.bf16.mxu0 0
  %975 = vmatmul.mubr.bf16.gmra.mxu0 %v842
  %v976 = vpop.f32.mrf.mxu0
  %v977 = vadd.f32 %v824, %v976
  %v978 = vpop.f32.mrf.mxu0
  %v979 = vpop.f32.mrf.mxu0
  %v980 = vadd.f32 %v824, %v979
  %v981 = vpop.f32.mrf.mxu0
  %982 = vmatprep.mubr.bf16.mxu0 0
  %983 = vmatmul.mubr.bf16.gmra.mxu0 %v845
  %v984 = vpop.f32.mrf.mxu0
  %v985 = vadd.f32 %v824, %v984
  %v986 = vpop.f32.mrf.mxu0
  %v987 = vpop.f32.mrf.mxu0
  %v988 = vadd.f32 %v824, %v987
  %v989 = vpop.f32.mrf.mxu0
  %990 = vmatprep.mubr.bf16.mxu0 0
  %991 = vmatmul.mubr.bf16.gmra.mxu0 %v848
  %v992 = vpop.f32.mrf.mxu0
  %v993 = vadd.f32 %v824, %v992
  %v994 = vpop.f32.mrf.mxu0
  %v995 = vpop.f32.mrf.mxu0
  %v996 = vadd.f32 %v824, %v995
  %v997 = vpop.f32.mrf.mxu0
  %998 = vmatprep.mubr.bf16.mxu0 0
  %999 = vmatmul.mubr.bf16.gmra.mxu0 %v851
  %v1000 = vpop.f32.mrf.mxu0
  %v1001 = vadd.f32 %v824, %v1000
  %v1002 = vpop.f32.mrf.mxu0
  %v1003 = vpop.f32.mrf.mxu0
  %v1004 = vadd.f32 %v824, %v1003
  %v1005 = vpop.f32.mrf.mxu0
  %1006 = vmatprep.mubr.bf16.mxu0 0
  %1007 = vmatmul.mubr.bf16.gmra.mxu0 %v854
  %v1008 = vpop.f32.mrf.mxu0
  %v1009 = vadd.f32 %v824, %v1008
  %v1010 = vpop.f32.mrf.mxu0
  %v1011 = vpop.f32.mrf.mxu0
  %v1012 = vadd.f32 %v824, %v1011
  %v1013 = vpop.f32.mrf.mxu0
  %1014 = vmatprep.mubr.bf16.mxu0 0
  %1015 = vmatmul.mubr.bf16.gmra.mxu0 %v857
  %v1016 = vpop.f32.mrf.mxu0
  %v1017 = vadd.f32 %v824, %v1016
  %v1018 = vpop.f32.mrf.mxu0
  %v1019 = vpop.f32.mrf.mxu0
  %v1020 = vadd.f32 %v824, %v1019
  %v1021 = vpop.f32.mrf.mxu0
  %1022 = vmatprep.mubr.bf16.mxu0 0
  %1023 = vmatmul.mubr.bf16.gmra.mxu0 %v860
  %v1024 = vpop.f32.mrf.mxu0
  %v1025 = vadd.f32 %v824, %v1024
  %v1026 = vpop.f32.mrf.mxu0
  %v1027 = vpop.f32.mrf.mxu0
  %v1028 = vadd.f32 %v824, %v1027
  %v1029 = vpop.f32.mrf.mxu0
  %1030 = vmatprep.mubr.bf16.mxu0 0
  %1031 = vmatmul.mubr.bf16.gmra.mxu0 %v863
  %v1032 = vpop.f32.mrf.mxu0
  %v1033 = vadd.f32 %v824, %v1032
  %v1034 = vpop.f32.mrf.mxu0
  %v1035 = vpop.f32.mrf.mxu0
  %v1036 = vadd.f32 %v824, %v1035
  %v1037 = vpop.f32.mrf.mxu0
  %1038 = vmatprep.mubr.bf16.mxu0 0
  %1039 = vmatmul.mubr.bf16.gmra.mxu0 %v866
  %v1040 = vpop.f32.mrf.mxu0
  %v1041 = vadd.f32 %v824, %v1040
  %v1042 = vpop.f32.mrf.mxu0
  %v1043 = vpop.f32.mrf.mxu0
  %v1044 = vadd.f32 %v824, %v1043
  %v1045 = vpop.f32.mrf.mxu0
  %1046 = vmatprep.mubr.bf16.mxu0 0
  %1047 = vmatmul.mubr.bf16.gmra.mxu0 %v869
  %v1048 = vpop.f32.mrf.mxu0
  %v1049 = vadd.f32 %v824, %v1048
  %v1050 = vpop.f32.mrf.mxu0
  %v1051 = vpop.f32.mrf.mxu0
  %v1052 = vadd.f32 %v824, %v1051
  %v1053 = vpop.f32.mrf.mxu0
  %1054 = vmatprep.mubr.bf16.mxu0 0
  %1055 = vmatmul.mubr.bf16.gmra.mxu0 %v872
  %v1056 = vpop.f32.mrf.mxu0
  %v1057 = vadd.f32 %v824, %v1056
  %v1058 = vpop.f32.mrf.mxu0
  %v1059 = vpop.f32.mrf.mxu0
  %v1060 = vadd.f32 %v824, %v1059
  %v1061 = vpop.f32.mrf.mxu0
  %1062 = vmatprep.mubr.bf16.mxu0 0
  %1063 = vmatmul.mubr.bf16.gmra.mxu0 %v875
  %v1064 = vpop.f32.mrf.mxu0
  %v1065 = vadd.f32 %v824, %v1064
  %v1066 = vpop.f32.mrf.mxu0
  %v1067 = vpop.f32.mrf.mxu0
  %v1068 = vadd.f32 %v824, %v1067
  %v1069 = vpop.f32.mrf.mxu0
  %1070 = vmatprep.mubr.bf16.mxu0 0
  %1071 = vmatmul.mubr.bf16.gmra.mxu0 %v878
  %v1072 = vpop.f32.mrf.mxu0
  %v1073 = vadd.f32 %v824, %v1072
  %v1074 = vpop.f32.mrf.mxu0
  %v1075 = vpop.f32.mrf.mxu0
  %v1076 = vadd.f32 %v824, %v1075
  %v1077 = vpop.f32.mrf.mxu0
  %1078 = vmatprep.mubr.bf16.mxu0 0
  %1079 = vmatmul.mubr.bf16.gmra.mxu0 %v881
  %v1080 = vpop.f32.mrf.mxu0
  %v1081 = vadd.f32 %v824, %v1080
  %v1082 = vpop.f32.mrf.mxu0
  %v1083 = vpop.f32.mrf.mxu0
  %v1084 = vadd.f32 %v824, %v1083
  %v1085 = vpop.f32.mrf.mxu0
  %1086 = vmatprep.mubr.bf16.mxu0 0
  %1087 = vmatmul.mubr.bf16.gmra.mxu0 %v884
  %v1088 = vpop.f32.mrf.mxu0
  %v1089 = vadd.f32 %v824, %v1088
  %v1090 = vpop.f32.mrf.mxu0
  %v1091 = vpop.f32.mrf.mxu0
  %v1092 = vadd.f32 %v824, %v1091
  %v1093 = vpop.f32.mrf.mxu0
  %1094 = vmatprep.mubr.bf16.mxu0 0
  %1095 = vmatmul.mubr.bf16.gmra.mxu0 %v887
  %v1096 = vpop.f32.mrf.mxu0
  %v1097 = vadd.f32 %v824, %v1096
  %v1098 = vpop.f32.mrf.mxu0
  %v1099 = vpop.f32.mrf.mxu0
  %v1100 = vadd.f32 %v824, %v1099
  %v1101 = vpop.f32.mrf.mxu0
  %1102 = vmatprep.mubr.bf16.mxu0 0
  %1103 = vmatmul.mubr.bf16.gmra.mxu0 %v890
  %v1104 = vpop.f32.mrf.mxu0
  %v1105 = vadd.f32 %v824, %v1104
  %v1106 = vpop.f32.mrf.mxu0
  %v1107 = vpop.f32.mrf.mxu0
  %v1108 = vadd.f32 %v824, %v1107
  %v1109 = vpop.f32.mrf.mxu0
  %1110 = vmatprep.mubr.bf16.mxu0 0
  %1111 = vmatmul.mubr.bf16.gmra.mxu0 %v893
  %v1112 = vpop.f32.mrf.mxu0
  %v1113 = vadd.f32 %v824, %v1112
  %v1114 = vpop.f32.mrf.mxu0
  %v1115 = vpop.f32.mrf.mxu0
  %v1116 = vadd.f32 %v824, %v1115
  %v1117 = vpop.f32.mrf.mxu0
  %1118 = vmatprep.mubr.bf16.mxu0 0
  %1119 = vmatmul.mubr.bf16.gmra.mxu0 %v896
  %v1120 = vpop.f32.mrf.mxu0
  %v1121 = vadd.f32 %v824, %v1120
  %v1122 = vpop.f32.mrf.mxu0
  %v1123 = vpop.f32.mrf.mxu0
  %v1124 = vadd.f32 %v824, %v1123
  %v1125 = vpop.f32.mrf.mxu0
  %1126 = vmatprep.mubr.bf16.mxu0 0
  %1127 = vmatmul.mubr.bf16.gmra.mxu0 %v899
  %v1128 = vpop.f32.mrf.mxu0
  %v1129 = vadd.f32 %v824, %v1128
  %v1130 = vpop.f32.mrf.mxu0
  %v1131 = vpop.f32.mrf.mxu0
  %v1132 = vadd.f32 %v824, %v1131
  %v1133 = vpop.f32.mrf.mxu0
  %1134 = vmatprep.mubr.bf16.mxu0 0
  %1135 = vmatmul.mubr.bf16.gmra.mxu0 %v902
  %v1136 = vpop.f32.mrf.mxu0
  %v1137 = vadd.f32 %v824, %v1136
  %v1138 = vpop.f32.mrf.mxu0
  %v1139 = vpop.f32.mrf.mxu0
  %v1140 = vadd.f32 %v824, %v1139
  %v1141 = vpop.f32.mrf.mxu0
  %1142 = vmatprep.mubr.bf16.mxu0 0
  %1143 = vmatmul.mubr.bf16.gmra.mxu0 %v905
  %v1144 = vpop.f32.mrf.mxu0
  %v1145 = vadd.f32 %v824, %v1144
  %v1146 = vpop.f32.mrf.mxu0
  %v1147 = vpop.f32.mrf.mxu0
  %v1148 = vadd.f32 %v824, %v1147
  %v1149 = vpop.f32.mrf.mxu0
  %1150 = vmatprep.mubr.bf16.mxu0 0
  %1151 = vmatmul.mubr.bf16.gmra.mxu0 %v908
  %v1152 = vpop.f32.mrf.mxu0
  %v1153 = vadd.f32 %v824, %v1152
  %v1154 = vpop.f32.mrf.mxu0
  %v1155 = vpop.f32.mrf.mxu0
  %v1156 = vadd.f32 %v824, %v1155
  %v1157 = vpop.f32.mrf.mxu0
  %1158 = vmatprep.mubr.bf16.mxu0 0
  %1159 = vmatmul.mubr.bf16.gmra.mxu0 %v911
  %v1160 = vpop.f32.mrf.mxu0
  %v1161 = vadd.f32 %v824, %v1160
  %v1162 = vpop.f32.mrf.mxu0
  %v1163 = vpop.f32.mrf.mxu0
  %v1164 = vadd.f32 %v824, %v1163
  %v1165 = vpop.f32.mrf.mxu0
  %1166 = vmatprep.mubr.bf16.mxu0 0
  %1167 = vmatmul.mubr.bf16.gmra.mxu0 %v914
  %v1168 = vpop.f32.mrf.mxu0
  %v1169 = vadd.f32 %v824, %v1168
  %v1170 = vpop.f32.mrf.mxu0
  %v1171 = vpop.f32.mrf.mxu0
  %v1172 = vadd.f32 %v824, %v1171
  %v1173 = vpop.f32.mrf.mxu0
  %1174 = vmatprep.mubr.bf16.mxu0 0
  %1175 = vmatmul.mubr.bf16.gmra.mxu0 %v917
  %v1176 = vpop.f32.mrf.mxu0
  %v1177 = vadd.f32 %v824, %v1176
  %v1178 = vpop.f32.mrf.mxu0
  %v1179 = vpop.f32.mrf.mxu0
  %v1180 = vadd.f32 %v824, %v1179
  %v1181 = vpop.f32.mrf.mxu0
  %1182 = vmatprep.mubr.bf16.mxu0 0
  %1183 = vmatmul.mubr.bf16.gmra.mxu0 %v920
  %v1184 = vpop.f32.mrf.mxu0
  %v1185 = vadd.f32 %v824, %v1184
  %v1186 = vpop.f32.mrf.mxu0
  %v1187 = vpop.f32.mrf.mxu0
  %v1188 = vadd.f32 %v824, %v1187
  %v1189 = vpop.f32.mrf.mxu0
  %1190 = vmatprep.mubr.bf16.mxu0 0
  %1191 = vmatmul.mubr.bf16.gmra.mxu0 %v923
  %v1192 = vpop.f32.mrf.mxu0
  %v1193 = vadd.f32 %v824, %v1192
  %v1194 = vpop.f32.mrf.mxu0
  %v1195 = vpop.f32.mrf.mxu0
  %v1196 = vadd.f32 %v824, %v1195
  %v1197 = vpop.f32.mrf.mxu0
  %1198 = vmatprep.mubr.bf16.mxu0 0
  %1199 = vmatmul.mubr.bf16.gmra.mxu0 %v926
  %v1200 = vpop.f32.mrf.mxu0
  %v1201 = vadd.f32 %v824, %v1200
  %v1202 = vpop.f32.mrf.mxu0
  %v1203 = vpop.f32.mrf.mxu0
  %v1204 = vadd.f32 %v824, %v1203
  %v1205 = vpop.f32.mrf.mxu0
  %1206 = vmatprep.mubr.bf16.mxu0 0
  %1207 = vmatmul.mubr.bf16.gmra.mxu0 %v929
  %v1208 = vpop.f32.mrf.mxu0
  %v1209 = vadd.f32 %v824, %v1208
  %v1210 = vpop.f32.mrf.mxu0
  %v1211 = vpop.f32.mrf.mxu0
  %v1212 = vadd.f32 %v824, %v1211
  %v1213 = vpop.f32.mrf.mxu0
  %1214 = vmatprep.mubr.bf16.mxu0 0
  %1215 = vmatmul.mubr.bf16.gmra.mxu0 %v932
  %v1216 = vpop.f32.mrf.mxu0
  %v1217 = vadd.f32 %v824, %v1216
  %v1218 = vpop.f32.mrf.mxu0
  %v1219 = vpop.f32.mrf.mxu0
  %v1220 = vadd.f32 %v824, %v1219
  %v1221 = vpop.f32.mrf.mxu0
  %1222 = vdwg.mxu0
  %v1223 = vmax.f32 %v969, 0.0
  %v1224 = vmax.f32 %v972, 0.0
  %v1225 = vmax.f32 %v977, 0.0
  %v1226 = vmax.f32 %v980, 0.0
  %v1227 = vmax.f32 %v985, 0.0
  %v1228 = vmax.f32 %v988, 0.0
  %v1229 = vmax.f32 %v993, 0.0
  %v1230 = vmax.f32 %v996, 0.0
  %v1231 = vmax.f32 %v1001, 0.0
  %v1232 = vmax.f32 %v1004, 0.0
  %v1233 = vmax.f32 %v1009, 0.0
  %v1234 = vmax.f32 %v1012, 0.0
  %v1235 = vmax.f32 %v1017, 0.0
  %v1236 = vmax.f32 %v1020, 0.0
  %v1237 = vmax.f32 %v1025, 0.0
  %v1238 = vmax.f32 %v1028, 0.0
  %v1239 = vmax.f32 %v1033, 0.0
  %v1240 = vmax.f32 %v1036, 0.0
  %v1241 = vmax.f32 %v1041, 0.0
  %v1242 = vmax.f32 %v1044, 0.0
  %v1243 = vmax.f32 %v1049, 0.0
  %v1244 = vmax.f32 %v1052, 0.0
  %v1245 = vmax.f32 %v1057, 0.0
  %v1246 = vmax.f32 %v1060, 0.0
  %v1247 = vmax.f32 %v1065, 0.0
  %v1248 = vmax.f32 %v1068, 0.0
  %v1249 = vmax.f32 %v1073, 0.0
  %v1250 = vmax.f32 %v1076, 0.0
  %v1251 = vmax.f32 %v1081, 0.0
  %v1252 = vmax.f32 %v1084, 0.0
  %v1253 = vmax.f32 %v1089, 0.0
  %v1254 = vmax.f32 %v1092, 0.0
  %v1255 = vmax.f32 %v1097, 0.0
  %v1256 = vmax.f32 %v1100, 0.0
  %v1257 = vmax.f32 %v1105, 0.0
  %v1258 = vmax.f32 %v1108, 0.0
  %v1259 = vmax.f32 %v1113, 0.0
  %v1260 = vmax.f32 %v1116, 0.0
  %v1261 = vmax.f32 %v1121, 0.0
  %v1262 = vmax.f32 %v1124, 0.0
  %v1263 = vmax.f32 %v1129, 0.0
  %v1264 = vmax.f32 %v1132, 0.0
  %v1265 = vmax.f32 %v1137, 0.0
  %v1266 = vmax.f32 %v1140, 0.0
  %v1267 = vmax.f32 %v1145, 0.0
  %v1268 = vmax.f32 %v1148, 0.0
  %v1269 = vmax.f32 %v1153, 0.0
  %v1270 = vmax.f32 %v1156, 0.0
  %v1271 = vmax.f32 %v1161, 0.0
  %v1272 = vmax.f32 %v1164, 0.0
  %v1273 = vmax.f32 %v1169, 0.0
  %v1274 = vmax.f32 %v1172, 0.0
  %v1275 = vmax.f32 %v1177, 0.0
  %v1276 = vmax.f32 %v1180, 0.0
  %v1277 = vmax.f32 %v1185, 0.0
  %v1278 = vmax.f32 %v1188, 0.0
  %v1279 = vmax.f32 %v1193, 0.0
  %v1280 = vmax.f32 %v1196, 0.0
  %v1281 = vmax.f32 %v1201, 0.0
  %v1282 = vmax.f32 %v1204, 0.0
  %v1283 = vmax.f32 %v1209, 0.0
  %v1284 = vmax.f32 %v1212, 0.0
  %v1285 = vmax.f32 %v1217, 0.0
  %v1286 = vmax.f32 %v1220, 0.0
  %v1287 = vpack.c.bf16 %v1224, %v1223
  %v1288 = vpack.c.bf16 %v1226, %v1225
  %v1289 = vpack.c.bf16 %v1228, %v1227
  %v1290 = vpack.c.bf16 %v1230, %v1229
  %v1291 = vpack.c.bf16 %v1232, %v1231
  %v1292 = vpack.c.bf16 %v1234, %v1233
  %v1293 = vpack.c.bf16 %v1236, %v1235
  %v1294 = vpack.c.bf16 %v1238, %v1237
  %v1295 = vpack.c.bf16 %v1240, %v1239
  %v1296 = vpack.c.bf16 %v1242, %v1241
  %v1297 = vpack.c.bf16 %v1244, %v1243
  %v1298 = vpack.c.bf16 %v1246, %v1245
  %v1299 = vpack.c.bf16 %v1248, %v1247
  %v1300 = vpack.c.bf16 %v1250, %v1249
  %v1301 = vpack.c.bf16 %v1252, %v1251
  %v1302 = vpack.c.bf16 %v1254, %v1253
  %v1303 = vpack.c.bf16 %v1256, %v1255
  %v1304 = vpack.c.bf16 %v1258, %v1257
  %v1305 = vpack.c.bf16 %v1260, %v1259
  %v1306 = vpack.c.bf16 %v1262, %v1261
  %v1307 = vpack.c.bf16 %v1264, %v1263
  %v1308 = vpack.c.bf16 %v1266, %v1265
  %v1309 = vpack.c.bf16 %v1268, %v1267
  %v1310 = vpack.c.bf16 %v1270, %v1269
  %v1311 = vpack.c.bf16 %v1272, %v1271
  %v1312 = vpack.c.bf16 %v1274, %v1273
  %v1313 = vpack.c.bf16 %v1276, %v1275
  %v1314 = vpack.c.bf16 %v1278, %v1277
  %v1315 = vpack.c.bf16 %v1280, %v1279
  %v1316 = vpack.c.bf16 %v1282, %v1281
  %v1317 = vpack.c.bf16 %v1284, %v1283
  %v1318 = vpack.c.bf16 %v1286, %v1285
  %v1319 = vlaneseq
  %v1320 = vshrl.u32 %v1319, 7
  %v1321 = vsub.s32 0, %v1320
  %v1322 = vrot.slane %v165, %v1321
  %v1327 = vunpack.c.l.b16 %v149
  %v1328 = vunpack.c.l.b16 %v150
  %v1329 = vunpack.c.l.b16 %v151
  %v1330 = vunpack.c.l.b16 %v152
  %v1331 = vpack.c.b16 %v1328, %v1327
  %v1332 = vpack.c.b16 %v1330, %v1329
  %v1336 = vsel %vm837, %v1287, 0
  %v1339 = vsel %vm837, %v1288, 0
  %v1342 = vsel %vm837, %v1289, 0
  %v1345 = vsel %vm837, %v1290, 0
  %v1348 = vsel %vm837, %v1291, 0
  %v1351 = vsel %vm837, %v1292, 0
  %v1354 = vsel %vm837, %v1293, 0
  %v1357 = vsel %vm837, %v1294, 0
  %v1360 = vsel %vm837, %v1295, 0
  %v1363 = vsel %vm837, %v1296, 0
  %v1366 = vsel %vm837, %v1297, 0
  %v1369 = vsel %vm837, %v1298, 0
  %v1372 = vsel %vm837, %v1299, 0
  %v1375 = vsel %vm837, %v1300, 0
  %v1378 = vsel %vm837, %v1301, 0
  %v1381 = vsel %vm837, %v1302, 0
  %v1384 = vsel %vm837, %v1303, 0
  %v1387 = vsel %vm837, %v1304, 0
  %v1390 = vsel %vm837, %v1305, 0
  %v1393 = vsel %vm837, %v1306, 0
  %v1396 = vsel %vm837, %v1307, 0
  %v1399 = vsel %vm837, %v1308, 0
  %v1402 = vsel %vm837, %v1309, 0
  %v1405 = vsel %vm837, %v1310, 0
  %v1408 = vsel %vm837, %v1311, 0
  %v1411 = vsel %vm837, %v1312, 0
  %v1414 = vsel %vm837, %v1313, 0
  %v1417 = vsel %vm837, %v1314, 0
  %v1420 = vsel %vm837, %v1315, 0
  %v1423 = vsel %vm837, %v1316, 0
  %v1426 = vsel %vm837, %v1317, 0
  %v1429 = vsel %vm837, %v1318, 0
  %1431 = vmatprep.subr.bf16.mxu0 0
  %1432 = vmatpush1.bf16.msra.mxu0 0
  %1433 = vmatprep.subr.bf16.mxu0 0
  %1434 = vmatpush1.bf16.msra.mxu0 0
  %1435 = vmatprep.subr.bf16.mxu0 0
  %1436 = vmatpush1.bf16.msra.mxu0 0
  %1437 = vmatprep.subr.bf16.mxu0 0
  %1438 = vmatpush1.bf16.msra.mxu0 0
  %1439 = vmatprep.subr.bf16.mxu0 0
  %1440 = vmatpush1.bf16.msra.mxu0 0
  %1441 = vmatprep.subr.bf16.mxu0 0
  %1442 = vmatpush1.bf16.msra.mxu0 0
  %1443 = vmatprep.subr.bf16.mxu0 0
  %1444 = vmatpush1.bf16.msra.mxu0 %v1332
  %1445 = vmatprep.subr.bf16.mxu0 0
  %1446 = vmatpush1.bf16.msra.mxu0 %v1331
  %1447 = vmatprep.subr.bf16.mxu0 0
  %1448 = vmatpush2.bf16.msra.mxu0 0
  %1449 = vmatprep.subr.bf16.mxu0 0
  %1450 = vmatpush2.bf16.msra.mxu0 0
  %1451 = vmatprep.subr.bf16.mxu0 0
  %1452 = vmatpush2.bf16.msra.mxu0 0
  %1453 = vmatprep.subr.bf16.mxu0 0
  %1454 = vmatpush2.bf16.msra.mxu0 0
  %1455 = vmatprep.subr.bf16.mxu0 0
  %1456 = vmatpush2.bf16.msra.mxu0 0
  %1457 = vmatprep.subr.bf16.mxu0 0
  %1458 = vmatpush2.bf16.msra.mxu0 0
  %1459 = vmatprep.subr.bf16.mxu0 0
  %1460 = vmatpush2.bf16.msra.mxu0 0
  %1461 = vmatprep.subr.bf16.mxu0 0
  %1462 = vmatpush2.bf16.msra.mxu0 0
  %1463 = vmatprep.mubr.bf16.mxu0 0
  %1464 = vmatmul.mubr.bf16.gmra.mxu0 %v1336
  %v1465 = vpop.f32.mrf.mxu0
  %v1466 = vadd.f32 %v1322, %v1465
  %v1467 = vpop.f32.mrf.mxu0
  %v1468 = vpop.f32.mrf.mxu0
  %v1469 = vadd.f32 %v1322, %v1468
  %v1470 = vpop.f32.mrf.mxu0
  %1471 = vmatprep.mubr.bf16.mxu0 0
  %1472 = vmatmul.mubr.bf16.gmra.mxu0 %v1339
  %v1473 = vpop.f32.mrf.mxu0
  %v1474 = vadd.f32 %v1322, %v1473
  %v1475 = vpop.f32.mrf.mxu0
  %v1476 = vpop.f32.mrf.mxu0
  %v1477 = vadd.f32 %v1322, %v1476
  %v1478 = vpop.f32.mrf.mxu0
  %1479 = vmatprep.mubr.bf16.mxu0 0
  %1480 = vmatmul.mubr.bf16.gmra.mxu0 %v1342
  %v1481 = vpop.f32.mrf.mxu0
  %v1482 = vadd.f32 %v1322, %v1481
  %v1483 = vpop.f32.mrf.mxu0
  %v1484 = vpop.f32.mrf.mxu0
  %v1485 = vadd.f32 %v1322, %v1484
  %v1486 = vpop.f32.mrf.mxu0
  %1487 = vmatprep.mubr.bf16.mxu0 0
  %1488 = vmatmul.mubr.bf16.gmra.mxu0 %v1345
  %v1489 = vpop.f32.mrf.mxu0
  %v1490 = vadd.f32 %v1322, %v1489
  %v1491 = vpop.f32.mrf.mxu0
  %v1492 = vpop.f32.mrf.mxu0
  %v1493 = vadd.f32 %v1322, %v1492
  %v1494 = vpop.f32.mrf.mxu0
  %1495 = vmatprep.mubr.bf16.mxu0 0
  %1496 = vmatmul.mubr.bf16.gmra.mxu0 %v1348
  %v1497 = vpop.f32.mrf.mxu0
  %v1498 = vadd.f32 %v1322, %v1497
  %v1499 = vpop.f32.mrf.mxu0
  %v1500 = vpop.f32.mrf.mxu0
  %v1501 = vadd.f32 %v1322, %v1500
  %v1502 = vpop.f32.mrf.mxu0
  %1503 = vmatprep.mubr.bf16.mxu0 0
  %1504 = vmatmul.mubr.bf16.gmra.mxu0 %v1351
  %v1505 = vpop.f32.mrf.mxu0
  %v1506 = vadd.f32 %v1322, %v1505
  %v1507 = vpop.f32.mrf.mxu0
  %v1508 = vpop.f32.mrf.mxu0
  %v1509 = vadd.f32 %v1322, %v1508
  %v1510 = vpop.f32.mrf.mxu0
  %1511 = vmatprep.mubr.bf16.mxu0 0
  %1512 = vmatmul.mubr.bf16.gmra.mxu0 %v1354
  %v1513 = vpop.f32.mrf.mxu0
  %v1514 = vadd.f32 %v1322, %v1513
  %v1515 = vpop.f32.mrf.mxu0
  %v1516 = vpop.f32.mrf.mxu0
  %v1517 = vadd.f32 %v1322, %v1516
  %v1518 = vpop.f32.mrf.mxu0
  %1519 = vmatprep.mubr.bf16.mxu0 0
  %1520 = vmatmul.mubr.bf16.gmra.mxu0 %v1357
  %v1521 = vpop.f32.mrf.mxu0
  %v1522 = vadd.f32 %v1322, %v1521
  %v1523 = vpop.f32.mrf.mxu0
  %v1524 = vpop.f32.mrf.mxu0
  %v1525 = vadd.f32 %v1322, %v1524
  %v1526 = vpop.f32.mrf.mxu0
  %1527 = vmatprep.mubr.bf16.mxu0 0
  %1528 = vmatmul.mubr.bf16.gmra.mxu0 %v1360
  %v1529 = vpop.f32.mrf.mxu0
  %v1530 = vadd.f32 %v1322, %v1529
  %v1531 = vpop.f32.mrf.mxu0
  %v1532 = vpop.f32.mrf.mxu0
  %v1533 = vadd.f32 %v1322, %v1532
  %v1534 = vpop.f32.mrf.mxu0
  %1535 = vmatprep.mubr.bf16.mxu0 0
  %1536 = vmatmul.mubr.bf16.gmra.mxu0 %v1363
  %v1537 = vpop.f32.mrf.mxu0
  %v1538 = vadd.f32 %v1322, %v1537
  %v1539 = vpop.f32.mrf.mxu0
  %v1540 = vpop.f32.mrf.mxu0
  %v1541 = vadd.f32 %v1322, %v1540
  %v1542 = vpop.f32.mrf.mxu0
  %1543 = vmatprep.mubr.bf16.mxu0 0
  %1544 = vmatmul.mubr.bf16.gmra.mxu0 %v1366
  %v1545 = vpop.f32.mrf.mxu0
  %v1546 = vadd.f32 %v1322, %v1545
  %v1547 = vpop.f32.mrf.mxu0
  %v1548 = vpop.f32.mrf.mxu0
  %v1549 = vadd.f32 %v1322, %v1548
  %v1550 = vpop.f32.mrf.mxu0
  %1551 = vmatprep.mubr.bf16.mxu0 0
  %1552 = vmatmul.mubr.bf16.gmra.mxu0 %v1369
  %v1553 = vpop.f32.mrf.mxu0
  %v1554 = vadd.f32 %v1322, %v1553
  %v1555 = vpop.f32.mrf.mxu0
  %v1556 = vpop.f32.mrf.mxu0
  %v1557 = vadd.f32 %v1322, %v1556
  %v1558 = vpop.f32.mrf.mxu0
  %1559 = vmatprep.mubr.bf16.mxu0 0
  %1560 = vmatmul.mubr.bf16.gmra.mxu0 %v1372
  %v1561 = vpop.f32.mrf.mxu0
  %v1562 = vadd.f32 %v1322, %v1561
  %v1563 = vpop.f32.mrf.mxu0
  %v1564 = vpop.f32.mrf.mxu0
  %v1565 = vadd.f32 %v1322, %v1564
  %v1566 = vpop.f32.mrf.mxu0
  %1567 = vmatprep.mubr.bf16.mxu0 0
  %1568 = vmatmul.mubr.bf16.gmra.mxu0 %v1375
  %v1569 = vpop.f32.mrf.mxu0
  %v1570 = vadd.f32 %v1322, %v1569
  %v1571 = vpop.f32.mrf.mxu0
  %v1572 = vpop.f32.mrf.mxu0
  %v1573 = vadd.f32 %v1322, %v1572
  %v1574 = vpop.f32.mrf.mxu0
  %1575 = vmatprep.mubr.bf16.mxu0 0
  %1576 = vmatmul.mubr.bf16.gmra.mxu0 %v1378
  %v1577 = vpop.f32.mrf.mxu0
  %v1578 = vadd.f32 %v1322, %v1577
  %v1579 = vpop.f32.mrf.mxu0
  %v1580 = vpop.f32.mrf.mxu0
  %v1581 = vadd.f32 %v1322, %v1580
  %v1582 = vpop.f32.mrf.mxu0
  %1583 = vmatprep.mubr.bf16.mxu0 0
  %1584 = vmatmul.mubr.bf16.gmra.mxu0 %v1381
  %v1585 = vpop.f32.mrf.mxu0
  %v1586 = vadd.f32 %v1322, %v1585
  %v1587 = vpop.f32.mrf.mxu0
  %v1588 = vpop.f32.mrf.mxu0
  %v1589 = vadd.f32 %v1322, %v1588
  %v1590 = vpop.f32.mrf.mxu0
  %1591 = vmatprep.mubr.bf16.mxu0 0
  %1592 = vmatmul.mubr.bf16.gmra.mxu0 %v1384
  %v1593 = vpop.f32.mrf.mxu0
  %v1594 = vadd.f32 %v1322, %v1593
  %v1595 = vpop.f32.mrf.mxu0
  %v1596 = vpop.f32.mrf.mxu0
  %v1597 = vadd.f32 %v1322, %v1596
  %v1598 = vpop.f32.mrf.mxu0
  %1599 = vmatprep.mubr.bf16.mxu0 0
  %1600 = vmatmul.mubr.bf16.gmra.mxu0 %v1387
  %v1601 = vpop.f32.mrf.mxu0
  %v1602 = vadd.f32 %v1322, %v1601
  %v1603 = vpop.f32.mrf.mxu0
  %v1604 = vpop.f32.mrf.mxu0
  %v1605 = vadd.f32 %v1322, %v1604
  %v1606 = vpop.f32.mrf.mxu0
  %1607 = vmatprep.mubr.bf16.mxu0 0
  %1608 = vmatmul.mubr.bf16.gmra.mxu0 %v1390
  %v1609 = vpop.f32.mrf.mxu0
  %v1610 = vadd.f32 %v1322, %v1609
  %v1611 = vpop.f32.mrf.mxu0
  %v1612 = vpop.f32.mrf.mxu0
  %v1613 = vadd.f32 %v1322, %v1612
  %v1614 = vpop.f32.mrf.mxu0
  %1615 = vmatprep.mubr.bf16.mxu0 0
  %1616 = vmatmul.mubr.bf16.gmra.mxu0 %v1393
  %v1617 = vpop.f32.mrf.mxu0
  %v1618 = vadd.f32 %v1322, %v1617
  %v1619 = vpop.f32.mrf.mxu0
  %v1620 = vpop.f32.mrf.mxu0
  %v1621 = vadd.f32 %v1322, %v1620
  %v1622 = vpop.f32.mrf.mxu0
  %1623 = vmatprep.mubr.bf16.mxu0 0
  %1624 = vmatmul.mubr.bf16.gmra.mxu0 %v1396
  %v1625 = vpop.f32.mrf.mxu0
  %v1626 = vadd.f32 %v1322, %v1625
  %v1627 = vpop.f32.mrf.mxu0
  %v1628 = vpop.f32.mrf.mxu0
  %v1629 = vadd.f32 %v1322, %v1628
  %v1630 = vpop.f32.mrf.mxu0
  %1631 = vmatprep.mubr.bf16.mxu0 0
  %1632 = vmatmul.mubr.bf16.gmra.mxu0 %v1399
  %v1633 = vpop.f32.mrf.mxu0
  %v1634 = vadd.f32 %v1322, %v1633
  %v1635 = vpop.f32.mrf.mxu0
  %v1636 = vpop.f32.mrf.mxu0
  %v1637 = vadd.f32 %v1322, %v1636
  %v1638 = vpop.f32.mrf.mxu0
  %1639 = vmatprep.mubr.bf16.mxu0 0
  %1640 = vmatmul.mubr.bf16.gmra.mxu0 %v1402
  %v1641 = vpop.f32.mrf.mxu0
  %v1642 = vadd.f32 %v1322, %v1641
  %v1643 = vpop.f32.mrf.mxu0
  %v1644 = vpop.f32.mrf.mxu0
  %v1645 = vadd.f32 %v1322, %v1644
  %v1646 = vpop.f32.mrf.mxu0
  %1647 = vmatprep.mubr.bf16.mxu0 0
  %1648 = vmatmul.mubr.bf16.gmra.mxu0 %v1405
  %v1649 = vpop.f32.mrf.mxu0
  %v1650 = vadd.f32 %v1322, %v1649
  %v1651 = vpop.f32.mrf.mxu0
  %v1652 = vpop.f32.mrf.mxu0
  %v1653 = vadd.f32 %v1322, %v1652
  %v1654 = vpop.f32.mrf.mxu0
  %1655 = vmatprep.mubr.bf16.mxu0 0
  %1656 = vmatmul.mubr.bf16.gmra.mxu0 %v1408
  %v1657 = vpop.f32.mrf.mxu0
  %v1658 = vadd.f32 %v1322, %v1657
  %v1659 = vpop.f32.mrf.mxu0
  %v1660 = vpop.f32.mrf.mxu0
  %v1661 = vadd.f32 %v1322, %v1660
  %v1662 = vpop.f32.mrf.mxu0
  %1663 = vmatprep.mubr.bf16.mxu0 0
  %1664 = vmatmul.mubr.bf16.gmra.mxu0 %v1411
  %v1665 = vpop.f32.mrf.mxu0
  %v1666 = vadd.f32 %v1322, %v1665
  %v1667 = vpop.f32.mrf.mxu0
  %v1668 = vpop.f32.mrf.mxu0
  %v1669 = vadd.f32 %v1322, %v1668
  %v1670 = vpop.f32.mrf.mxu0
  %1671 = vmatprep.mubr.bf16.mxu0 0
  %1672 = vmatmul.mubr.bf16.gmra.mxu0 %v1414
  %v1673 = vpop.f32.mrf.mxu0
  %v1674 = vadd.f32 %v1322, %v1673
  %v1675 = vpop.f32.mrf.mxu0
  %v1676 = vpop.f32.mrf.mxu0
  %v1677 = vadd.f32 %v1322, %v1676
  %v1678 = vpop.f32.mrf.mxu0
  %1679 = vmatprep.mubr.bf16.mxu0 0
  %1680 = vmatmul.mubr.bf16.gmra.mxu0 %v1417
  %v1681 = vpop.f32.mrf.mxu0
  %v1682 = vadd.f32 %v1322, %v1681
  %v1683 = vpop.f32.mrf.mxu0
  %v1684 = vpop.f32.mrf.mxu0
  %v1685 = vadd.f32 %v1322, %v1684
  %v1686 = vpop.f32.mrf.mxu0
  %1687 = vmatprep.mubr.bf16.mxu0 0
  %1688 = vmatmul.mubr.bf16.gmra.mxu0 %v1420
  %v1689 = vpop.f32.mrf.mxu0
  %v1690 = vadd.f32 %v1322, %v1689
  %v1691 = vpop.f32.mrf.mxu0
  %v1692 = vpop.f32.mrf.mxu0
  %v1693 = vadd.f32 %v1322, %v1692
  %v1694 = vpop.f32.mrf.mxu0
  %1695 = vmatprep.mubr.bf16.mxu0 0
  %1696 = vmatmul.mubr.bf16.gmra.mxu0 %v1423
  %v1697 = vpop.f32.mrf.mxu0
  %v1698 = vadd.f32 %v1322, %v1697
  %v1699 = vpop.f32.mrf.mxu0
  %v1700 = vpop.f32.mrf.mxu0
  %v1701 = vadd.f32 %v1322, %v1700
  %v1702 = vpop.f32.mrf.mxu0
  %1703 = vmatprep.mubr.bf16.mxu0 0
  %1704 = vmatmul.mubr.bf16.gmra.mxu0 %v1426
  %v1705 = vpop.f32.mrf.mxu0
  %v1706 = vadd.f32 %v1322, %v1705
  %v1707 = vpop.f32.mrf.mxu0
  %v1708 = vpop.f32.mrf.mxu0
  %v1709 = vadd.f32 %v1322, %v1708
  %v1710 = vpop.f32.mrf.mxu0
  %1711 = vmatprep.mubr.bf16.mxu0 0
  %1712 = vmatmul.mubr.bf16.gmra.mxu0 %v1429
  %v1713 = vpop.f32.mrf.mxu0
  %v1714 = vadd.f32 %v1322, %v1713
  %v1715 = vpop.f32.mrf.mxu0
  %v1716 = vpop.f32.mrf.mxu0
  %v1717 = vadd.f32 %v1322, %v1716
  %v1718 = vpop.f32.mrf.mxu0
  %1719 = vdwg.mxu0
  %v1720 = vmul.f32 %v1466, 0.5
  %v1721 = vmul.f32 %v1469, 0.5
  %v1722 = vmul.f32 %v1474, 0.5
  %v1723 = vmul.f32 %v1477, 0.5
  %v1724 = vmul.f32 %v1482, 0.5
  %v1725 = vmul.f32 %v1485, 0.5
  %v1726 = vmul.f32 %v1490, 0.5
  %v1727 = vmul.f32 %v1493, 0.5
  %v1728 = vmul.f32 %v1498, 0.5
  %v1729 = vmul.f32 %v1501, 0.5
  %v1730 = vmul.f32 %v1506, 0.5
  %v1731 = vmul.f32 %v1509, 0.5
  %v1732 = vmul.f32 %v1514, 0.5
  %v1733 = vmul.f32 %v1517, 0.5
  %v1734 = vmul.f32 %v1522, 0.5
  %v1735 = vmul.f32 %v1525, 0.5
  %v1736 = vmul.f32 %v1530, 0.5
  %v1737 = vmul.f32 %v1533, 0.5
  %v1738 = vmul.f32 %v1538, 0.5
  %v1739 = vmul.f32 %v1541, 0.5
  %v1740 = vmul.f32 %v1546, 0.5
  %v1741 = vmul.f32 %v1549, 0.5
  %v1742 = vmul.f32 %v1554, 0.5
  %v1743 = vmul.f32 %v1557, 0.5
  %v1744 = vmul.f32 %v1562, 0.5
  %v1745 = vmul.f32 %v1565, 0.5
  %v1746 = vmul.f32 %v1570, 0.5
  %v1747 = vmul.f32 %v1573, 0.5
  %v1748 = vmul.f32 %v1578, 0.5
  %v1749 = vmul.f32 %v1581, 0.5
  %v1750 = vmul.f32 %v1586, 0.5
  %v1751 = vmul.f32 %v1589, 0.5
  %v1752 = vmul.f32 %v1594, 0.5
  %v1753 = vmul.f32 %v1597, 0.5
  %v1754 = vmul.f32 %v1602, 0.5
  %v1755 = vmul.f32 %v1605, 0.5
  %v1756 = vmul.f32 %v1610, 0.5
  %v1757 = vmul.f32 %v1613, 0.5
  %v1758 = vmul.f32 %v1618, 0.5
  %v1759 = vmul.f32 %v1621, 0.5
  %v1760 = vmul.f32 %v1626, 0.5
  %v1761 = vmul.f32 %v1629, 0.5
  %v1762 = vmul.f32 %v1634, 0.5
  %v1763 = vmul.f32 %v1637, 0.5
  %v1764 = vmul.f32 %v1642, 0.5
  %v1765 = vmul.f32 %v1645, 0.5
  %v1766 = vmul.f32 %v1650, 0.5
  %v1767 = vmul.f32 %v1653, 0.5
  %v1768 = vmul.f32 %v1658, 0.5
  %v1769 = vmul.f32 %v1661, 0.5
  %v1770 = vmul.f32 %v1666, 0.5
  %v1771 = vmul.f32 %v1669, 0.5
  %v1772 = vmul.f32 %v1674, 0.5
  %v1773 = vmul.f32 %v1677, 0.5
  %v1774 = vmul.f32 %v1682, 0.5
  %v1775 = vmul.f32 %v1685, 0.5
  %v1776 = vmul.f32 %v1690, 0.5
  %v1777 = vmul.f32 %v1693, 0.5
  %v1778 = vmul.f32 %v1698, 0.5
  %v1779 = vmul.f32 %v1701, 0.5
  %v1780 = vmul.f32 %v1706, 0.5
  %v1781 = vmul.f32 %v1709, 0.5
  %v1782 = vmul.f32 %v1714, 0.5
  %v1783 = vmul.f32 %v1717, 0.5
  %v1784 = vmul.f32 %v1720, 1.442695
  %v1785 = vpow.pop %v1784
  %v1786 = vmul.f32 %v1721, 1.442695
  %v1787 = vpow.pop %v1786
  %v1788 = vmul.f32 %v1722, 1.442695
  %v1789 = vpow.pop %v1788
  %v1790 = vmul.f32 %v1723, 1.442695
  %v1791 = vpow.pop %v1790
  %v1792 = vmul.f32 %v1724, 1.442695
  %v1793 = vpow.pop %v1792
  %v1794 = vmul.f32 %v1725, 1.442695
  %v1795 = vpow.pop %v1794
  %v1796 = vmul.f32 %v1726, 1.442695
  %v1797 = vpow.pop %v1796
  %v1798 = vmul.f32 %v1727, 1.442695
  %v1799 = vpow.pop %v1798
  %v1800 = vmul.f32 %v1728, 1.442695
  %v1801 = vpow.pop %v1800
  %v1802 = vmul.f32 %v1729, 1.442695
  %v1803 = vpow.pop %v1802
  %v1804 = vmul.f32 %v1730, 1.442695
  %v1805 = vpow.pop %v1804
  %v1806 = vmul.f32 %v1731, 1.442695
  %v1807 = vpow.pop %v1806
  %v1808 = vmul.f32 %v1732, 1.442695
  %v1809 = vpow.pop %v1808
  %v1810 = vmul.f32 %v1733, 1.442695
  %v1811 = vpow.pop %v1810
  %v1812 = vmul.f32 %v1734, 1.442695
  %v1813 = vpow.pop %v1812
  %v1814 = vmul.f32 %v1735, 1.442695
  %v1815 = vpow.pop %v1814
  %v1816 = vmul.f32 %v1736, 1.442695
  %v1817 = vpow.pop %v1816
  %v1818 = vmul.f32 %v1737, 1.442695
  %v1819 = vpow.pop %v1818
  %v1820 = vmul.f32 %v1738, 1.442695
  %v1821 = vpow.pop %v1820
  %v1822 = vmul.f32 %v1739, 1.442695
  %v1823 = vpow.pop %v1822
  %v1824 = vmul.f32 %v1740, 1.442695
  %v1825 = vpow.pop %v1824
  %v1826 = vmul.f32 %v1741, 1.442695
  %v1827 = vpow.pop %v1826
  %v1828 = vmul.f32 %v1742, 1.442695
  %v1829 = vpow.pop %v1828
  %v1830 = vmul.f32 %v1743, 1.442695
  %v1831 = vpow.pop %v1830
  %v1832 = vmul.f32 %v1744, 1.442695
  %v1833 = vpow.pop %v1832
  %v1834 = vmul.f32 %v1745, 1.442695
  %v1835 = vpow.pop %v1834
  %v1836 = vmul.f32 %v1746, 1.442695
  %v1837 = vpow.pop %v1836
  %v1838 = vmul.f32 %v1747, 1.442695
  %v1839 = vpow.pop %v1838
  %v1840 = vmul.f32 %v1748, 1.442695
  %v1841 = vpow.pop %v1840
  %v1842 = vmul.f32 %v1749, 1.442695
  %v1843 = vpow.pop %v1842
  %v1844 = vmul.f32 %v1750, 1.442695
  %v1845 = vpow.pop %v1844
  %v1846 = vmul.f32 %v1751, 1.442695
  %v1847 = vpow.pop %v1846
  %v1848 = vmul.f32 %v1752, 1.442695
  %v1849 = vpow.pop %v1848
  %v1850 = vmul.f32 %v1753, 1.442695
  %v1851 = vpow.pop %v1850
  %v1852 = vmul.f32 %v1754, 1.442695
  %v1853 = vpow.pop %v1852
  %v1854 = vmul.f32 %v1755, 1.442695
  %v1855 = vpow.pop %v1854
  %v1856 = vmul.f32 %v1756, 1.442695
  %v1857 = vpow.pop %v1856
  %v1858 = vmul.f32 %v1757, 1.442695
  %v1859 = vpow.pop %v1858
  %v1860 = vmul.f32 %v1758, 1.442695
  %v1861 = vpow.pop %v1860
  %v1862 = vmul.f32 %v1759, 1.442695
  %v1863 = vpow.pop %v1862
  %v1864 = vmul.f32 %v1760, 1.442695
  %v1865 = vpow.pop %v1864
  %v1866 = vmul.f32 %v1761, 1.442695
  %v1867 = vpow.pop %v1866
  %v1868 = vmul.f32 %v1762, 1.442695
  %v1869 = vpow.pop %v1868
  %v1870 = vmul.f32 %v1763, 1.442695
  %v1871 = vpow.pop %v1870
  %v1872 = vmul.f32 %v1764, 1.442695
  %v1873 = vpow.pop %v1872
  %v1874 = vmul.f32 %v1765, 1.442695
  %v1875 = vpow.pop %v1874
  %v1876 = vmul.f32 %v1766, 1.442695
  %v1877 = vpow.pop %v1876
  %v1878 = vmul.f32 %v1767, 1.442695
  %v1879 = vpow.pop %v1878
  %v1880 = vmul.f32 %v1768, 1.442695
  %v1881 = vpow.pop %v1880
  %v1882 = vmul.f32 %v1769, 1.442695
  %v1883 = vpow.pop %v1882
  %v1884 = vmul.f32 %v1770, 1.442695
  %v1885 = vpow.pop %v1884
  %v1886 = vmul.f32 %v1771, 1.442695
  %v1887 = vpow.pop %v1886
  %v1888 = vmul.f32 %v1772, 1.442695
  %v1889 = vpow.pop %v1888
  %v1890 = vmul.f32 %v1773, 1.442695
  %v1891 = vpow.pop %v1890
  %v1892 = vmul.f32 %v1774, 1.442695
  %v1893 = vpow.pop %v1892
  %v1894 = vmul.f32 %v1775, 1.442695
  %v1895 = vpow.pop %v1894
  %v1896 = vmul.f32 %v1776, 1.442695
  %v1897 = vpow.pop %v1896
  %v1898 = vmul.f32 %v1777, 1.442695
  %v1899 = vpow.pop %v1898
  %v1900 = vmul.f32 %v1778, 1.442695
  %v1901 = vpow.pop %v1900
  %v1902 = vmul.f32 %v1779, 1.442695
  %v1903 = vpow.pop %v1902
  %v1904 = vmul.f32 %v1780, 1.442695
  %v1905 = vpow.pop %v1904
  %v1906 = vmul.f32 %v1781, 1.442695
  %v1907 = vpow.pop %v1906
  %v1908 = vmul.f32 %v1782, 1.442695
  %v1909 = vpow.pop %v1908
  %v1910 = vmul.f32 %v1783, 1.442695
  %v1911 = vpow.pop %v1910
  %1976 = vrot.lane.b32.xlu0 %v1785, 12
  %v1977 = vpop.permute.xlu0 %1976
  %1978 = vrot.lane.b32.xlu0 %v1787, 12
  %v1979 = vpop.permute.xlu0 %1978
  %1980 = vrot.lane.b32.xlu0 %v1789, 12
  %v1981 = vpop.permute.xlu0 %1980
  %1982 = vrot.lane.b32.xlu0 %v1791, 12
  %v1983 = vpop.permute.xlu0 %1982
  %1984 = vrot.lane.b32.xlu0 %v1793, 12
  %v1985 = vpop.permute.xlu0 %1984
  %1986 = vrot.lane.b32.xlu0 %v1795, 12
  %v1987 = vpop.permute.xlu0 %1986
  %1988 = vrot.lane.b32.xlu0 %v1797, 12
  %v1989 = vpop.permute.xlu0 %1988
  %1990 = vrot.lane.b32.xlu0 %v1799, 12
  %v1991 = vpop.permute.xlu0 %1990
  %1992 = vrot.lane.b32.xlu0 %v1801, 12
  %v1993 = vpop.permute.xlu0 %1992
  %1994 = vrot.lane.b32.xlu0 %v1803, 12
  %v1995 = vpop.permute.xlu0 %1994
  %1996 = vrot.lane.b32.xlu0 %v1805, 12
  %v1997 = vpop.permute.xlu0 %1996
  %1998 = vrot.lane.b32.xlu0 %v1807, 12
  %v1999 = vpop.permute.xlu0 %1998
  %2000 = vrot.lane.b32.xlu0 %v1809, 12
  %v2001 = vpop.permute.xlu0 %2000
  %2002 = vrot.lane.b32.xlu0 %v1811, 12
  %v2003 = vpop.permute.xlu0 %2002
  %2004 = vrot.lane.b32.xlu0 %v1813, 12
  %v2005 = vpop.permute.xlu0 %2004
  %2006 = vrot.lane.b32.xlu0 %v1815, 12
  %v2007 = vpop.permute.xlu0 %2006
  %2008 = vrot.lane.b32.xlu0 %v1817, 12
  %v2009 = vpop.permute.xlu0 %2008
  %2010 = vrot.lane.b32.xlu0 %v1819, 12
  %v2011 = vpop.permute.xlu0 %2010
  %2012 = vrot.lane.b32.xlu0 %v1821, 12
  %v2013 = vpop.permute.xlu0 %2012
  %2014 = vrot.lane.b32.xlu0 %v1823, 12
  %v2015 = vpop.permute.xlu0 %2014
  %2016 = vrot.lane.b32.xlu0 %v1825, 12
  %v2017 = vpop.permute.xlu0 %2016
  %2018 = vrot.lane.b32.xlu0 %v1827, 12
  %v2019 = vpop.permute.xlu0 %2018
  %2020 = vrot.lane.b32.xlu0 %v1829, 12
  %v2021 = vpop.permute.xlu0 %2020
  %2022 = vrot.lane.b32.xlu0 %v1831, 12
  %v2023 = vpop.permute.xlu0 %2022
  %2024 = vrot.lane.b32.xlu0 %v1833, 12
  %v2025 = vpop.permute.xlu0 %2024
  %2026 = vrot.lane.b32.xlu0 %v1835, 12
  %v2027 = vpop.permute.xlu0 %2026
  %2028 = vrot.lane.b32.xlu0 %v1837, 12
  %v2029 = vpop.permute.xlu0 %2028
  %2030 = vrot.lane.b32.xlu0 %v1839, 12
  %v2031 = vpop.permute.xlu0 %2030
  %2032 = vrot.lane.b32.xlu0 %v1841, 12
  %v2033 = vpop.permute.xlu0 %2032
  %2034 = vrot.lane.b32.xlu0 %v1843, 12
  %v2035 = vpop.permute.xlu0 %2034
  %2036 = vrot.lane.b32.xlu0 %v1845, 12
  %v2037 = vpop.permute.xlu0 %2036
  %2038 = vrot.lane.b32.xlu0 %v1847, 12
  %v2039 = vpop.permute.xlu0 %2038
  %2040 = vrot.lane.b32.xlu0 %v1849, 12
  %v2041 = vpop.permute.xlu0 %2040
  %2042 = vrot.lane.b32.xlu0 %v1851, 12
  %v2043 = vpop.permute.xlu0 %2042
  %2044 = vrot.lane.b32.xlu0 %v1853, 12
  %v2045 = vpop.permute.xlu0 %2044
  %2046 = vrot.lane.b32.xlu0 %v1855, 12
  %v2047 = vpop.permute.xlu0 %2046
  %2048 = vrot.lane.b32.xlu0 %v1857, 12
  %v2049 = vpop.permute.xlu0 %2048
  %2050 = vrot.lane.b32.xlu0 %v1859, 12
  %v2051 = vpop.permute.xlu0 %2050
  %2052 = vrot.lane.b32.xlu0 %v1861, 12
  %v2053 = vpop.permute.xlu0 %2052
  %2054 = vrot.lane.b32.xlu0 %v1863, 12
  %v2055 = vpop.permute.xlu0 %2054
  %2056 = vrot.lane.b32.xlu0 %v1865, 12
  %v2057 = vpop.permute.xlu0 %2056
  %2058 = vrot.lane.b32.xlu0 %v1867, 12
  %v2059 = vpop.permute.xlu0 %2058
  %2060 = vrot.lane.b32.xlu0 %v1869, 12
  %v2061 = vpop.permute.xlu0 %2060
  %2062 = vrot.lane.b32.xlu0 %v1871, 12
  %v2063 = vpop.permute.xlu0 %2062
  %2064 = vrot.lane.b32.xlu0 %v1873, 12
  %v2065 = vpop.permute.xlu0 %2064
  %2066 = vrot.lane.b32.xlu0 %v1875, 12
  %v2067 = vpop.permute.xlu0 %2066
  %2068 = vrot.lane.b32.xlu0 %v1877, 12
  %v2069 = vpop.permute.xlu0 %2068
  %2070 = vrot.lane.b32.xlu0 %v1879, 12
  %v2071 = vpop.permute.xlu0 %2070
  %2072 = vrot.lane.b32.xlu0 %v1881, 12
  %v2073 = vpop.permute.xlu0 %2072
  %2074 = vrot.lane.b32.xlu0 %v1883, 12
  %v2075 = vpop.permute.xlu0 %2074
  %2076 = vrot.lane.b32.xlu0 %v1885, 12
  %v2077 = vpop.permute.xlu0 %2076
  %2078 = vrot.lane.b32.xlu0 %v1887, 12
  %v2079 = vpop.permute.xlu0 %2078
  %2080 = vrot.lane.b32.xlu0 %v1889, 12
  %v2081 = vpop.permute.xlu0 %2080
  %2082 = vrot.lane.b32.xlu0 %v1891, 12
  %v2083 = vpop.permute.xlu0 %2082
  %2084 = vrot.lane.b32.xlu0 %v1893, 12
  %v2085 = vpop.permute.xlu0 %2084
  %2086 = vrot.lane.b32.xlu0 %v1895, 12
  %v2087 = vpop.permute.xlu0 %2086
  %2088 = vrot.lane.b32.xlu0 %v1897, 12
  %v2089 = vpop.permute.xlu0 %2088
  %2090 = vrot.lane.b32.xlu0 %v1899, 12
  %v2091 = vpop.permute.xlu0 %2090
  %2092 = vrot.lane.b32.xlu0 %v1901, 12
  %v2093 = vpop.permute.xlu0 %2092
  %2094 = vrot.lane.b32.xlu0 %v1903, 12
  %v2095 = vpop.permute.xlu0 %2094
  %2096 = vrot.lane.b32.xlu0 %v1905, 12
  %v2097 = vpop.permute.xlu0 %2096
  %2098 = vrot.lane.b32.xlu0 %v1907, 12
  %v2099 = vpop.permute.xlu0 %2098
  %2100 = vrot.lane.b32.xlu0 %v1909, 12
  %v2101 = vpop.permute.xlu0 %2100
  %2102 = vrot.lane.b32.xlu0 %v1911, 12
  %v2103 = vpop.permute.xlu0 %2102
  %v2168 = vmul.f32 %v79, %v1977
  %v2169 = vmul.f32 %v80, %v1979
  %v2170 = vmul.f32 %v81, %v1981
  %v2171 = vmul.f32 %v82, %v1983
  %v2172 = vmul.f32 %v83, %v1985
  %v2173 = vmul.f32 %v84, %v1987
  %v2174 = vmul.f32 %v85, %v1989
  %v2175 = vmul.f32 %v86, %v1991
  %v2176 = vmul.f32 %v87, %v1993
  %v2177 = vmul.f32 %v88, %v1995
  %v2178 = vmul.f32 %v89, %v1997
  %v2179 = vmul.f32 %v90, %v1999
  %v2180 = vmul.f32 %v91, %v2001
  %v2181 = vmul.f32 %v92, %v2003
  %v2182 = vmul.f32 %v93, %v2005
  %v2183 = vmul.f32 %v94, %v2007
  %v2184 = vmul.f32 %v95, %v2009
  %v2185 = vmul.f32 %v96, %v2011
  %v2186 = vmul.f32 %v97, %v2013
  %v2187 = vmul.f32 %v98, %v2015
  %v2188 = vmul.f32 %v99, %v2017
  %v2189 = vmul.f32 %v100, %v2019
  %v2190 = vmul.f32 %v101, %v2021
  %v2191 = vmul.f32 %v102, %v2023
  %v2192 = vmul.f32 %v103, %v2025
  %v2193 = vmul.f32 %v104, %v2027
  %v2194 = vmul.f32 %v105, %v2029
  %v2195 = vmul.f32 %v106, %v2031
  %v2196 = vmul.f32 %v107, %v2033
  %v2197 = vmul.f32 %v108, %v2035
  %v2198 = vmul.f32 %v109, %v2037
  %v2199 = vmul.f32 %v110, %v2039
  %v2200 = vmul.f32 %v111, %v2041
  %v2201 = vmul.f32 %v112, %v2043
  %v2202 = vmul.f32 %v113, %v2045
  %v2203 = vmul.f32 %v114, %v2047
  %v2204 = vmul.f32 %v115, %v2049
  %v2205 = vmul.f32 %v116, %v2051
  %v2206 = vmul.f32 %v117, %v2053
  %v2207 = vmul.f32 %v118, %v2055
  %v2208 = vmul.f32 %v119, %v2057
  %v2209 = vmul.f32 %v120, %v2059
  %v2210 = vmul.f32 %v121, %v2061
  %v2211 = vmul.f32 %v122, %v2063
  %v2212 = vmul.f32 %v123, %v2065
  %v2213 = vmul.f32 %v124, %v2067
  %v2214 = vmul.f32 %v125, %v2069
  %v2215 = vmul.f32 %v126, %v2071
  %v2216 = vmul.f32 %v127, %v2073
  %v2217 = vmul.f32 %v128, %v2075
  %v2218 = vmul.f32 %v129, %v2077
  %v2219 = vmul.f32 %v130, %v2079
  %v2220 = vmul.f32 %v131, %v2081
  %v2221 = vmul.f32 %v132, %v2083
  %v2222 = vmul.f32 %v133, %v2085
  %v2223 = vmul.f32 %v134, %v2087
  %v2224 = vmul.f32 %v135, %v2089
  %v2225 = vmul.f32 %v136, %v2091
  %v2226 = vmul.f32 %v137, %v2093
  %v2227 = vmul.f32 %v138, %v2095
  %v2228 = vmul.f32 %v139, %v2097
  %v2229 = vmul.f32 %v140, %v2099
  %v2230 = vmul.f32 %v141, %v2101
  %v2231 = vmul.f32 %v142, %v2103
  %2296 = vrot.lane.b32.xlu0 %v2168, 112
  %v2297 = vpop.permute.xlu0 %2296
  %2298 = vrot.lane.b32.xlu0 %v2169, 112
  %v2299 = vpop.permute.xlu0 %2298
  %2300 = vrot.lane.b32.xlu0 %v2170, 112
  %v2301 = vpop.permute.xlu0 %2300
  %2302 = vrot.lane.b32.xlu0 %v2171, 112
  %v2303 = vpop.permute.xlu0 %2302
  %2304 = vrot.lane.b32.xlu0 %v2172, 112
  %v2305 = vpop.permute.xlu0 %2304
  %2306 = vrot.lane.b32.xlu0 %v2173, 112
  %v2307 = vpop.permute.xlu0 %2306
  %2308 = vrot.lane.b32.xlu0 %v2174, 112
  %v2309 = vpop.permute.xlu0 %2308
  %2310 = vrot.lane.b32.xlu0 %v2175, 112
  %v2311 = vpop.permute.xlu0 %2310
  %2312 = vrot.lane.b32.xlu0 %v2176, 112
  %v2313 = vpop.permute.xlu0 %2312
  %2314 = vrot.lane.b32.xlu0 %v2177, 112
  %v2315 = vpop.permute.xlu0 %2314
  %2316 = vrot.lane.b32.xlu0 %v2178, 112
  %v2317 = vpop.permute.xlu0 %2316
  %2318 = vrot.lane.b32.xlu0 %v2179, 112
  %v2319 = vpop.permute.xlu0 %2318
  %2320 = vrot.lane.b32.xlu0 %v2180, 112
  %v2321 = vpop.permute.xlu0 %2320
  %2322 = vrot.lane.b32.xlu0 %v2181, 112
  %v2323 = vpop.permute.xlu0 %2322
  %2324 = vrot.lane.b32.xlu0 %v2182, 112
  %v2325 = vpop.permute.xlu0 %2324
  %2326 = vrot.lane.b32.xlu0 %v2183, 112
  %v2327 = vpop.permute.xlu0 %2326
  %2328 = vrot.lane.b32.xlu0 %v2184, 112
  %v2329 = vpop.permute.xlu0 %2328
  %2330 = vrot.lane.b32.xlu0 %v2185, 112
  %v2331 = vpop.permute.xlu0 %2330
  %2332 = vrot.lane.b32.xlu0 %v2186, 112
  %v2333 = vpop.permute.xlu0 %2332
  %2334 = vrot.lane.b32.xlu0 %v2187, 112
  %v2335 = vpop.permute.xlu0 %2334
  %2336 = vrot.lane.b32.xlu0 %v2188, 112
  %v2337 = vpop.permute.xlu0 %2336
  %2338 = vrot.lane.b32.xlu0 %v2189, 112
  %v2339 = vpop.permute.xlu0 %2338
  %2340 = vrot.lane.b32.xlu0 %v2190, 112
  %v2341 = vpop.permute.xlu0 %2340
  %2342 = vrot.lane.b32.xlu0 %v2191, 112
  %v2343 = vpop.permute.xlu0 %2342
  %2344 = vrot.lane.b32.xlu0 %v2192, 112
  %v2345 = vpop.permute.xlu0 %2344
  %2346 = vrot.lane.b32.xlu0 %v2193, 112
  %v2347 = vpop.permute.xlu0 %2346
  %2348 = vrot.lane.b32.xlu0 %v2194, 112
  %v2349 = vpop.permute.xlu0 %2348
  %2350 = vrot.lane.b32.xlu0 %v2195, 112
  %v2351 = vpop.permute.xlu0 %2350
  %2352 = vrot.lane.b32.xlu0 %v2196, 112
  %v2353 = vpop.permute.xlu0 %2352
  %2354 = vrot.lane.b32.xlu0 %v2197, 112
  %v2355 = vpop.permute.xlu0 %2354
  %2356 = vrot.lane.b32.xlu0 %v2198, 112
  %v2357 = vpop.permute.xlu0 %2356
  %2358 = vrot.lane.b32.xlu0 %v2199, 112
  %v2359 = vpop.permute.xlu0 %2358
  %2360 = vrot.lane.b32.xlu0 %v2200, 112
  %v2361 = vpop.permute.xlu0 %2360
  %2362 = vrot.lane.b32.xlu0 %v2201, 112
  %v2363 = vpop.permute.xlu0 %2362
  %2364 = vrot.lane.b32.xlu0 %v2202, 112
  %v2365 = vpop.permute.xlu0 %2364
  %2366 = vrot.lane.b32.xlu0 %v2203, 112
  %v2367 = vpop.permute.xlu0 %2366
  %2368 = vrot.lane.b32.xlu0 %v2204, 112
  %v2369 = vpop.permute.xlu0 %2368
  %2370 = vrot.lane.b32.xlu0 %v2205, 112
  %v2371 = vpop.permute.xlu0 %2370
  %2372 = vrot.lane.b32.xlu0 %v2206, 112
  %v2373 = vpop.permute.xlu0 %2372
  %2374 = vrot.lane.b32.xlu0 %v2207, 112
  %v2375 = vpop.permute.xlu0 %2374
  %2376 = vrot.lane.b32.xlu0 %v2208, 112
  %v2377 = vpop.permute.xlu0 %2376
  %2378 = vrot.lane.b32.xlu0 %v2209, 112
  %v2379 = vpop.permute.xlu0 %2378
  %2380 = vrot.lane.b32.xlu0 %v2210, 112
  %v2381 = vpop.permute.xlu0 %2380
  %2382 = vrot.lane.b32.xlu0 %v2211, 112
  %v2383 = vpop.permute.xlu0 %2382
  %2384 = vrot.lane.b32.xlu0 %v2212, 112
  %v2385 = vpop.permute.xlu0 %2384
  %2386 = vrot.lane.b32.xlu0 %v2213, 112
  %v2387 = vpop.permute.xlu0 %2386
  %2388 = vrot.lane.b32.xlu0 %v2214, 112
  %v2389 = vpop.permute.xlu0 %2388
  %2390 = vrot.lane.b32.xlu0 %v2215, 112
  %v2391 = vpop.permute.xlu0 %2390
  %2392 = vrot.lane.b32.xlu0 %v2216, 112
  %v2393 = vpop.permute.xlu0 %2392
  %2394 = vrot.lane.b32.xlu0 %v2217, 112
  %v2395 = vpop.permute.xlu0 %2394
  %2396 = vrot.lane.b32.xlu0 %v2218, 112
  %v2397 = vpop.permute.xlu0 %2396
  %2398 = vrot.lane.b32.xlu0 %v2219, 112
  %v2399 = vpop.permute.xlu0 %2398
  %2400 = vrot.lane.b32.xlu0 %v2220, 112
  %v2401 = vpop.permute.xlu0 %2400
  %2402 = vrot.lane.b32.xlu0 %v2221, 112
  %v2403 = vpop.permute.xlu0 %2402
  %2404 = vrot.lane.b32.xlu0 %v2222, 112
  %v2405 = vpop.permute.xlu0 %2404
  %2406 = vrot.lane.b32.xlu0 %v2223, 112
  %v2407 = vpop.permute.xlu0 %2406
  %2408 = vrot.lane.b32.xlu0 %v2224, 112
  %v2409 = vpop.permute.xlu0 %2408
  %2410 = vrot.lane.b32.xlu0 %v2225, 112
  %v2411 = vpop.permute.xlu0 %2410
  %2412 = vrot.lane.b32.xlu0 %v2226, 112
  %v2413 = vpop.permute.xlu0 %2412
  %2414 = vrot.lane.b32.xlu0 %v2227, 112
  %v2415 = vpop.permute.xlu0 %2414
  %2416 = vrot.lane.b32.xlu0 %v2228, 112
  %v2417 = vpop.permute.xlu0 %2416
  %2418 = vrot.lane.b32.xlu0 %v2229, 112
  %v2419 = vpop.permute.xlu0 %2418
  %2420 = vrot.lane.b32.xlu0 %v2230, 112
  %v2421 = vpop.permute.xlu0 %2420
  %2422 = vrot.lane.b32.xlu0 %v2231, 112
  %v2423 = vpop.permute.xlu0 %2422
  %v2488 = vadd.f32 %v1466, %v2297
  %v2489 = vadd.f32 %v1469, %v2299
  %v2490 = vadd.f32 %v1474, %v2301
  %v2491 = vadd.f32 %v1477, %v2303
  %v2492 = vadd.f32 %v1482, %v2305
  %v2493 = vadd.f32 %v1485, %v2307
  %v2494 = vadd.f32 %v1490, %v2309
  %v2495 = vadd.f32 %v1493, %v2311
  %v2496 = vadd.f32 %v1498, %v2313
  %v2497 = vadd.f32 %v1501, %v2315
  %v2498 = vadd.f32 %v1506, %v2317
  %v2499 = vadd.f32 %v1509, %v2319
  %v2500 = vadd.f32 %v1514, %v2321
  %v2501 = vadd.f32 %v1517, %v2323
  %v2502 = vadd.f32 %v1522, %v2325
  %v2503 = vadd.f32 %v1525, %v2327
  %v2504 = vadd.f32 %v1530, %v2329
  %v2505 = vadd.f32 %v1533, %v2331
  %v2506 = vadd.f32 %v1538, %v2333
  %v2507 = vadd.f32 %v1541, %v2335
  %v2508 = vadd.f32 %v1546, %v2337
  %v2509 = vadd.f32 %v1549, %v2339
  %v2510 = vadd.f32 %v1554, %v2341
  %v2511 = vadd.f32 %v1557, %v2343
  %v2512 = vadd.f32 %v1562, %v2345
  %v2513 = vadd.f32 %v1565, %v2347
  %v2514 = vadd.f32 %v1570, %v2349
  %v2515 = vadd.f32 %v1573, %v2351
  %v2516 = vadd.f32 %v1578, %v2353
  %v2517 = vadd.f32 %v1581, %v2355
  %v2518 = vadd.f32 %v1586, %v2357
  %v2519 = vadd.f32 %v1589, %v2359
  %v2520 = vadd.f32 %v1594, %v2361
  %v2521 = vadd.f32 %v1597, %v2363
  %v2522 = vadd.f32 %v1602, %v2365
  %v2523 = vadd.f32 %v1605, %v2367
  %v2524 = vadd.f32 %v1610, %v2369
  %v2525 = vadd.f32 %v1613, %v2371
  %v2526 = vadd.f32 %v1618, %v2373
  %v2527 = vadd.f32 %v1621, %v2375
  %v2528 = vadd.f32 %v1626, %v2377
  %v2529 = vadd.f32 %v1629, %v2379
  %v2530 = vadd.f32 %v1634, %v2381
  %v2531 = vadd.f32 %v1637, %v2383
  %v2532 = vadd.f32 %v1642, %v2385
  %v2533 = vadd.f32 %v1645, %v2387
  %v2534 = vadd.f32 %v1650, %v2389
  %v2535 = vadd.f32 %v1653, %v2391
  %v2536 = vadd.f32 %v1658, %v2393
  %v2537 = vadd.f32 %v1661, %v2395
  %v2538 = vadd.f32 %v1666, %v2397
  %v2539 = vadd.f32 %v1669, %v2399
  %v2540 = vadd.f32 %v1674, %v2401
  %v2541 = vadd.f32 %v1677, %v2403
  %v2542 = vadd.f32 %v1682, %v2405
  %v2543 = vadd.f32 %v1685, %v2407
  %v2544 = vadd.f32 %v1690, %v2409
  %v2545 = vadd.f32 %v1693, %v2411
  %v2546 = vadd.f32 %v1698, %v2413
  %v2547 = vadd.f32 %v1701, %v2415
  %v2548 = vadd.f32 %v1706, %v2417
  %v2549 = vadd.f32 %v1709, %v2419
  %v2550 = vadd.f32 %v1714, %v2421
  %v2551 = vadd.f32 %v1717, %v2423
  %v2552 = vpack.c.bf16 %v2489, %v2488
  %v2553 = vpack.c.bf16 %v2491, %v2490
  %v2554 = vpack.c.bf16 %v2493, %v2492
  %v2555 = vpack.c.bf16 %v2495, %v2494
  %v2556 = vpack.c.bf16 %v2497, %v2496
  %v2557 = vpack.c.bf16 %v2499, %v2498
  %v2558 = vpack.c.bf16 %v2501, %v2500
  %v2559 = vpack.c.bf16 %v2503, %v2502
  %v2560 = vpack.c.bf16 %v2505, %v2504
  %v2561 = vpack.c.bf16 %v2507, %v2506
  %v2562 = vpack.c.bf16 %v2509, %v2508
  %v2563 = vpack.c.bf16 %v2511, %v2510
  %v2564 = vpack.c.bf16 %v2513, %v2512
  %v2565 = vpack.c.bf16 %v2515, %v2514
  %v2566 = vpack.c.bf16 %v2517, %v2516
  %v2567 = vpack.c.bf16 %v2519, %v2518
  %v2568 = vpack.c.bf16 %v2521, %v2520
  %v2569 = vpack.c.bf16 %v2523, %v2522
  %v2570 = vpack.c.bf16 %v2525, %v2524
  %v2571 = vpack.c.bf16 %v2527, %v2526
  %v2572 = vpack.c.bf16 %v2529, %v2528
  %v2573 = vpack.c.bf16 %v2531, %v2530
  %v2574 = vpack.c.bf16 %v2533, %v2532
  %v2575 = vpack.c.bf16 %v2535, %v2534
  %v2576 = vpack.c.bf16 %v2537, %v2536
  %v2577 = vpack.c.bf16 %v2539, %v2538
  %v2578 = vpack.c.bf16 %v2541, %v2540
  %v2579 = vpack.c.bf16 %v2543, %v2542
  %v2580 = vpack.c.bf16 %v2545, %v2544
  %v2581 = vpack.c.bf16 %v2547, %v2546
  %v2582 = vpack.c.bf16 %v2549, %v2548
  %v2583 = vpack.c.bf16 %v2551, %v2550
  %2584 = vrot.lane.b32.xlu0 %v301, 124
  %v2585 = vpop.permute.xlu0 %2584
  %2586 = vrot.lane.b32.xlu0 %v302, 124
  %v2587 = vpop.permute.xlu0 %2586
  %2588 = vrot.lane.b32.xlu0 %v303, 124
  %v2589 = vpop.permute.xlu0 %2588
  %2590 = vrot.lane.b32.xlu0 %v304, 124
  %v2591 = vpop.permute.xlu0 %2590
  %2592 = vrot.lane.b32.xlu0 %v305, 124
  %v2593 = vpop.permute.xlu0 %2592
  %2594 = vrot.lane.b32.xlu0 %v306, 124
  %v2595 = vpop.permute.xlu0 %2594
  %2596 = vrot.lane.b32.xlu0 %v307, 124
  %v2597 = vpop.permute.xlu0 %2596
  %2598 = vrot.lane.b32.xlu0 %v308, 124
  %v2599 = vpop.permute.xlu0 %2598
  %2600 = vrot.lane.b32.xlu0 %v309, 124
  %v2601 = vpop.permute.xlu0 %2600
  %2602 = vrot.lane.b32.xlu0 %v310, 124
  %v2603 = vpop.permute.xlu0 %2602
  %2604 = vrot.lane.b32.xlu0 %v311, 124
  %v2605 = vpop.permute.xlu0 %2604
  %2606 = vrot.lane.b32.xlu0 %v312, 124
  %v2607 = vpop.permute.xlu0 %2606
  %2608 = vrot.lane.b32.xlu0 %v313, 124
  %v2609 = vpop.permute.xlu0 %2608
  %2610 = vrot.lane.b32.xlu0 %v314, 124
  %v2611 = vpop.permute.xlu0 %2610
  %2612 = vrot.lane.b32.xlu0 %v315, 124
  %v2613 = vpop.permute.xlu0 %2612
  %2614 = vrot.lane.b32.xlu0 %v316, 124
  %v2615 = vpop.permute.xlu0 %2614
  %2616 = vrot.lane.b32.xlu0 %v317, 124
  %v2617 = vpop.permute.xlu0 %2616
  %2618 = vrot.lane.b32.xlu0 %v318, 124
  %v2619 = vpop.permute.xlu0 %2618
  %2620 = vrot.lane.b32.xlu0 %v319, 124
  %v2621 = vpop.permute.xlu0 %2620
  %2622 = vrot.lane.b32.xlu0 %v320, 124
  %v2623 = vpop.permute.xlu0 %2622
  %2624 = vrot.lane.b32.xlu0 %v321, 124
  %v2625 = vpop.permute.xlu0 %2624
  %2626 = vrot.lane.b32.xlu0 %v322, 124
  %v2627 = vpop.permute.xlu0 %2626
  %2628 = vrot.lane.b32.xlu0 %v323, 124
  %v2629 = vpop.permute.xlu0 %2628
  %2630 = vrot.lane.b32.xlu0 %v324, 124
  %v2631 = vpop.permute.xlu0 %2630
  %2632 = vrot.lane.b32.xlu0 %v325, 124
  %v2633 = vpop.permute.xlu0 %2632
  %2634 = vrot.lane.b32.xlu0 %v326, 124
  %v2635 = vpop.permute.xlu0 %2634
  %2636 = vrot.lane.b32.xlu0 %v327, 124
  %v2637 = vpop.permute.xlu0 %2636
  %2638 = vrot.lane.b32.xlu0 %v328, 124
  %v2639 = vpop.permute.xlu0 %2638
  %2640 = vrot.lane.b32.xlu0 %v329, 124
  %v2641 = vpop.permute.xlu0 %2640
  %2642 = vrot.lane.b32.xlu0 %v330, 124
  %v2643 = vpop.permute.xlu0 %2642
  %2644 = vrot.lane.b32.xlu0 %v331, 124
  %v2645 = vpop.permute.xlu0 %2644
  %2646 = vrot.lane.b32.xlu0 %v332, 124
  %v2647 = vpop.permute.xlu0 %2646
  %vm2648 = vcmask 31744
  %v2651 = vsel %vm2648, %v2552, %v2585
  %v2654 = vsel %vm2648, %v2553, %v2587
  %v2657 = vsel %vm2648, %v2554, %v2589
  %v2660 = vsel %vm2648, %v2555, %v2591
  %v2663 = vsel %vm2648, %v2556, %v2593
  %v2666 = vsel %vm2648, %v2557, %v2595
  %v2669 = vsel %vm2648, %v2558, %v2597
  %v2672 = vsel %vm2648, %v2559, %v2599
  %v2675 = vsel %vm2648, %v2560, %v2601
  %v2678 = vsel %vm2648, %v2561, %v2603
  %v2681 = vsel %vm2648, %v2562, %v2605
  %v2684 = vsel %vm2648, %v2563, %v2607
  %v2687 = vsel %vm2648, %v2564, %v2609
  %v2690 = vsel %vm2648, %v2565, %v2611
  %v2693 = vsel %vm2648, %v2566, %v2613
  %v2696 = vsel %vm2648, %v2567, %v2615
  %v2699 = vsel %vm2648, %v2568, %v2617
  %v2702 = vsel %vm2648, %v2569, %v2619
  %v2705 = vsel %vm2648, %v2570, %v2621
  %v2708 = vsel %vm2648, %v2571, %v2623
  %v2711 = vsel %vm2648, %v2572, %v2625
  %v2714 = vsel %vm2648, %v2573, %v2627
  %v2717 = vsel %vm2648, %v2574, %v2629
  %v2720 = vsel %vm2648, %v2575, %v2631
  %v2723 = vsel %vm2648, %v2576, %v2633
  %v2726 = vsel %vm2648, %v2577, %v2635
  %v2729 = vsel %vm2648, %v2578, %v2637
  %v2732 = vsel %vm2648, %v2579, %v2639
  %v2735 = vsel %vm2648, %v2580, %v2641
  %v2738 = vsel %vm2648, %v2581, %v2643
  %v2741 = vsel %vm2648, %v2582, %v2645
  %v2744 = vsel %vm2648, %v2583, %v2647
  %v2745 = vlaneseq
  %v2746 = vshrl.u32 %v2745, 7
  %v2747 = vsub.s32 0, %v2746
  %v2748 = vrot.slane %v166, %v2747
  %v2751 = vunpack.c.l.b16 %v153
  %v2752 = vunpack.c.l.b16 %v154
  %v2753 = vpack.c.b16 %v2752, %v2751
  %vm2754 = vcmask 97280
  %v2755 = vsel %vm2754, %v2651, 0
  %v2757 = vsel %vm2754, %v2654, 0
  %v2759 = vsel %vm2754, %v2657, 0
  %v2761 = vsel %vm2754, %v2660, 0
  %v2763 = vsel %vm2754, %v2663, 0
  %v2765 = vsel %vm2754, %v2666, 0
  %v2767 = vsel %vm2754, %v2669, 0
  %v2769 = vsel %vm2754, %v2672, 0
  %v2771 = vsel %vm2754, %v2675, 0
  %v2773 = vsel %vm2754, %v2678, 0
  %v2775 = vsel %vm2754, %v2681, 0
  %v2777 = vsel %vm2754, %v2684, 0
  %v2779 = vsel %vm2754, %v2687, 0
  %v2781 = vsel %vm2754, %v2690, 0
  %v2783 = vsel %vm2754, %v2693, 0
  %v2785 = vsel %vm2754, %v2696, 0
  %v2787 = vsel %vm2754, %v2699, 0
  %v2789 = vsel %vm2754, %v2702, 0
  %v2791 = vsel %vm2754, %v2705, 0
  %v2793 = vsel %vm2754, %v2708, 0
  %v2795 = vsel %vm2754, %v2711, 0
  %v2797 = vsel %vm2754, %v2714, 0
  %v2799 = vsel %vm2754, %v2717, 0
  %v2801 = vsel %vm2754, %v2720, 0
  %v2803 = vsel %vm2754, %v2723, 0
  %v2805 = vsel %vm2754, %v2726, 0
  %v2807 = vsel %vm2754, %v2729, 0
  %v2809 = vsel %vm2754, %v2732, 0
  %v2811 = vsel %vm2754, %v2735, 0
  %v2813 = vsel %vm2754, %v2738, 0
  %v2815 = vsel %vm2754, %v2741, 0
  %v2817 = vsel %vm2754, %v2744, 0
  %vm2819 = vcmask 1045504
  %v2821 = vsel %vm2819, %v2753, 0
  %2823 = vmatprep.subr.bf16.mxu0 0
  %2824 = vmatpush1.bf16.msra.mxu0 0
  %2825 = vmatprep.subr.bf16.mxu0 0
  %2826 = vmatpush1.bf16.msra.mxu0 0
  %2827 = vmatprep.subr.bf16.mxu0 0
  %2828 = vmatpush1.bf16.msra.mxu0 0
  %2829 = vmatprep.subr.bf16.mxu0 0
  %2830 = vmatpush1.bf16.msra.mxu0 0
  %2831 = vmatprep.subr.bf16.mxu0 0
  %2832 = vmatpush1.bf16.msra.mxu0 0
  %2833 = vmatprep.subr.bf16.mxu0 0
  %2834 = vmatpush1.bf16.msra.mxu0 0
  %2835 = vmatprep.subr.bf16.mxu0 0
  %2836 = vmatpush1.bf16.msra.mxu0 0
  %2837 = vmatprep.subr.bf16.mxu0 0
  %2838 = vmatpush1.bf16.msra.mxu0 %v2821
  %2839 = vmatprep.subr.bf16.mxu0 0
  %2840 = vmatpush2.bf16.msra.mxu0 0
  %2841 = vmatprep.subr.bf16.mxu0 0
  %2842 = vmatpush2.bf16.msra.mxu0 0
  %2843 = vmatprep.subr.bf16.mxu0 0
  %2844 = vmatpush2.bf16.msra.mxu0 0
  %2845 = vmatprep.subr.bf16.mxu0 0
  %2846 = vmatpush2.bf16.msra.mxu0 0
  %2847 = vmatprep.subr.bf16.mxu0 0
  %2848 = vmatpush2.bf16.msra.mxu0 0
  %2849 = vmatprep.subr.bf16.mxu0 0
  %2850 = vmatpush2.bf16.msra.mxu0 0
  %2851 = vmatprep.subr.bf16.mxu0 0
  %2852 = vmatpush2.bf16.msra.mxu0 0
  %2853 = vmatprep.subr.bf16.mxu0 0
  %2854 = vmatpush2.bf16.msra.mxu0 0
  %2855 = vmatprep.mubr.bf16.mxu0 0
  %2856 = vmatmul.mubr.bf16.gmra.mxu0 %v2755
  %v2857 = vpop.f32.mrf.mxu0
  %v2858 = vadd.f32 %v2748, %v2857
  %v2859 = vpop.f32.mrf.mxu0
  %v2860 = vpop.f32.mrf.mxu0
  %v2861 = vadd.f32 %v2748, %v2860
  %v2862 = vpop.f32.mrf.mxu0
  %2863 = vmatprep.mubr.bf16.mxu0 0
  %2864 = vmatmul.mubr.bf16.gmra.mxu0 %v2757
  %v2865 = vpop.f32.mrf.mxu0
  %v2866 = vadd.f32 %v2748, %v2865
  %v2867 = vpop.f32.mrf.mxu0
  %v2868 = vpop.f32.mrf.mxu0
  %v2869 = vadd.f32 %v2748, %v2868
  %v2870 = vpop.f32.mrf.mxu0
  %2871 = vmatprep.mubr.bf16.mxu0 0
  %2872 = vmatmul.mubr.bf16.gmra.mxu0 %v2759
  %v2873 = vpop.f32.mrf.mxu0
  %v2874 = vadd.f32 %v2748, %v2873
  %v2875 = vpop.f32.mrf.mxu0
  %v2876 = vpop.f32.mrf.mxu0
  %v2877 = vadd.f32 %v2748, %v2876
  %v2878 = vpop.f32.mrf.mxu0
  %2879 = vmatprep.mubr.bf16.mxu0 0
  %2880 = vmatmul.mubr.bf16.gmra.mxu0 %v2761
  %v2881 = vpop.f32.mrf.mxu0
  %v2882 = vadd.f32 %v2748, %v2881
  %v2883 = vpop.f32.mrf.mxu0
  %v2884 = vpop.f32.mrf.mxu0
  %v2885 = vadd.f32 %v2748, %v2884
  %v2886 = vpop.f32.mrf.mxu0
  %2887 = vmatprep.mubr.bf16.mxu0 0
  %2888 = vmatmul.mubr.bf16.gmra.mxu0 %v2763
  %v2889 = vpop.f32.mrf.mxu0
  %v2890 = vadd.f32 %v2748, %v2889
  %v2891 = vpop.f32.mrf.mxu0
  %v2892 = vpop.f32.mrf.mxu0
  %v2893 = vadd.f32 %v2748, %v2892
  %v2894 = vpop.f32.mrf.mxu0
  %2895 = vmatprep.mubr.bf16.mxu0 0
  %2896 = vmatmul.mubr.bf16.gmra.mxu0 %v2765
  %v2897 = vpop.f32.mrf.mxu0
  %v2898 = vadd.f32 %v2748, %v2897
  %v2899 = vpop.f32.mrf.mxu0
  %v2900 = vpop.f32.mrf.mxu0
  %v2901 = vadd.f32 %v2748, %v2900
  %v2902 = vpop.f32.mrf.mxu0
  %2903 = vmatprep.mubr.bf16.mxu0 0
  %2904 = vmatmul.mubr.bf16.gmra.mxu0 %v2767
  %v2905 = vpop.f32.mrf.mxu0
  %v2906 = vadd.f32 %v2748, %v2905
  %v2907 = vpop.f32.mrf.mxu0
  %v2908 = vpop.f32.mrf.mxu0
  %v2909 = vadd.f32 %v2748, %v2908
  %v2910 = vpop.f32.mrf.mxu0
  %2911 = vmatprep.mubr.bf16.mxu0 0
  %2912 = vmatmul.mubr.bf16.gmra.mxu0 %v2769
  %v2913 = vpop.f32.mrf.mxu0
  %v2914 = vadd.f32 %v2748, %v2913
  %v2915 = vpop.f32.mrf.mxu0
  %v2916 = vpop.f32.mrf.mxu0
  %v2917 = vadd.f32 %v2748, %v2916
  %v2918 = vpop.f32.mrf.mxu0
  %2919 = vmatprep.mubr.bf16.mxu0 0
  %2920 = vmatmul.mubr.bf16.gmra.mxu0 %v2771
  %v2921 = vpop.f32.mrf.mxu0
  %v2922 = vadd.f32 %v2748, %v2921
  %v2923 = vpop.f32.mrf.mxu0
  %v2924 = vpop.f32.mrf.mxu0
  %v2925 = vadd.f32 %v2748, %v2924
  %v2926 = vpop.f32.mrf.mxu0
  %2927 = vmatprep.mubr.bf16.mxu0 0
  %2928 = vmatmul.mubr.bf16.gmra.mxu0 %v2773
  %v2929 = vpop.f32.mrf.mxu0
  %v2930 = vadd.f32 %v2748, %v2929
  %v2931 = vpop.f32.mrf.mxu0
  %v2932 = vpop.f32.mrf.mxu0
  %v2933 = vadd.f32 %v2748, %v2932
  %v2934 = vpop.f32.mrf.mxu0
  %2935 = vmatprep.mubr.bf16.mxu0 0
  %2936 = vmatmul.mubr.bf16.gmra.mxu0 %v2775
  %v2937 = vpop.f32.mrf.mxu0
  %v2938 = vadd.f32 %v2748, %v2937
  %v2939 = vpop.f32.mrf.mxu0
  %v2940 = vpop.f32.mrf.mxu0
  %v2941 = vadd.f32 %v2748, %v2940
  %v2942 = vpop.f32.mrf.mxu0
  %2943 = vmatprep.mubr.bf16.mxu0 0
  %2944 = vmatmul.mubr.bf16.gmra.mxu0 %v2777
  %v2945 = vpop.f32.mrf.mxu0
  %v2946 = vadd.f32 %v2748, %v2945
  %v2947 = vpop.f32.mrf.mxu0
  %v2948 = vpop.f32.mrf.mxu0
  %v2949 = vadd.f32 %v2748, %v2948
  %v2950 = vpop.f32.mrf.mxu0
  %2951 = vmatprep.mubr.bf16.mxu0 0
  %2952 = vmatmul.mubr.bf16.gmra.mxu0 %v2779
  %v2953 = vpop.f32.mrf.mxu0
  %v2954 = vadd.f32 %v2748, %v2953
  %v2955 = vpop.f32.mrf.mxu0
  %v2956 = vpop.f32.mrf.mxu0
  %v2957 = vadd.f32 %v2748, %v2956
  %v2958 = vpop.f32.mrf.mxu0
  %2959 = vmatprep.mubr.bf16.mxu0 0
  %2960 = vmatmul.mubr.bf16.gmra.mxu0 %v2781
  %v2961 = vpop.f32.mrf.mxu0
  %v2962 = vadd.f32 %v2748, %v2961
  %v2963 = vpop.f32.mrf.mxu0
  %v2964 = vpop.f32.mrf.mxu0
  %v2965 = vadd.f32 %v2748, %v2964
  %v2966 = vpop.f32.mrf.mxu0
  %2967 = vmatprep.mubr.bf16.mxu0 0
  %2968 = vmatmul.mubr.bf16.gmra.mxu0 %v2783
  %v2969 = vpop.f32.mrf.mxu0
  %v2970 = vadd.f32 %v2748, %v2969
  %v2971 = vpop.f32.mrf.mxu0
  %v2972 = vpop.f32.mrf.mxu0
  %v2973 = vadd.f32 %v2748, %v2972
  %v2974 = vpop.f32.mrf.mxu0
  %2975 = vmatprep.mubr.bf16.mxu0 0
  %2976 = vmatmul.mubr.bf16.gmra.mxu0 %v2785
  %v2977 = vpop.f32.mrf.mxu0
  %v2978 = vadd.f32 %v2748, %v2977
  %v2979 = vpop.f32.mrf.mxu0
  %v2980 = vpop.f32.mrf.mxu0
  %v2981 = vadd.f32 %v2748, %v2980
  %v2982 = vpop.f32.mrf.mxu0
  %2983 = vmatprep.mubr.bf16.mxu0 0
  %2984 = vmatmul.mubr.bf16.gmra.mxu0 %v2787
  %v2985 = vpop.f32.mrf.mxu0
  %v2986 = vadd.f32 %v2748, %v2985
  %v2987 = vpop.f32.mrf.mxu0
  %v2988 = vpop.f32.mrf.mxu0
  %v2989 = vadd.f32 %v2748, %v2988
  %v2990 = vpop.f32.mrf.mxu0
  %2991 = vmatprep.mubr.bf16.mxu0 0
  %2992 = vmatmul.mubr.bf16.gmra.mxu0 %v2789
  %v2993 = vpop.f32.mrf.mxu0
  %v2994 = vadd.f32 %v2748, %v2993
  %v2995 = vpop.f32.mrf.mxu0
  %v2996 = vpop.f32.mrf.mxu0
  %v2997 = vadd.f32 %v2748, %v2996
  %v2998 = vpop.f32.mrf.mxu0
  %2999 = vmatprep.mubr.bf16.mxu0 0
  %3000 = vmatmul.mubr.bf16.gmra.mxu0 %v2791
  %v3001 = vpop.f32.mrf.mxu0
  %v3002 = vadd.f32 %v2748, %v3001
  %v3003 = vpop.f32.mrf.mxu0
  %v3004 = vpop.f32.mrf.mxu0
  %v3005 = vadd.f32 %v2748, %v3004
  %v3006 = vpop.f32.mrf.mxu0
  %3007 = vmatprep.mubr.bf16.mxu0 0
  %3008 = vmatmul.mubr.bf16.gmra.mxu0 %v2793
  %v3009 = vpop.f32.mrf.mxu0
  %v3010 = vadd.f32 %v2748, %v3009
  %v3011 = vpop.f32.mrf.mxu0
  %v3012 = vpop.f32.mrf.mxu0
  %v3013 = vadd.f32 %v2748, %v3012
  %v3014 = vpop.f32.mrf.mxu0
  %3015 = vmatprep.mubr.bf16.mxu0 0
  %3016 = vmatmul.mubr.bf16.gmra.mxu0 %v2795
  %v3017 = vpop.f32.mrf.mxu0
  %v3018 = vadd.f32 %v2748, %v3017
  %v3019 = vpop.f32.mrf.mxu0
  %v3020 = vpop.f32.mrf.mxu0
  %v3021 = vadd.f32 %v2748, %v3020
  %v3022 = vpop.f32.mrf.mxu0
  %3023 = vmatprep.mubr.bf16.mxu0 0
  %3024 = vmatmul.mubr.bf16.gmra.mxu0 %v2797
  %v3025 = vpop.f32.mrf.mxu0
  %v3026 = vadd.f32 %v2748, %v3025
  %v3027 = vpop.f32.mrf.mxu0
  %v3028 = vpop.f32.mrf.mxu0
  %v3029 = vadd.f32 %v2748, %v3028
  %v3030 = vpop.f32.mrf.mxu0
  %3031 = vmatprep.mubr.bf16.mxu0 0
  %3032 = vmatmul.mubr.bf16.gmra.mxu0 %v2799
  %v3033 = vpop.f32.mrf.mxu0
  %v3034 = vadd.f32 %v2748, %v3033
  %v3035 = vpop.f32.mrf.mxu0
  %v3036 = vpop.f32.mrf.mxu0
  %v3037 = vadd.f32 %v2748, %v3036
  %v3038 = vpop.f32.mrf.mxu0
  %3039 = vmatprep.mubr.bf16.mxu0 0
  %3040 = vmatmul.mubr.bf16.gmra.mxu0 %v2801
  %v3041 = vpop.f32.mrf.mxu0
  %v3042 = vadd.f32 %v2748, %v3041
  %v3043 = vpop.f32.mrf.mxu0
  %v3044 = vpop.f32.mrf.mxu0
  %v3045 = vadd.f32 %v2748, %v3044
  %v3046 = vpop.f32.mrf.mxu0
  %3047 = vmatprep.mubr.bf16.mxu0 0
  %3048 = vmatmul.mubr.bf16.gmra.mxu0 %v2803
  %v3049 = vpop.f32.mrf.mxu0
  %v3050 = vadd.f32 %v2748, %v3049
  %v3051 = vpop.f32.mrf.mxu0
  %v3052 = vpop.f32.mrf.mxu0
  %v3053 = vadd.f32 %v2748, %v3052
  %v3054 = vpop.f32.mrf.mxu0
  %3055 = vmatprep.mubr.bf16.mxu0 0
  %3056 = vmatmul.mubr.bf16.gmra.mxu0 %v2805
  %v3057 = vpop.f32.mrf.mxu0
  %v3058 = vadd.f32 %v2748, %v3057
  %v3059 = vpop.f32.mrf.mxu0
  %v3060 = vpop.f32.mrf.mxu0
  %v3061 = vadd.f32 %v2748, %v3060
  %v3062 = vpop.f32.mrf.mxu0
  %3063 = vmatprep.mubr.bf16.mxu0 0
  %3064 = vmatmul.mubr.bf16.gmra.mxu0 %v2807
  %v3065 = vpop.f32.mrf.mxu0
  %v3066 = vadd.f32 %v2748, %v3065
  %v3067 = vpop.f32.mrf.mxu0
  %v3068 = vpop.f32.mrf.mxu0
  %v3069 = vadd.f32 %v2748, %v3068
  %v3070 = vpop.f32.mrf.mxu0
  %3071 = vmatprep.mubr.bf16.mxu0 0
  %3072 = vmatmul.mubr.bf16.gmra.mxu0 %v2809
  %v3073 = vpop.f32.mrf.mxu0
  %v3074 = vadd.f32 %v2748, %v3073
  %v3075 = vpop.f32.mrf.mxu0
  %v3076 = vpop.f32.mrf.mxu0
  %v3077 = vadd.f32 %v2748, %v3076
  %v3078 = vpop.f32.mrf.mxu0
  %3079 = vmatprep.mubr.bf16.mxu0 0
  %3080 = vmatmul.mubr.bf16.gmra.mxu0 %v2811
  %v3081 = vpop.f32.mrf.mxu0
  %v3082 = vadd.f32 %v2748, %v3081
  %v3083 = vpop.f32.mrf.mxu0
  %v3084 = vpop.f32.mrf.mxu0
  %v3085 = vadd.f32 %v2748, %v3084
  %v3086 = vpop.f32.mrf.mxu0
  %3087 = vmatprep.mubr.bf16.mxu0 0
  %3088 = vmatmul.mubr.bf16.gmra.mxu0 %v2813
  %v3089 = vpop.f32.mrf.mxu0
  %v3090 = vadd.f32 %v2748, %v3089
  %v3091 = vpop.f32.mrf.mxu0
  %v3092 = vpop.f32.mrf.mxu0
  %v3093 = vadd.f32 %v2748, %v3092
  %v3094 = vpop.f32.mrf.mxu0
  %3095 = vmatprep.mubr.bf16.mxu0 0
  %3096 = vmatmul.mubr.bf16.gmra.mxu0 %v2815
  %v3097 = vpop.f32.mrf.mxu0
  %v3098 = vadd.f32 %v2748, %v3097
  %v3099 = vpop.f32.mrf.mxu0
  %v3100 = vpop.f32.mrf.mxu0
  %v3101 = vadd.f32 %v2748, %v3100
  %v3102 = vpop.f32.mrf.mxu0
  %3103 = vmatprep.mubr.bf16.mxu0 0
  %3104 = vmatmul.mubr.bf16.gmra.mxu0 %v2817
  %v3105 = vpop.f32.mrf.mxu0
  %v3106 = vadd.f32 %v2748, %v3105
  %v3107 = vpop.f32.mrf.mxu0
  %v3108 = vpop.f32.mrf.mxu0
  %v3109 = vadd.f32 %v2748, %v3108
  %v3110 = vpop.f32.mrf.mxu0
  %3111 = vdwg.mxu0
  %v3112 = vmax.f32 %v2858, 0.0
  %v3113 = vmax.f32 %v2861, 0.0
  %v3114 = vmax.f32 %v2866, 0.0
  %v3115 = vmax.f32 %v2869, 0.0
  %v3116 = vmax.f32 %v2874, 0.0
  %v3117 = vmax.f32 %v2877, 0.0
  %v3118 = vmax.f32 %v2882, 0.0
  %v3119 = vmax.f32 %v2885, 0.0
  %v3120 = vmax.f32 %v2890, 0.0
  %v3121 = vmax.f32 %v2893, 0.0
  %v3122 = vmax.f32 %v2898, 0.0
  %v3123 = vmax.f32 %v2901, 0.0
  %v3124 = vmax.f32 %v2906, 0.0
  %v3125 = vmax.f32 %v2909, 0.0
  %v3126 = vmax.f32 %v2914, 0.0
  %v3127 = vmax.f32 %v2917, 0.0
  %v3128 = vmax.f32 %v2922, 0.0
  %v3129 = vmax.f32 %v2925, 0.0
  %v3130 = vmax.f32 %v2930, 0.0
  %v3131 = vmax.f32 %v2933, 0.0
  %v3132 = vmax.f32 %v2938, 0.0
  %v3133 = vmax.f32 %v2941, 0.0
  %v3134 = vmax.f32 %v2946, 0.0
  %v3135 = vmax.f32 %v2949, 0.0
  %v3136 = vmax.f32 %v2954, 0.0
  %v3137 = vmax.f32 %v2957, 0.0
  %v3138 = vmax.f32 %v2962, 0.0
  %v3139 = vmax.f32 %v2965, 0.0
  %v3140 = vmax.f32 %v2970, 0.0
  %v3141 = vmax.f32 %v2973, 0.0
  %v3142 = vmax.f32 %v2978, 0.0
  %v3143 = vmax.f32 %v2981, 0.0
  %v3144 = vmax.f32 %v2986, 0.0
  %v3145 = vmax.f32 %v2989, 0.0
  %v3146 = vmax.f32 %v2994, 0.0
  %v3147 = vmax.f32 %v2997, 0.0
  %v3148 = vmax.f32 %v3002, 0.0
  %v3149 = vmax.f32 %v3005, 0.0
  %v3150 = vmax.f32 %v3010, 0.0
  %v3151 = vmax.f32 %v3013, 0.0
  %v3152 = vmax.f32 %v3018, 0.0
  %v3153 = vmax.f32 %v3021, 0.0
  %v3154 = vmax.f32 %v3026, 0.0
  %v3155 = vmax.f32 %v3029, 0.0
  %v3156 = vmax.f32 %v3034, 0.0
  %v3157 = vmax.f32 %v3037, 0.0
  %v3158 = vmax.f32 %v3042, 0.0
  %v3159 = vmax.f32 %v3045, 0.0
  %v3160 = vmax.f32 %v3050, 0.0
  %v3161 = vmax.f32 %v3053, 0.0
  %v3162 = vmax.f32 %v3058, 0.0
  %v3163 = vmax.f32 %v3061, 0.0
  %v3164 = vmax.f32 %v3066, 0.0
  %v3165 = vmax.f32 %v3069, 0.0
  %v3166 = vmax.f32 %v3074, 0.0
  %v3167 = vmax.f32 %v3077, 0.0
  %v3168 = vmax.f32 %v3082, 0.0
  %v3169 = vmax.f32 %v3085, 0.0
  %v3170 = vmax.f32 %v3090, 0.0
  %v3171 = vmax.f32 %v3093, 0.0
  %v3172 = vmax.f32 %v3098, 0.0
  %v3173 = vmax.f32 %v3101, 0.0
  %v3174 = vmax.f32 %v3106, 0.0
  %v3175 = vmax.f32 %v3109, 0.0
  %v3176 = vpack.c.bf16 %v3113, %v3112
  %v3177 = vpack.c.bf16 %v3115, %v3114
  %v3178 = vpack.c.bf16 %v3117, %v3116
  %v3179 = vpack.c.bf16 %v3119, %v3118
  %v3180 = vpack.c.bf16 %v3121, %v3120
  %v3181 = vpack.c.bf16 %v3123, %v3122
  %v3182 = vpack.c.bf16 %v3125, %v3124
  %v3183 = vpack.c.bf16 %v3127, %v3126
  %v3184 = vpack.c.bf16 %v3129, %v3128
  %v3185 = vpack.c.bf16 %v3131, %v3130
  %v3186 = vpack.c.bf16 %v3133, %v3132
  %v3187 = vpack.c.bf16 %v3135, %v3134
  %v3188 = vpack.c.bf16 %v3137, %v3136
  %v3189 = vpack.c.bf16 %v3139, %v3138
  %v3190 = vpack.c.bf16 %v3141, %v3140
  %v3191 = vpack.c.bf16 %v3143, %v3142
  %v3192 = vpack.c.bf16 %v3145, %v3144
  %v3193 = vpack.c.bf16 %v3147, %v3146
  %v3194 = vpack.c.bf16 %v3149, %v3148
  %v3195 = vpack.c.bf16 %v3151, %v3150
  %v3196 = vpack.c.bf16 %v3153, %v3152
  %v3197 = vpack.c.bf16 %v3155, %v3154
  %v3198 = vpack.c.bf16 %v3157, %v3156
  %v3199 = vpack.c.bf16 %v3159, %v3158
  %v3200 = vpack.c.bf16 %v3161, %v3160
  %v3201 = vpack.c.bf16 %v3163, %v3162
  %v3202 = vpack.c.bf16 %v3165, %v3164
  %v3203 = vpack.c.bf16 %v3167, %v3166
  %v3204 = vpack.c.bf16 %v3169, %v3168
  %v3205 = vpack.c.bf16 %v3171, %v3170
  %v3206 = vpack.c.bf16 %v3173, %v3172
  %v3207 = vpack.c.bf16 %v3175, %v3174
  %v3208 = vlaneseq
  %v3209 = vshrl.u32 %v3208, 7
  %v3210 = vsub.s32 0, %v3209
  %v3211 = vrot.slane %v167, %v3210
  %v3216 = vunpack.c.l.b16 %v155
  %v3217 = vunpack.c.l.b16 %v156
  %v3218 = vunpack.c.l.b16 %v157
  %v3219 = vunpack.c.l.b16 %v158
  %v3220 = vpack.c.b16 %v3217, %v3216
  %v3221 = vpack.c.b16 %v3219, %v3218
  %v3225 = vsel %vm837, %v3176, 0
  %v3228 = vsel %vm837, %v3177, 0
  %v3231 = vsel %vm837, %v3178, 0
  %v3234 = vsel %vm837, %v3179, 0
  %v3237 = vsel %vm837, %v3180, 0
  %v3240 = vsel %vm837, %v3181, 0
  %v3243 = vsel %vm837, %v3182, 0
  %v3246 = vsel %vm837, %v3183, 0
  %v3249 = vsel %vm837, %v3184, 0
  %v3252 = vsel %vm837, %v3185, 0
  %v3255 = vsel %vm837, %v3186, 0
  %v3258 = vsel %vm837, %v3187, 0
  %v3261 = vsel %vm837, %v3188, 0
  %v3264 = vsel %vm837, %v3189, 0
  %v3267 = vsel %vm837, %v3190, 0
  %v3270 = vsel %vm837, %v3191, 0
  %v3273 = vsel %vm837, %v3192, 0
  %v3276 = vsel %vm837, %v3193, 0
  %v3279 = vsel %vm837, %v3194, 0
  %v3282 = vsel %vm837, %v3195, 0
  %v3285 = vsel %vm837, %v3196, 0
  %v3288 = vsel %vm837, %v3197, 0
  %v3291 = vsel %vm837, %v3198, 0
  %v3294 = vsel %vm837, %v3199, 0
  %v3297 = vsel %vm837, %v3200, 0
  %v3300 = vsel %vm837, %v3201, 0
  %v3303 = vsel %vm837, %v3202, 0
  %v3306 = vsel %vm837, %v3203, 0
  %v3309 = vsel %vm837, %v3204, 0
  %v3312 = vsel %vm837, %v3205, 0
  %v3315 = vsel %vm837, %v3206, 0
  %v3318 = vsel %vm837, %v3207, 0
  %3320 = vmatprep.subr.bf16.mxu0 0
  %3321 = vmatpush1.bf16.msra.mxu0 0
  %3322 = vmatprep.subr.bf16.mxu0 0
  %3323 = vmatpush1.bf16.msra.mxu0 0
  %3324 = vmatprep.subr.bf16.mxu0 0
  %3325 = vmatpush1.bf16.msra.mxu0 0
  %3326 = vmatprep.subr.bf16.mxu0 0
  %3327 = vmatpush1.bf16.msra.mxu0 0
  %3328 = vmatprep.subr.bf16.mxu0 0
  %3329 = vmatpush1.bf16.msra.mxu0 0
  %3330 = vmatprep.subr.bf16.mxu0 0
  %3331 = vmatpush1.bf16.msra.mxu0 0
  %3332 = vmatprep.subr.bf16.mxu0 0
  %3333 = vmatpush1.bf16.msra.mxu0 %v3221
  %3334 = vmatprep.subr.bf16.mxu0 0
  %3335 = vmatpush1.bf16.msra.mxu0 %v3220
  %3336 = vmatprep.subr.bf16.mxu0 0
  %3337 = vmatpush2.bf16.msra.mxu0 0
  %3338 = vmatprep.subr.bf16.mxu0 0
  %3339 = vmatpush2.bf16.msra.mxu0 0
  %3340 = vmatprep.subr.bf16.mxu0 0
  %3341 = vmatpush2.bf16.msra.mxu0 0
  %3342 = vmatprep.subr.bf16.mxu0 0
  %3343 = vmatpush2.bf16.msra.mxu0 0
  %3344 = vmatprep.subr.bf16.mxu0 0
  %3345 = vmatpush2.bf16.msra.mxu0 0
  %3346 = vmatprep.subr.bf16.mxu0 0
  %3347 = vmatpush2.bf16.msra.mxu0 0
  %3348 = vmatprep.subr.bf16.mxu0 0
  %3349 = vmatpush2.bf16.msra.mxu0 0
  %3350 = vmatprep.subr.bf16.mxu0 0
  %3351 = vmatpush2.bf16.msra.mxu0 0
  %3352 = vmatprep.mubr.bf16.mxu0 0
  %3353 = vmatmul.mubr.bf16.gmra.mxu0 %v3225
  %v3354 = vpop.f32.mrf.mxu0
  %v3355 = vadd.f32 %v3211, %v3354
  %v3356 = vpop.f32.mrf.mxu0
  %v3357 = vpop.f32.mrf.mxu0
  %v3358 = vadd.f32 %v3211, %v3357
  %v3359 = vpop.f32.mrf.mxu0
  %3360 = vmatprep.mubr.bf16.mxu0 0
  %3361 = vmatmul.mubr.bf16.gmra.mxu0 %v3228
  %v3362 = vpop.f32.mrf.mxu0
  %v3363 = vadd.f32 %v3211, %v3362
  %v3364 = vpop.f32.mrf.mxu0
  %v3365 = vpop.f32.mrf.mxu0
  %v3366 = vadd.f32 %v3211, %v3365
  %v3367 = vpop.f32.mrf.mxu0
  %3368 = vmatprep.mubr.bf16.mxu0 0
  %3369 = vmatmul.mubr.bf16.gmra.mxu0 %v3231
  %v3370 = vpop.f32.mrf.mxu0
  %v3371 = vadd.f32 %v3211, %v3370
  %v3372 = vpop.f32.mrf.mxu0
  %v3373 = vpop.f32.mrf.mxu0
  %v3374 = vadd.f32 %v3211, %v3373
  %v3375 = vpop.f32.mrf.mxu0
  %3376 = vmatprep.mubr.bf16.mxu0 0
  %3377 = vmatmul.mubr.bf16.gmra.mxu0 %v3234
  %v3378 = vpop.f32.mrf.mxu0
  %v3379 = vadd.f32 %v3211, %v3378
  %v3380 = vpop.f32.mrf.mxu0
  %v3381 = vpop.f32.mrf.mxu0
  %v3382 = vadd.f32 %v3211, %v3381
  %v3383 = vpop.f32.mrf.mxu0
  %3384 = vmatprep.mubr.bf16.mxu0 0
  %3385 = vmatmul.mubr.bf16.gmra.mxu0 %v3237
  %v3386 = vpop.f32.mrf.mxu0
  %v3387 = vadd.f32 %v3211, %v3386
  %v3388 = vpop.f32.mrf.mxu0
  %v3389 = vpop.f32.mrf.mxu0
  %v3390 = vadd.f32 %v3211, %v3389
  %v3391 = vpop.f32.mrf.mxu0
  %3392 = vmatprep.mubr.bf16.mxu0 0
  %3393 = vmatmul.mubr.bf16.gmra.mxu0 %v3240
  %v3394 = vpop.f32.mrf.mxu0
  %v3395 = vadd.f32 %v3211, %v3394
  %v3396 = vpop.f32.mrf.mxu0
  %v3397 = vpop.f32.mrf.mxu0
  %v3398 = vadd.f32 %v3211, %v3397
  %v3399 = vpop.f32.mrf.mxu0
  %3400 = vmatprep.mubr.bf16.mxu0 0
  %3401 = vmatmul.mubr.bf16.gmra.mxu0 %v3243
  %v3402 = vpop.f32.mrf.mxu0
  %v3403 = vadd.f32 %v3211, %v3402
  %v3404 = vpop.f32.mrf.mxu0
  %v3405 = vpop.f32.mrf.mxu0
  %v3406 = vadd.f32 %v3211, %v3405
  %v3407 = vpop.f32.mrf.mxu0
  %3408 = vmatprep.mubr.bf16.mxu0 0
  %3409 = vmatmul.mubr.bf16.gmra.mxu0 %v3246
  %v3410 = vpop.f32.mrf.mxu0
  %v3411 = vadd.f32 %v3211, %v3410
  %v3412 = vpop.f32.mrf.mxu0
  %v3413 = vpop.f32.mrf.mxu0
  %v3414 = vadd.f32 %v3211, %v3413
  %v3415 = vpop.f32.mrf.mxu0
  %3416 = vmatprep.mubr.bf16.mxu0 0
  %3417 = vmatmul.mubr.bf16.gmra.mxu0 %v3249
  %v3418 = vpop.f32.mrf.mxu0
  %v3419 = vadd.f32 %v3211, %v3418
  %v3420 = vpop.f32.mrf.mxu0
  %v3421 = vpop.f32.mrf.mxu0
  %v3422 = vadd.f32 %v3211, %v3421
  %v3423 = vpop.f32.mrf.mxu0
  %3424 = vmatprep.mubr.bf16.mxu0 0
  %3425 = vmatmul.mubr.bf16.gmra.mxu0 %v3252
  %v3426 = vpop.f32.mrf.mxu0
  %v3427 = vadd.f32 %v3211, %v3426
  %v3428 = vpop.f32.mrf.mxu0
  %v3429 = vpop.f32.mrf.mxu0
  %v3430 = vadd.f32 %v3211, %v3429
  %v3431 = vpop.f32.mrf.mxu0
  %3432 = vmatprep.mubr.bf16.mxu0 0
  %3433 = vmatmul.mubr.bf16.gmra.mxu0 %v3255
  %v3434 = vpop.f32.mrf.mxu0
  %v3435 = vadd.f32 %v3211, %v3434
  %v3436 = vpop.f32.mrf.mxu0
  %v3437 = vpop.f32.mrf.mxu0
  %v3438 = vadd.f32 %v3211, %v3437
  %v3439 = vpop.f32.mrf.mxu0
  %3440 = vmatprep.mubr.bf16.mxu0 0
  %3441 = vmatmul.mubr.bf16.gmra.mxu0 %v3258
  %v3442 = vpop.f32.mrf.mxu0
  %v3443 = vadd.f32 %v3211, %v3442
  %v3444 = vpop.f32.mrf.mxu0
  %v3445 = vpop.f32.mrf.mxu0
  %v3446 = vadd.f32 %v3211, %v3445
  %v3447 = vpop.f32.mrf.mxu0
  %3448 = vmatprep.mubr.bf16.mxu0 0
  %3449 = vmatmul.mubr.bf16.gmra.mxu0 %v3261
  %v3450 = vpop.f32.mrf.mxu0
  %v3451 = vadd.f32 %v3211, %v3450
  %v3452 = vpop.f32.mrf.mxu0
  %v3453 = vpop.f32.mrf.mxu0
  %v3454 = vadd.f32 %v3211, %v3453
  %v3455 = vpop.f32.mrf.mxu0
  %3456 = vmatprep.mubr.bf16.mxu0 0
  %3457 = vmatmul.mubr.bf16.gmra.mxu0 %v3264
  %v3458 = vpop.f32.mrf.mxu0
  %v3459 = vadd.f32 %v3211, %v3458
  %v3460 = vpop.f32.mrf.mxu0
  %v3461 = vpop.f32.mrf.mxu0
  %v3462 = vadd.f32 %v3211, %v3461
  %v3463 = vpop.f32.mrf.mxu0
  %3464 = vmatprep.mubr.bf16.mxu0 0
  %3465 = vmatmul.mubr.bf16.gmra.mxu0 %v3267
  %v3466 = vpop.f32.mrf.mxu0
  %v3467 = vadd.f32 %v3211, %v3466
  %v3468 = vpop.f32.mrf.mxu0
  %v3469 = vpop.f32.mrf.mxu0
  %v3470 = vadd.f32 %v3211, %v3469
  %v3471 = vpop.f32.mrf.mxu0
  %3472 = vmatprep.mubr.bf16.mxu0 0
  %3473 = vmatmul.mubr.bf16.gmra.mxu0 %v3270
  %v3474 = vpop.f32.mrf.mxu0
  %v3475 = vadd.f32 %v3211, %v3474
  %v3476 = vpop.f32.mrf.mxu0
  %v3477 = vpop.f32.mrf.mxu0
  %v3478 = vadd.f32 %v3211, %v3477
  %v3479 = vpop.f32.mrf.mxu0
  %3480 = vmatprep.mubr.bf16.mxu0 0
  %3481 = vmatmul.mubr.bf16.gmra.mxu0 %v3273
  %v3482 = vpop.f32.mrf.mxu0
  %v3483 = vadd.f32 %v3211, %v3482
  %v3484 = vpop.f32.mrf.mxu0
  %v3485 = vpop.f32.mrf.mxu0
  %v3486 = vadd.f32 %v3211, %v3485
  %v3487 = vpop.f32.mrf.mxu0
  %3488 = vmatprep.mubr.bf16.mxu0 0
  %3489 = vmatmul.mubr.bf16.gmra.mxu0 %v3276
  %v3490 = vpop.f32.mrf.mxu0
  %v3491 = vadd.f32 %v3211, %v3490
  %v3492 = vpop.f32.mrf.mxu0
  %v3493 = vpop.f32.mrf.mxu0
  %v3494 = vadd.f32 %v3211, %v3493
  %v3495 = vpop.f32.mrf.mxu0
  %3496 = vmatprep.mubr.bf16.mxu0 0
  %3497 = vmatmul.mubr.bf16.gmra.mxu0 %v3279
  %v3498 = vpop.f32.mrf.mxu0
  %v3499 = vadd.f32 %v3211, %v3498
  %v3500 = vpop.f32.mrf.mxu0
  %v3501 = vpop.f32.mrf.mxu0
  %v3502 = vadd.f32 %v3211, %v3501
  %v3503 = vpop.f32.mrf.mxu0
  %3504 = vmatprep.mubr.bf16.mxu0 0
  %3505 = vmatmul.mubr.bf16.gmra.mxu0 %v3282
  %v3506 = vpop.f32.mrf.mxu0
  %v3507 = vadd.f32 %v3211, %v3506
  %v3508 = vpop.f32.mrf.mxu0
  %v3509 = vpop.f32.mrf.mxu0
  %v3510 = vadd.f32 %v3211, %v3509
  %v3511 = vpop.f32.mrf.mxu0
  %3512 = vmatprep.mubr.bf16.mxu0 0
  %3513 = vmatmul.mubr.bf16.gmra.mxu0 %v3285
  %v3514 = vpop.f32.mrf.mxu0
  %v3515 = vadd.f32 %v3211, %v3514
  %v3516 = vpop.f32.mrf.mxu0
  %v3517 = vpop.f32.mrf.mxu0
  %v3518 = vadd.f32 %v3211, %v3517
  %v3519 = vpop.f32.mrf.mxu0
  %3520 = vmatprep.mubr.bf16.mxu0 0
  %3521 = vmatmul.mubr.bf16.gmra.mxu0 %v3288
  %v3522 = vpop.f32.mrf.mxu0
  %v3523 = vadd.f32 %v3211, %v3522
  %v3524 = vpop.f32.mrf.mxu0
  %v3525 = vpop.f32.mrf.mxu0
  %v3526 = vadd.f32 %v3211, %v3525
  %v3527 = vpop.f32.mrf.mxu0
  %3528 = vmatprep.mubr.bf16.mxu0 0
  %3529 = vmatmul.mubr.bf16.gmra.mxu0 %v3291
  %v3530 = vpop.f32.mrf.mxu0
  %v3531 = vadd.f32 %v3211, %v3530
  %v3532 = vpop.f32.mrf.mxu0
  %v3533 = vpop.f32.mrf.mxu0
  %v3534 = vadd.f32 %v3211, %v3533
  %v3535 = vpop.f32.mrf.mxu0
  %3536 = vmatprep.mubr.bf16.mxu0 0
  %3537 = vmatmul.mubr.bf16.gmra.mxu0 %v3294
  %v3538 = vpop.f32.mrf.mxu0
  %v3539 = vadd.f32 %v3211, %v3538
  %v3540 = vpop.f32.mrf.mxu0
  %v3541 = vpop.f32.mrf.mxu0
  %v3542 = vadd.f32 %v3211, %v3541
  %v3543 = vpop.f32.mrf.mxu0
  %3544 = vmatprep.mubr.bf16.mxu0 0
  %3545 = vmatmul.mubr.bf16.gmra.mxu0 %v3297
  %v3546 = vpop.f32.mrf.mxu0
  %v3547 = vadd.f32 %v3211, %v3546
  %v3548 = vpop.f32.mrf.mxu0
  %v3549 = vpop.f32.mrf.mxu0
  %v3550 = vadd.f32 %v3211, %v3549
  %v3551 = vpop.f32.mrf.mxu0
  %3552 = vmatprep.mubr.bf16.mxu0 0
  %3553 = vmatmul.mubr.bf16.gmra.mxu0 %v3300
  %v3554 = vpop.f32.mrf.mxu0
  %v3555 = vadd.f32 %v3211, %v3554
  %v3556 = vpop.f32.mrf.mxu0
  %v3557 = vpop.f32.mrf.mxu0
  %v3558 = vadd.f32 %v3211, %v3557
  %v3559 = vpop.f32.mrf.mxu0
  %3560 = vmatprep.mubr.bf16.mxu0 0
  %3561 = vmatmul.mubr.bf16.gmra.mxu0 %v3303
  %v3562 = vpop.f32.mrf.mxu0
  %v3563 = vadd.f32 %v3211, %v3562
  %v3564 = vpop.f32.mrf.mxu0
  %v3565 = vpop.f32.mrf.mxu0
  %v3566 = vadd.f32 %v3211, %v3565
  %v3567 = vpop.f32.mrf.mxu0
  %3568 = vmatprep.mubr.bf16.mxu0 0
  %3569 = vmatmul.mubr.bf16.gmra.mxu0 %v3306
  %v3570 = vpop.f32.mrf.mxu0
  %v3571 = vadd.f32 %v3211, %v3570
  %v3572 = vpop.f32.mrf.mxu0
  %v3573 = vpop.f32.mrf.mxu0
  %v3574 = vadd.f32 %v3211, %v3573
  %v3575 = vpop.f32.mrf.mxu0
  %3576 = vmatprep.mubr.bf16.mxu0 0
  %3577 = vmatmul.mubr.bf16.gmra.mxu0 %v3309
  %v3578 = vpop.f32.mrf.mxu0
  %v3579 = vadd.f32 %v3211, %v3578
  %v3580 = vpop.f32.mrf.mxu0
  %v3581 = vpop.f32.mrf.mxu0
  %v3582 = vadd.f32 %v3211, %v3581
  %v3583 = vpop.f32.mrf.mxu0
  %3584 = vmatprep.mubr.bf16.mxu0 0
  %3585 = vmatmul.mubr.bf16.gmra.mxu0 %v3312
  %v3586 = vpop.f32.mrf.mxu0
  %v3587 = vadd.f32 %v3211, %v3586
  %v3588 = vpop.f32.mrf.mxu0
  %v3589 = vpop.f32.mrf.mxu0
  %v3590 = vadd.f32 %v3211, %v3589
  %v3591 = vpop.f32.mrf.mxu0
  %3592 = vmatprep.mubr.bf16.mxu0 0
  %3593 = vmatmul.mubr.bf16.gmra.mxu0 %v3315
  %v3594 = vpop.f32.mrf.mxu0
  %v3595 = vadd.f32 %v3211, %v3594
  %v3596 = vpop.f32.mrf.mxu0
  %v3597 = vpop.f32.mrf.mxu0
  %v3598 = vadd.f32 %v3211, %v3597
  %v3599 = vpop.f32.mrf.mxu0
  %3600 = vmatprep.mubr.bf16.mxu0 0
  %3601 = vmatmul.mubr.bf16.gmra.mxu0 %v3318
  %v3602 = vpop.f32.mrf.mxu0
  %v3603 = vadd.f32 %v3211, %v3602
  %v3604 = vpop.f32.mrf.mxu0
  %v3605 = vpop.f32.mrf.mxu0
  %v3606 = vadd.f32 %v3211, %v3605
  %v3607 = vpop.f32.mrf.mxu0
  %3608 = vdwg.mxu0
  %v3609 = vmax.f32 %v3355, 0.0
  %v3610 = vmax.f32 %v3358, 0.0
  %v3611 = vmax.f32 %v3363, 0.0
  %v3612 = vmax.f32 %v3366, 0.0
  %v3613 = vmax.f32 %v3371, 0.0
  %v3614 = vmax.f32 %v3374, 0.0
  %v3615 = vmax.f32 %v3379, 0.0
  %v3616 = vmax.f32 %v3382, 0.0
  %v3617 = vmax.f32 %v3387, 0.0
  %v3618 = vmax.f32 %v3390, 0.0
  %v3619 = vmax.f32 %v3395, 0.0
  %v3620 = vmax.f32 %v3398, 0.0
  %v3621 = vmax.f32 %v3403, 0.0
  %v3622 = vmax.f32 %v3406, 0.0
  %v3623 = vmax.f32 %v3411, 0.0
  %v3624 = vmax.f32 %v3414, 0.0
  %v3625 = vmax.f32 %v3419, 0.0
  %v3626 = vmax.f32 %v3422, 0.0
  %v3627 = vmax.f32 %v3427, 0.0
  %v3628 = vmax.f32 %v3430, 0.0
  %v3629 = vmax.f32 %v3435, 0.0
  %v3630 = vmax.f32 %v3438, 0.0
  %v3631 = vmax.f32 %v3443, 0.0
  %v3632 = vmax.f32 %v3446, 0.0
  %v3633 = vmax.f32 %v3451, 0.0
  %v3634 = vmax.f32 %v3454, 0.0
  %v3635 = vmax.f32 %v3459, 0.0
  %v3636 = vmax.f32 %v3462, 0.0
  %v3637 = vmax.f32 %v3467, 0.0
  %v3638 = vmax.f32 %v3470, 0.0
  %v3639 = vmax.f32 %v3475, 0.0
  %v3640 = vmax.f32 %v3478, 0.0
  %v3641 = vmax.f32 %v3483, 0.0
  %v3642 = vmax.f32 %v3486, 0.0
  %v3643 = vmax.f32 %v3491, 0.0
  %v3644 = vmax.f32 %v3494, 0.0
  %v3645 = vmax.f32 %v3499, 0.0
  %v3646 = vmax.f32 %v3502, 0.0
  %v3647 = vmax.f32 %v3507, 0.0
  %v3648 = vmax.f32 %v3510, 0.0
  %v3649 = vmax.f32 %v3515, 0.0
  %v3650 = vmax.f32 %v3518, 0.0
  %v3651 = vmax.f32 %v3523, 0.0
  %v3652 = vmax.f32 %v3526, 0.0
  %v3653 = vmax.f32 %v3531, 0.0
  %v3654 = vmax.f32 %v3534, 0.0
  %v3655 = vmax.f32 %v3539, 0.0
  %v3656 = vmax.f32 %v3542, 0.0
  %v3657 = vmax.f32 %v3547, 0.0
  %v3658 = vmax.f32 %v3550, 0.0
  %v3659 = vmax.f32 %v3555, 0.0
  %v3660 = vmax.f32 %v3558, 0.0
  %v3661 = vmax.f32 %v3563, 0.0
  %v3662 = vmax.f32 %v3566, 0.0
  %v3663 = vmax.f32 %v3571, 0.0
  %v3664 = vmax.f32 %v3574, 0.0
  %v3665 = vmax.f32 %v3579, 0.0
  %v3666 = vmax.f32 %v3582, 0.0
  %v3667 = vmax.f32 %v3587, 0.0
  %v3668 = vmax.f32 %v3590, 0.0
  %v3669 = vmax.f32 %v3595, 0.0
  %v3670 = vmax.f32 %v3598, 0.0
  %v3671 = vmax.f32 %v3603, 0.0
  %v3672 = vmax.f32 %v3606, 0.0
  %v3673 = vpack.c.bf16 %v3610, %v3609
  %v3674 = vpack.c.bf16 %v3612, %v3611
  %v3675 = vpack.c.bf16 %v3614, %v3613
  %v3676 = vpack.c.bf16 %v3616, %v3615
  %v3677 = vpack.c.bf16 %v3618, %v3617
  %v3678 = vpack.c.bf16 %v3620, %v3619
  %v3679 = vpack.c.bf16 %v3622, %v3621
  %v3680 = vpack.c.bf16 %v3624, %v3623
  %v3681 = vpack.c.bf16 %v3626, %v3625
  %v3682 = vpack.c.bf16 %v3628, %v3627
  %v3683 = vpack.c.bf16 %v3630, %v3629
  %v3684 = vpack.c.bf16 %v3632, %v3631
  %v3685 = vpack.c.bf16 %v3634, %v3633
  %v3686 = vpack.c.bf16 %v3636, %v3635
  %v3687 = vpack.c.bf16 %v3638, %v3637
  %v3688 = vpack.c.bf16 %v3640, %v3639
  %v3689 = vpack.c.bf16 %v3642, %v3641
  %v3690 = vpack.c.bf16 %v3644, %v3643
  %v3691 = vpack.c.bf16 %v3646, %v3645
  %v3692 = vpack.c.bf16 %v3648, %v3647
  %v3693 = vpack.c.bf16 %v3650, %v3649
  %v3694 = vpack.c.bf16 %v3652, %v3651
  %v3695 = vpack.c.bf16 %v3654, %v3653
  %v3696 = vpack.c.bf16 %v3656, %v3655
  %v3697 = vpack.c.bf16 %v3658, %v3657
  %v3698 = vpack.c.bf16 %v3660, %v3659
  %v3699 = vpack.c.bf16 %v3662, %v3661
  %v3700 = vpack.c.bf16 %v3664, %v3663
  %v3701 = vpack.c.bf16 %v3666, %v3665
  %v3702 = vpack.c.bf16 %v3668, %v3667
  %v3703 = vpack.c.bf16 %v3670, %v3669
  %v3704 = vpack.c.bf16 %v3672, %v3671
  %v3705 = vlaneseq
  %v3706 = vshrl.u32 %v3705, 7
  %v3707 = vsub.s32 0, %v3706
  %v3708 = vrot.slane %v168, %v3707
  %v3713 = vunpack.c.l.b16 %v159
  %v3714 = vunpack.c.l.b16 %v160
  %v3715 = vunpack.c.l.b16 %v161
  %v3716 = vunpack.c.l.b16 %v162
  %v3717 = vpack.c.b16 %v3714, %v3713
  %v3718 = vpack.c.b16 %v3716, %v3715
  %v3722 = vsel %vm837, %v3673, 0
  %v3725 = vsel %vm837, %v3674, 0
  %v3728 = vsel %vm837, %v3675, 0
  %v3731 = vsel %vm837, %v3676, 0
  %v3734 = vsel %vm837, %v3677, 0
  %v3737 = vsel %vm837, %v3678, 0
  %v3740 = vsel %vm837, %v3679, 0
  %v3743 = vsel %vm837, %v3680, 0
  %v3746 = vsel %vm837, %v3681, 0
  %v3749 = vsel %vm837, %v3682, 0
  %v3752 = vsel %vm837, %v3683, 0
  %v3755 = vsel %vm837, %v3684, 0
  %v3758 = vsel %vm837, %v3685, 0
  %v3761 = vsel %vm837, %v3686, 0
  %v3764 = vsel %vm837, %v3687, 0
  %v3767 = vsel %vm837, %v3688, 0
  %v3770 = vsel %vm837, %v3689, 0
  %v3773 = vsel %vm837, %v3690, 0
  %v3776 = vsel %vm837, %v3691, 0
  %v3779 = vsel %vm837, %v3692, 0
  %v3782 = vsel %vm837, %v3693, 0
  %v3785 = vsel %vm837, %v3694, 0
  %v3788 = vsel %vm837, %v3695, 0
  %v3791 = vsel %vm837, %v3696, 0
  %v3794 = vsel %vm837, %v3697, 0
  %v3797 = vsel %vm837, %v3698, 0
  %v3800 = vsel %vm837, %v3699, 0
  %v3803 = vsel %vm837, %v3700, 0
  %v3806 = vsel %vm837, %v3701, 0
  %v3809 = vsel %vm837, %v3702, 0
  %v3812 = vsel %vm837, %v3703, 0
  %v3815 = vsel %vm837, %v3704, 0
  %3817 = vmatprep.subr.bf16.mxu0 0
  %3818 = vmatpush1.bf16.msra.mxu0 0
  %3819 = vmatprep.subr.bf16.mxu0 0
  %3820 = vmatpush1.bf16.msra.mxu0 0
  %3821 = vmatprep.subr.bf16.mxu0 0
  %3822 = vmatpush1.bf16.msra.mxu0 0
  %3823 = vmatprep.subr.bf16.mxu0 0
  %3824 = vmatpush1.bf16.msra.mxu0 0
  %3825 = vmatprep.subr.bf16.mxu0 0
  %3826 = vmatpush1.bf16.msra.mxu0 0
  %3827 = vmatprep.subr.bf16.mxu0 0
  %3828 = vmatpush1.bf16.msra.mxu0 0
  %3829 = vmatprep.subr.bf16.mxu0 0
  %3830 = vmatpush1.bf16.msra.mxu0 %v3718
  %3831 = vmatprep.subr.bf16.mxu0 0
  %3832 = vmatpush1.bf16.msra.mxu0 %v3717
  %3833 = vmatprep.subr.bf16.mxu0 0
  %3834 = vmatpush2.bf16.msra.mxu0 0
  %3835 = vmatprep.subr.bf16.mxu0 0
  %3836 = vmatpush2.bf16.msra.mxu0 0
  %3837 = vmatprep.subr.bf16.mxu0 0
  %3838 = vmatpush2.bf16.msra.mxu0 0
  %3839 = vmatprep.subr.bf16.mxu0 0
  %3840 = vmatpush2.bf16.msra.mxu0 0
  %3841 = vmatprep.subr.bf16.mxu0 0
  %3842 = vmatpush2.bf16.msra.mxu0 0
  %3843 = vmatprep.subr.bf16.mxu0 0
  %3844 = vmatpush2.bf16.msra.mxu0 0
  %3845 = vmatprep.subr.bf16.mxu0 0
  %3846 = vmatpush2.bf16.msra.mxu0 0
  %3847 = vmatprep.subr.bf16.mxu0 0
  %3848 = vmatpush2.bf16.msra.mxu0 0
  %3849 = vmatprep.mubr.bf16.mxu0 0
  %3850 = vmatmul.mubr.bf16.gmra.mxu0 %v3722
  %v3851 = vpop.f32.mrf.mxu0
  %v3852 = vadd.f32 %v3708, %v3851
  %v3853 = vpop.f32.mrf.mxu0
  %v3854 = vpop.f32.mrf.mxu0
  %v3855 = vadd.f32 %v3708, %v3854
  %v3856 = vpop.f32.mrf.mxu0
  %3857 = vmatprep.mubr.bf16.mxu0 0
  %3858 = vmatmul.mubr.bf16.gmra.mxu0 %v3725
  %v3859 = vpop.f32.mrf.mxu0
  %v3860 = vadd.f32 %v3708, %v3859
  %v3861 = vpop.f32.mrf.mxu0
  %v3862 = vpop.f32.mrf.mxu0
  %v3863 = vadd.f32 %v3708, %v3862
  %v3864 = vpop.f32.mrf.mxu0
  %3865 = vmatprep.mubr.bf16.mxu0 0
  %3866 = vmatmul.mubr.bf16.gmra.mxu0 %v3728
  %v3867 = vpop.f32.mrf.mxu0
  %v3868 = vadd.f32 %v3708, %v3867
  %v3869 = vpop.f32.mrf.mxu0
  %v3870 = vpop.f32.mrf.mxu0
  %v3871 = vadd.f32 %v3708, %v3870
  %v3872 = vpop.f32.mrf.mxu0
  %3873 = vmatprep.mubr.bf16.mxu0 0
  %3874 = vmatmul.mubr.bf16.gmra.mxu0 %v3731
  %v3875 = vpop.f32.mrf.mxu0
  %v3876 = vadd.f32 %v3708, %v3875
  %v3877 = vpop.f32.mrf.mxu0
  %v3878 = vpop.f32.mrf.mxu0
  %v3879 = vadd.f32 %v3708, %v3878
  %v3880 = vpop.f32.mrf.mxu0
  %3881 = vmatprep.mubr.bf16.mxu0 0
  %3882 = vmatmul.mubr.bf16.gmra.mxu0 %v3734
  %v3883 = vpop.f32.mrf.mxu0
  %v3884 = vadd.f32 %v3708, %v3883
  %v3885 = vpop.f32.mrf.mxu0
  %v3886 = vpop.f32.mrf.mxu0
  %v3887 = vadd.f32 %v3708, %v3886
  %v3888 = vpop.f32.mrf.mxu0
  %3889 = vmatprep.mubr.bf16.mxu0 0
  %3890 = vmatmul.mubr.bf16.gmra.mxu0 %v3737
  %v3891 = vpop.f32.mrf.mxu0
  %v3892 = vadd.f32 %v3708, %v3891
  %v3893 = vpop.f32.mrf.mxu0
  %v3894 = vpop.f32.mrf.mxu0
  %v3895 = vadd.f32 %v3708, %v3894
  %v3896 = vpop.f32.mrf.mxu0
  %3897 = vmatprep.mubr.bf16.mxu0 0
  %3898 = vmatmul.mubr.bf16.gmra.mxu0 %v3740
  %v3899 = vpop.f32.mrf.mxu0
  %v3900 = vadd.f32 %v3708, %v3899
  %v3901 = vpop.f32.mrf.mxu0
  %v3902 = vpop.f32.mrf.mxu0
  %v3903 = vadd.f32 %v3708, %v3902
  %v3904 = vpop.f32.mrf.mxu0
  %3905 = vmatprep.mubr.bf16.mxu0 0
  %3906 = vmatmul.mubr.bf16.gmra.mxu0 %v3743
  %v3907 = vpop.f32.mrf.mxu0
  %v3908 = vadd.f32 %v3708, %v3907
  %v3909 = vpop.f32.mrf.mxu0
  %v3910 = vpop.f32.mrf.mxu0
  %v3911 = vadd.f32 %v3708, %v3910
  %v3912 = vpop.f32.mrf.mxu0
  %3913 = vmatprep.mubr.bf16.mxu0 0
  %3914 = vmatmul.mubr.bf16.gmra.mxu0 %v3746
  %v3915 = vpop.f32.mrf.mxu0
  %v3916 = vadd.f32 %v3708, %v3915
  %v3917 = vpop.f32.mrf.mxu0
  %v3918 = vpop.f32.mrf.mxu0
  %v3919 = vadd.f32 %v3708, %v3918
  %v3920 = vpop.f32.mrf.mxu0
  %3921 = vmatprep.mubr.bf16.mxu0 0
  %3922 = vmatmul.mubr.bf16.gmra.mxu0 %v3749
  %v3923 = vpop.f32.mrf.mxu0
  %v3924 = vadd.f32 %v3708, %v3923
  %v3925 = vpop.f32.mrf.mxu0
  %v3926 = vpop.f32.mrf.mxu0
  %v3927 = vadd.f32 %v3708, %v3926
  %v3928 = vpop.f32.mrf.mxu0
  %3929 = vmatprep.mubr.bf16.mxu0 0
  %3930 = vmatmul.mubr.bf16.gmra.mxu0 %v3752
  %v3931 = vpop.f32.mrf.mxu0
  %v3932 = vadd.f32 %v3708, %v3931
  %v3933 = vpop.f32.mrf.mxu0
  %v3934 = vpop.f32.mrf.mxu0
  %v3935 = vadd.f32 %v3708, %v3934
  %v3936 = vpop.f32.mrf.mxu0
  %3937 = vmatprep.mubr.bf16.mxu0 0
  %3938 = vmatmul.mubr.bf16.gmra.mxu0 %v3755
  %v3939 = vpop.f32.mrf.mxu0
  %v3940 = vadd.f32 %v3708, %v3939
  %v3941 = vpop.f32.mrf.mxu0
  %v3942 = vpop.f32.mrf.mxu0
  %v3943 = vadd.f32 %v3708, %v3942
  %v3944 = vpop.f32.mrf.mxu0
  %3945 = vmatprep.mubr.bf16.mxu0 0
  %3946 = vmatmul.mubr.bf16.gmra.mxu0 %v3758
  %v3947 = vpop.f32.mrf.mxu0
  %v3948 = vadd.f32 %v3708, %v3947
  %v3949 = vpop.f32.mrf.mxu0
  %v3950 = vpop.f32.mrf.mxu0
  %v3951 = vadd.f32 %v3708, %v3950
  %v3952 = vpop.f32.mrf.mxu0
  %3953 = vmatprep.mubr.bf16.mxu0 0
  %3954 = vmatmul.mubr.bf16.gmra.mxu0 %v3761
  %v3955 = vpop.f32.mrf.mxu0
  %v3956 = vadd.f32 %v3708, %v3955
  %v3957 = vpop.f32.mrf.mxu0
  %v3958 = vpop.f32.mrf.mxu0
  %v3959 = vadd.f32 %v3708, %v3958
  %v3960 = vpop.f32.mrf.mxu0
  %3961 = vmatprep.mubr.bf16.mxu0 0
  %3962 = vmatmul.mubr.bf16.gmra.mxu0 %v3764
  %v3963 = vpop.f32.mrf.mxu0
  %v3964 = vadd.f32 %v3708, %v3963
  %v3965 = vpop.f32.mrf.mxu0
  %v3966 = vpop.f32.mrf.mxu0
  %v3967 = vadd.f32 %v3708, %v3966
  %v3968 = vpop.f32.mrf.mxu0
  %3969 = vmatprep.mubr.bf16.mxu0 0
  %3970 = vmatmul.mubr.bf16.gmra.mxu0 %v3767
  %v3971 = vpop.f32.mrf.mxu0
  %v3972 = vadd.f32 %v3708, %v3971
  %v3973 = vpop.f32.mrf.mxu0
  %v3974 = vpop.f32.mrf.mxu0
  %v3975 = vadd.f32 %v3708, %v3974
  %v3976 = vpop.f32.mrf.mxu0
  %3977 = vmatprep.mubr.bf16.mxu0 0
  %3978 = vmatmul.mubr.bf16.gmra.mxu0 %v3770
  %v3979 = vpop.f32.mrf.mxu0
  %v3980 = vadd.f32 %v3708, %v3979
  %v3981 = vpop.f32.mrf.mxu0
  %v3982 = vpop.f32.mrf.mxu0
  %v3983 = vadd.f32 %v3708, %v3982
  %v3984 = vpop.f32.mrf.mxu0
  %3985 = vmatprep.mubr.bf16.mxu0 0
  %3986 = vmatmul.mubr.bf16.gmra.mxu0 %v3773
  %v3987 = vpop.f32.mrf.mxu0
  %v3988 = vadd.f32 %v3708, %v3987
  %v3989 = vpop.f32.mrf.mxu0
  %v3990 = vpop.f32.mrf.mxu0
  %v3991 = vadd.f32 %v3708, %v3990
  %v3992 = vpop.f32.mrf.mxu0
  %3993 = vmatprep.mubr.bf16.mxu0 0
  %3994 = vmatmul.mubr.bf16.gmra.mxu0 %v3776
  %v3995 = vpop.f32.mrf.mxu0
  %v3996 = vadd.f32 %v3708, %v3995
  %v3997 = vpop.f32.mrf.mxu0
  %v3998 = vpop.f32.mrf.mxu0
  %v3999 = vadd.f32 %v3708, %v3998
  %v4000 = vpop.f32.mrf.mxu0
  %4001 = vmatprep.mubr.bf16.mxu0 0
  %4002 = vmatmul.mubr.bf16.gmra.mxu0 %v3779
  %v4003 = vpop.f32.mrf.mxu0
  %v4004 = vadd.f32 %v3708, %v4003
  %v4005 = vpop.f32.mrf.mxu0
  %v4006 = vpop.f32.mrf.mxu0
  %v4007 = vadd.f32 %v3708, %v4006
  %v4008 = vpop.f32.mrf.mxu0
  %4009 = vmatprep.mubr.bf16.mxu0 0
  %4010 = vmatmul.mubr.bf16.gmra.mxu0 %v3782
  %v4011 = vpop.f32.mrf.mxu0
  %v4012 = vadd.f32 %v3708, %v4011
  %v4013 = vpop.f32.mrf.mxu0
  %v4014 = vpop.f32.mrf.mxu0
  %v4015 = vadd.f32 %v3708, %v4014
  %v4016 = vpop.f32.mrf.mxu0
  %4017 = vmatprep.mubr.bf16.mxu0 0
  %4018 = vmatmul.mubr.bf16.gmra.mxu0 %v3785
  %v4019 = vpop.f32.mrf.mxu0
  %v4020 = vadd.f32 %v3708, %v4019
  %v4021 = vpop.f32.mrf.mxu0
  %v4022 = vpop.f32.mrf.mxu0
  %v4023 = vadd.f32 %v3708, %v4022
  %v4024 = vpop.f32.mrf.mxu0
  %4025 = vmatprep.mubr.bf16.mxu0 0
  %4026 = vmatmul.mubr.bf16.gmra.mxu0 %v3788
  %v4027 = vpop.f32.mrf.mxu0
  %v4028 = vadd.f32 %v3708, %v4027
  %v4029 = vpop.f32.mrf.mxu0
  %v4030 = vpop.f32.mrf.mxu0
  %v4031 = vadd.f32 %v3708, %v4030
  %v4032 = vpop.f32.mrf.mxu0
  %4033 = vmatprep.mubr.bf16.mxu0 0
  %4034 = vmatmul.mubr.bf16.gmra.mxu0 %v3791
  %v4035 = vpop.f32.mrf.mxu0
  %v4036 = vadd.f32 %v3708, %v4035
  %v4037 = vpop.f32.mrf.mxu0
  %v4038 = vpop.f32.mrf.mxu0
  %v4039 = vadd.f32 %v3708, %v4038
  %v4040 = vpop.f32.mrf.mxu0
  %4041 = vmatprep.mubr.bf16.mxu0 0
  %4042 = vmatmul.mubr.bf16.gmra.mxu0 %v3794
  %v4043 = vpop.f32.mrf.mxu0
  %v4044 = vadd.f32 %v3708, %v4043
  %v4045 = vpop.f32.mrf.mxu0
  %v4046 = vpop.f32.mrf.mxu0
  %v4047 = vadd.f32 %v3708, %v4046
  %v4048 = vpop.f32.mrf.mxu0
  %4049 = vmatprep.mubr.bf16.mxu0 0
  %4050 = vmatmul.mubr.bf16.gmra.mxu0 %v3797
  %v4051 = vpop.f32.mrf.mxu0
  %v4052 = vadd.f32 %v3708, %v4051
  %v4053 = vpop.f32.mrf.mxu0
  %v4054 = vpop.f32.mrf.mxu0
  %v4055 = vadd.f32 %v3708, %v4054
  %v4056 = vpop.f32.mrf.mxu0
  %4057 = vmatprep.mubr.bf16.mxu0 0
  %4058 = vmatmul.mubr.bf16.gmra.mxu0 %v3800
  %v4059 = vpop.f32.mrf.mxu0
  %v4060 = vadd.f32 %v3708, %v4059
  %v4061 = vpop.f32.mrf.mxu0
  %v4062 = vpop.f32.mrf.mxu0
  %v4063 = vadd.f32 %v3708, %v4062
  %v4064 = vpop.f32.mrf.mxu0
  %4065 = vmatprep.mubr.bf16.mxu0 0
  %4066 = vmatmul.mubr.bf16.gmra.mxu0 %v3803
  %v4067 = vpop.f32.mrf.mxu0
  %v4068 = vadd.f32 %v3708, %v4067
  %v4069 = vpop.f32.mrf.mxu0
  %v4070 = vpop.f32.mrf.mxu0
  %v4071 = vadd.f32 %v3708, %v4070
  %v4072 = vpop.f32.mrf.mxu0
  %4073 = vmatprep.mubr.bf16.mxu0 0
  %4074 = vmatmul.mubr.bf16.gmra.mxu0 %v3806
  %v4075 = vpop.f32.mrf.mxu0
  %v4076 = vadd.f32 %v3708, %v4075
  %v4077 = vpop.f32.mrf.mxu0
  %v4078 = vpop.f32.mrf.mxu0
  %v4079 = vadd.f32 %v3708, %v4078
  %v4080 = vpop.f32.mrf.mxu0
  %4081 = vmatprep.mubr.bf16.mxu0 0
  %4082 = vmatmul.mubr.bf16.gmra.mxu0 %v3809
  %v4083 = vpop.f32.mrf.mxu0
  %v4084 = vadd.f32 %v3708, %v4083
  %v4085 = vpop.f32.mrf.mxu0
  %v4086 = vpop.f32.mrf.mxu0
  %v4087 = vadd.f32 %v3708, %v4086
  %v4088 = vpop.f32.mrf.mxu0
  %4089 = vmatprep.mubr.bf16.mxu0 0
  %4090 = vmatmul.mubr.bf16.gmra.mxu0 %v3812
  %v4091 = vpop.f32.mrf.mxu0
  %v4092 = vadd.f32 %v3708, %v4091
  %v4093 = vpop.f32.mrf.mxu0
  %v4094 = vpop.f32.mrf.mxu0
  %v4095 = vadd.f32 %v3708, %v4094
  %v4096 = vpop.f32.mrf.mxu0
  %4097 = vmatprep.mubr.bf16.mxu0 0
  %4098 = vmatmul.mubr.bf16.gmra.mxu0 %v3815
  %v4099 = vpop.f32.mrf.mxu0
  %v4100 = vadd.f32 %v3708, %v4099
  %v4101 = vpop.f32.mrf.mxu0
  %v4102 = vpop.f32.mrf.mxu0
  %v4103 = vadd.f32 %v3708, %v4102
  %v4104 = vpop.f32.mrf.mxu0
  %4105 = vdwg.mxu0
  %4170 = vrot.lane.b32.xlu0 %v1466, 8
  %v4171 = vpop.permute.xlu0 %4170
  %4172 = vrot.lane.b32.xlu0 %v1469, 8
  %v4173 = vpop.permute.xlu0 %4172
  %4174 = vrot.lane.b32.xlu0 %v1474, 8
  %v4175 = vpop.permute.xlu0 %4174
  %4176 = vrot.lane.b32.xlu0 %v1477, 8
  %v4177 = vpop.permute.xlu0 %4176
  %4178 = vrot.lane.b32.xlu0 %v1482, 8
  %v4179 = vpop.permute.xlu0 %4178
  %4180 = vrot.lane.b32.xlu0 %v1485, 8
  %v4181 = vpop.permute.xlu0 %4180
  %4182 = vrot.lane.b32.xlu0 %v1490, 8
  %v4183 = vpop.permute.xlu0 %4182
  %4184 = vrot.lane.b32.xlu0 %v1493, 8
  %v4185 = vpop.permute.xlu0 %4184
  %4186 = vrot.lane.b32.xlu0 %v1498, 8
  %v4187 = vpop.permute.xlu0 %4186
  %4188 = vrot.lane.b32.xlu0 %v1501, 8
  %v4189 = vpop.permute.xlu0 %4188
  %4190 = vrot.lane.b32.xlu0 %v1506, 8
  %v4191 = vpop.permute.xlu0 %4190
  %4192 = vrot.lane.b32.xlu0 %v1509, 8
  %v4193 = vpop.permute.xlu0 %4192
  %4194 = vrot.lane.b32.xlu0 %v1514, 8
  %v4195 = vpop.permute.xlu0 %4194
  %4196 = vrot.lane.b32.xlu0 %v1517, 8
  %v4197 = vpop.permute.xlu0 %4196
  %4198 = vrot.lane.b32.xlu0 %v1522, 8
  %v4199 = vpop.permute.xlu0 %4198
  %4200 = vrot.lane.b32.xlu0 %v1525, 8
  %v4201 = vpop.permute.xlu0 %4200
  %4202 = vrot.lane.b32.xlu0 %v1530, 8
  %v4203 = vpop.permute.xlu0 %4202
  %4204 = vrot.lane.b32.xlu0 %v1533, 8
  %v4205 = vpop.permute.xlu0 %4204
  %4206 = vrot.lane.b32.xlu0 %v1538, 8
  %v4207 = vpop.permute.xlu0 %4206
  %4208 = vrot.lane.b32.xlu0 %v1541, 8
  %v4209 = vpop.permute.xlu0 %4208
  %4210 = vrot.lane.b32.xlu0 %v1546, 8
  %v4211 = vpop.permute.xlu0 %4210
  %4212 = vrot.lane.b32.xlu0 %v1549, 8
  %v4213 = vpop.permute.xlu0 %4212
  %4214 = vrot.lane.b32.xlu0 %v1554, 8
  %v4215 = vpop.permute.xlu0 %4214
  %4216 = vrot.lane.b32.xlu0 %v1557, 8
  %v4217 = vpop.permute.xlu0 %4216
  %4218 = vrot.lane.b32.xlu0 %v1562, 8
  %v4219 = vpop.permute.xlu0 %4218
  %4220 = vrot.lane.b32.xlu0 %v1565, 8
  %v4221 = vpop.permute.xlu0 %4220
  %4222 = vrot.lane.b32.xlu0 %v1570, 8
  %v4223 = vpop.permute.xlu0 %4222
  %4224 = vrot.lane.b32.xlu0 %v1573, 8
  %v4225 = vpop.permute.xlu0 %4224
  %4226 = vrot.lane.b32.xlu0 %v1578, 8
  %v4227 = vpop.permute.xlu0 %4226
  %4228 = vrot.lane.b32.xlu0 %v1581, 8
  %v4229 = vpop.permute.xlu0 %4228
  %4230 = vrot.lane.b32.xlu0 %v1586, 8
  %v4231 = vpop.permute.xlu0 %4230
  %4232 = vrot.lane.b32.xlu0 %v1589, 8
  %v4233 = vpop.permute.xlu0 %4232
  %4234 = vrot.lane.b32.xlu0 %v1594, 8
  %v4235 = vpop.permute.xlu0 %4234
  %4236 = vrot.lane.b32.xlu0 %v1597, 8
  %v4237 = vpop.permute.xlu0 %4236
  %4238 = vrot.lane.b32.xlu0 %v1602, 8
  %v4239 = vpop.permute.xlu0 %4238
  %4240 = vrot.lane.b32.xlu0 %v1605, 8
  %v4241 = vpop.permute.xlu0 %4240
  %4242 = vrot.lane.b32.xlu0 %v1610, 8
  %v4243 = vpop.permute.xlu0 %4242
  %4244 = vrot.lane.b32.xlu0 %v1613, 8
  %v4245 = vpop.permute.xlu0 %4244
  %4246 = vrot.lane.b32.xlu0 %v1618, 8
  %v4247 = vpop.permute.xlu0 %4246
  %4248 = vrot.lane.b32.xlu0 %v1621, 8
  %v4249 = vpop.permute.xlu0 %4248
  %4250 = vrot.lane.b32.xlu0 %v1626, 8
  %v4251 = vpop.permute.xlu0 %4250
  %4252 = vrot.lane.b32.xlu0 %v1629, 8
  %v4253 = vpop.permute.xlu0 %4252
  %4254 = vrot.lane.b32.xlu0 %v1634, 8
  %v4255 = vpop.permute.xlu0 %4254
  %4256 = vrot.lane.b32.xlu0 %v1637, 8
  %v4257 = vpop.permute.xlu0 %4256
  %4258 = vrot.lane.b32.xlu0 %v1642, 8
  %v4259 = vpop.permute.xlu0 %4258
  %4260 = vrot.lane.b32.xlu0 %v1645, 8
  %v4261 = vpop.permute.xlu0 %4260
  %4262 = vrot.lane.b32.xlu0 %v1650, 8
  %v4263 = vpop.permute.xlu0 %4262
  %4264 = vrot.lane.b32.xlu0 %v1653, 8
  %v4265 = vpop.permute.xlu0 %4264
  %4266 = vrot.lane.b32.xlu0 %v1658, 8
  %v4267 = vpop.permute.xlu0 %4266
  %4268 = vrot.lane.b32.xlu0 %v1661, 8
  %v4269 = vpop.permute.xlu0 %4268
  %4270 = vrot.lane.b32.xlu0 %v1666, 8
  %v4271 = vpop.permute.xlu0 %4270
  %4272 = vrot.lane.b32.xlu0 %v1669, 8
  %v4273 = vpop.permute.xlu0 %4272
  %4274 = vrot.lane.b32.xlu0 %v1674, 8
  %v4275 = vpop.permute.xlu0 %4274
  %4276 = vrot.lane.b32.xlu0 %v1677, 8
  %v4277 = vpop.permute.xlu0 %4276
  %4278 = vrot.lane.b32.xlu0 %v1682, 8
  %v4279 = vpop.permute.xlu0 %4278
  %4280 = vrot.lane.b32.xlu0 %v1685, 8
  %v4281 = vpop.permute.xlu0 %4280
  %4282 = vrot.lane.b32.xlu0 %v1690, 8
  %v4283 = vpop.permute.xlu0 %4282
  %4284 = vrot.lane.b32.xlu0 %v1693, 8
  %v4285 = vpop.permute.xlu0 %4284
  %4286 = vrot.lane.b32.xlu0 %v1698, 8
  %v4287 = vpop.permute.xlu0 %4286
  %4288 = vrot.lane.b32.xlu0 %v1701, 8
  %v4289 = vpop.permute.xlu0 %4288
  %4290 = vrot.lane.b32.xlu0 %v1706, 8
  %v4291 = vpop.permute.xlu0 %4290
  %4292 = vrot.lane.b32.xlu0 %v1709, 8
  %v4293 = vpop.permute.xlu0 %4292
  %4294 = vrot.lane.b32.xlu0 %v1714, 8
  %v4295 = vpop.permute.xlu0 %4294
  %4296 = vrot.lane.b32.xlu0 %v1717, 8
  %v4297 = vpop.permute.xlu0 %4296
  %vm4362 = vcmask 64512
  %v4363 = vsel %vm4362, %v3852, %v4171
  %v4364 = vsel %vm4362, %v3855, %v4173
  %v4365 = vsel %vm4362, %v3860, %v4175
  %v4366 = vsel %vm4362, %v3863, %v4177
  %v4367 = vsel %vm4362, %v3868, %v4179
  %v4368 = vsel %vm4362, %v3871, %v4181
  %v4369 = vsel %vm4362, %v3876, %v4183
  %v4370 = vsel %vm4362, %v3879, %v4185
  %v4371 = vsel %vm4362, %v3884, %v4187
  %v4372 = vsel %vm4362, %v3887, %v4189
  %v4373 = vsel %vm4362, %v3892, %v4191
  %v4374 = vsel %vm4362, %v3895, %v4193
  %v4375 = vsel %vm4362, %v3900, %v4195
  %v4376 = vsel %vm4362, %v3903, %v4197
  %v4377 = vsel %vm4362, %v3908, %v4199
  %v4378 = vsel %vm4362, %v3911, %v4201
  %v4379 = vsel %vm4362, %v3916, %v4203
  %v4380 = vsel %vm4362, %v3919, %v4205
  %v4381 = vsel %vm4362, %v3924, %v4207
  %v4382 = vsel %vm4362, %v3927, %v4209
  %v4383 = vsel %vm4362, %v3932, %v4211
  %v4384 = vsel %vm4362, %v3935, %v4213
  %v4385 = vsel %vm4362, %v3940, %v4215
  %v4386 = vsel %vm4362, %v3943, %v4217
  %v4387 = vsel %vm4362, %v3948, %v4219
  %v4388 = vsel %vm4362, %v3951, %v4221
  %v4389 = vsel %vm4362, %v3956, %v4223
  %v4390 = vsel %vm4362, %v3959, %v4225
  %v4391 = vsel %vm4362, %v3964, %v4227
  %v4392 = vsel %vm4362, %v3967, %v4229
  %v4393 = vsel %vm4362, %v3972, %v4231
  %v4394 = vsel %vm4362, %v3975, %v4233
  %v4395 = vsel %vm4362, %v3980, %v4235
  %v4396 = vsel %vm4362, %v3983, %v4237
  %v4397 = vsel %vm4362, %v3988, %v4239
  %v4398 = vsel %vm4362, %v3991, %v4241
  %v4399 = vsel %vm4362, %v3996, %v4243
  %v4400 = vsel %vm4362, %v3999, %v4245
  %v4401 = vsel %vm4362, %v4004, %v4247
  %v4402 = vsel %vm4362, %v4007, %v4249
  %v4403 = vsel %vm4362, %v4012, %v4251
  %v4404 = vsel %vm4362, %v4015, %v4253
  %v4405 = vsel %vm4362, %v4020, %v4255
  %v4406 = vsel %vm4362, %v4023, %v4257
  %v4407 = vsel %vm4362, %v4028, %v4259
  %v4408 = vsel %vm4362, %v4031, %v4261
  %v4409 = vsel %vm4362, %v4036, %v4263
  %v4410 = vsel %vm4362, %v4039, %v4265
  %v4411 = vsel %vm4362, %v4044, %v4267
  %v4412 = vsel %vm4362, %v4047, %v4269
  %v4413 = vsel %vm4362, %v4052, %v4271
  %v4414 = vsel %vm4362, %v4055, %v4273
  %v4415 = vsel %vm4362, %v4060, %v4275
  %v4416 = vsel %vm4362, %v4063, %v4277
  %v4417 = vsel %vm4362, %v4068, %v4279
  %v4418 = vsel %vm4362, %v4071, %v4281
  %v4419 = vsel %vm4362, %v4076, %v4283
  %v4420 = vsel %vm4362, %v4079, %v4285
  %v4421 = vsel %vm4362, %v4084, %v4287
  %v4422 = vsel %vm4362, %v4087, %v4289
  %v4423 = vsel %vm4362, %v4092, %v4291
  %v4424 = vsel %vm4362, %v4095, %v4293
  %v4425 = vsel %vm4362, %v4100, %v4295
  %v4426 = vsel %vm4362, %v4103, %v4297
  %4427 = vst.msk [vmem:[%s3] sm:$0xff] %vm339, %v4363
  %4428 = vst.msk [vmem:[%s3 + $0x8] sm:$0xff] %vm339, %v4364
  %4429 = vst.msk [vmem:[%s3 + $0x10] sm:$0xff] %vm339, %v4365
  %4430 = vst.msk [vmem:[%s3 + $0x18] sm:$0xff] %vm339, %v4366
  %4431 = vst.msk [vmem:[%s3 + $0x20] sm:$0xff] %vm339, %v4367
  %4432 = vst.msk [vmem:[%s3 + $0x28] sm:$0xff] %vm339, %v4368
  %4433 = vst.msk [vmem:[%s3 + $0x30] sm:$0xff] %vm339, %v4369
  %4434 = vst.msk [vmem:[%s3 + $0x38] sm:$0xff] %vm339, %v4370
  %4435 = vst.msk [vmem:[%s3 + $0x40] sm:$0xff] %vm339, %v4371
  %4436 = vst.msk [vmem:[%s3 + $0x48] sm:$0xff] %vm339, %v4372
  %4437 = vst.msk [vmem:[%s3 + $0x50] sm:$0xff] %vm339, %v4373
  %4438 = vst.msk [vmem:[%s3 + $0x58] sm:$0xff] %vm339, %v4374
  %4439 = vst.msk [vmem:[%s3 + $0x60] sm:$0xff] %vm339, %v4375
  %4440 = vst.msk [vmem:[%s3 + $0x68] sm:$0xff] %vm339, %v4376
  %4441 = vst.msk [vmem:[%s3 + $0x70] sm:$0xff] %vm339, %v4377
  %4442 = vst.msk [vmem:[%s3 + $0x78] sm:$0xff] %vm339, %v4378
  %4443 = vst.msk [vmem:[%s3 + $0x80] sm:$0xff] %vm339, %v4379
  %4444 = vst.msk [vmem:[%s3 + $0x88] sm:$0xff] %vm339, %v4380
  %4445 = vst.msk [vmem:[%s3 + $0x90] sm:$0xff] %vm339, %v4381
  %4446 = vst.msk [vmem:[%s3 + $0x98] sm:$0xff] %vm339, %v4382
  %4447 = vst.msk [vmem:[%s3 + $0xa0] sm:$0xff] %vm339, %v4383
  %4448 = vst.msk [vmem:[%s3 + $0xa8] sm:$0xff] %vm339, %v4384
  %4449 = vst.msk [vmem:[%s3 + $0xb0] sm:$0xff] %vm339, %v4385
  %4450 = vst.msk [vmem:[%s3 + $0xb8] sm:$0xff] %vm339, %v4386
  %4451 = vst.msk [vmem:[%s3 + $0xc0] sm:$0xff] %vm339, %v4387
  %4452 = vst.msk [vmem:[%s3 + $0xc8] sm:$0xff] %vm339, %v4388
  %4453 = vst.msk [vmem:[%s3 + $0xd0] sm:$0xff] %vm339, %v4389
  %4454 = vst.msk [vmem:[%s3 + $0xd8] sm:$0xff] %vm339, %v4390
  %4455 = vst.msk [vmem:[%s3 + $0xe0] sm:$0xff] %vm339, %v4391
  %4456 = vst.msk [vmem:[%s3 + $0xe8] sm:$0xff] %vm339, %v4392
  %4457 = vst.msk [vmem:[%s3 + $0xf0] sm:$0xff] %vm339, %v4393
  %4458 = vst.msk [vmem:[%s3 + $0xf8] sm:$0xff] %vm339, %v4394
  %4459 = vst.msk [vmem:[%s3 + $0x100] sm:$0xff] %vm339, %v4395
  %4460 = vst.msk [vmem:[%s3 + $0x108] sm:$0xff] %vm339, %v4396
  %4461 = vst.msk [vmem:[%s3 + $0x110] sm:$0xff] %vm339, %v4397
  %4462 = vst.msk [vmem:[%s3 + $0x118] sm:$0xff] %vm339, %v4398
  %4463 = vst.msk [vmem:[%s3 + $0x120] sm:$0xff] %vm339, %v4399
  %4464 = vst.msk [vmem:[%s3 + $0x128] sm:$0xff] %vm339, %v4400
  %4465 = vst.msk [vmem:[%s3 + $0x130] sm:$0xff] %vm339, %v4401
  %4466 = vst.msk [vmem:[%s3 + $0x138] sm:$0xff] %vm339, %v4402
  %4467 = vst.msk [vmem:[%s3 + $0x140] sm:$0xff] %vm339, %v4403
  %4468 = vst.msk [vmem:[%s3 + $0x148] sm:$0xff] %vm339, %v4404
  %4469 = vst.msk [vmem:[%s3 + $0x150] sm:$0xff] %vm339, %v4405
  %4470 = vst.msk [vmem:[%s3 + $0x158] sm:$0xff] %vm339, %v4406
  %4471 = vst.msk [vmem:[%s3 + $0x160] sm:$0xff] %vm339, %v4407
  %4472 = vst.msk [vmem:[%s3 + $0x168] sm:$0xff] %vm339, %v4408
  %4473 = vst.msk [vmem:[%s3 + $0x170] sm:$0xff] %vm339, %v4409
  %4474 = vst.msk [vmem:[%s3 + $0x178] sm:$0xff] %vm339, %v4410
  %4475 = vst.msk [vmem:[%s3 + $0x180] sm:$0xff] %vm339, %v4411
  %4476 = vst.msk [vmem:[%s3 + $0x188] sm:$0xff] %vm339, %v4412
  %4477 = vst.msk [vmem:[%s3 + $0x190] sm:$0xff] %vm339, %v4413
  %4478 = vst.msk [vmem:[%s3 + $0x198] sm:$0xff] %vm339, %v4414
  %4479 = vst.msk [vmem:[%s3 + $0x1a0] sm:$0xff] %vm339, %v4415
  %4480 = vst.msk [vmem:[%s3 + $0x1a8] sm:$0xff] %vm339, %v4416
  %4481 = vst.msk [vmem:[%s3 + $0x1b0] sm:$0xff] %vm339, %v4417
  %4482 = vst.msk [vmem:[%s3 + $0x1b8] sm:$0xff] %vm339, %v4418
  %4483 = vst.msk [vmem:[%s3 + $0x1c0] sm:$0xff] %vm339, %v4419
  %4484 = vst.msk [vmem:[%s3 + $0x1c8] sm:$0xff] %vm339, %v4420
  %4485 = vst.msk [vmem:[%s3 + $0x1d0] sm:$0xff] %vm339, %v4421
  %4486 = vst.msk [vmem:[%s3 + $0x1d8] sm:$0xff] %vm339, %v4422
  %4487 = vst.msk [vmem:[%s3 + $0x1e0] sm:$0xff] %vm339, %v4423
  %4488 = vst.msk [vmem:[%s3 + $0x1e8] sm:$0xff] %vm339, %v4424
  %4489 = vst.msk [vmem:[%s3 + $0x1f0] sm:$0xff] %vm339, %v4425
  %4490 = vst.msk [vmem:[%s3 + $0x1f8] sm:$0xff] %vm339, %v4426
  // Predicated region
  $region14: #{forward.1} parent=0 // pred_check
    _
  $region15: #{forward.1} parent=0 // pred_check_branch
    %4492 = sbr.rel (0) target = $region17
  $region16: #{forward.1} parent=0 // pred_region
    _
  $region17: #{forward.1} parent=0 // pred_fallthru
    _
  // Predicated region
  $region18: #{forward.1} parent=0 // pred_check
    _
  $region19: #{forward.1} parent=0 // pred_check_branch
    %4494 = sbr.rel (0) target = $region21
  $region20: #{forward.1} parent=0 // pred_region
    _
  $region21: #{forward.1} parent=0 // pred_fallthru
    _

</llo_original>
